<compile_context>
chip_gen: v7x
topology: tpu7x:2x2x1
jax: 0.10.0
libtpu: 0.0.40
codegen_flags: <defaults>
</compile_context>

<pallas_src>
import jax
import jax.numpy as jnp
from jax.experimental import pallas as pl
from jax.experimental.pallas import tpu as pltpu

BN_EPS = 1e-5
BN_SCALE = 1.0 / (1.0 + BN_EPS) ** 0.5   # eval BatchNorm, default stats, folded into weights


# --------------------------- generation-aware tiling ---------------------------

def _num_tensorcores() -> int:
    """1 TensorCore on v5e/v6e (grid is a sequential loop there), 2 otherwise (v7x / megacore)."""
    try:
        kind = jax.devices()[0].device_kind.lower()
    except Exception:
        return 2
    if any(tag in kind for tag in ("v5 lite", "v5e", "v6 lite", "v6e")):
        return 1
    return 2


_NUM_TC = _num_tensorcores()


def _row_tile(m_rows: int) -> int:
    """Largest comfortable row tile; guarantee >=2 blocks on multi-TC chips so both cores get
    work, never split a VMEM-fitting matrix on single-TC chips (extra pipeline steps only)."""
    tm = min(m_rows, 2048)
    if _NUM_TC > 1 and tm == m_rows and m_rows >= 32:
        tm = (m_rows + 1) // 2
    if m_rows >= 16:
        tm = max(16, (tm // 16) * 16)      # bf16 sublane packing: multiples of 16 rows
    return tm


def _col_tile(n_cols: int) -> int:
    """Only split the output-channel axis when the split stays 128-lane aligned."""
    if n_cols >= 1024 and n_cols % 256 == 0:
        return n_cols // 2
    return n_cols


# ------------------------------- Pallas kernels --------------------------------

def _conv1x1_relu_kernel(x_ref, w_ref, o_ref):
    # ConvBlock(k=1): conv(no bias) -> eval BN (folded into w) -> dropout(p=0, identity) -> ReLU
    acc = jnp.dot(x_ref[...], w_ref[...], preferred_element_type=jnp.float32)
    o_ref[...] = jnp.maximum(acc, 0.0).astype(o_ref.dtype)


def _cat_conv1x1_relu_kernel(a_ref, b_ref, wa_ref, wb_ref, o_ref):
    # relu(cat(a, b) @ cat(wa, wb)) without materializing the concat.
    acc = jnp.dot(a_ref[...], wa_ref[...], preferred_element_type=jnp.float32)
    acc = acc + jnp.dot(b_ref[...], wb_ref[...], preferred_element_type=jnp.float32)
    o_ref[...] = jnp.maximum(acc, 0.0).astype(o_ref.dtype)


def conv1x1_relu(x2d, w_bf16, out_dtype):
    """y = relu(x @ w_folded); bf16 MXU inputs, f32 accumulate."""
    M, K = x2d.shape
    N = w_bf16.shape[1]
    tm, tn = _row_tile(M), _col_tile(N)
    return pl.pallas_call(
        _conv1x1_relu_kernel,
        out_shape=jax.ShapeDtypeStruct((M, N), out_dtype),
        grid=(pl.cdiv(M, tm), pl.cdiv(N, tn)),
        in_specs=[pl.BlockSpec((tm, K), lambda i, j: (i, 0)),
                  pl.BlockSpec((K, tn), lambda i, j: (0, j))],
        out_specs=pl.BlockSpec((tm, tn), lambda i, j: (i, j)),
        compiler_params=pltpu.CompilerParams(
            dimension_semantics=("parallel", "parallel")),
    )(x2d.astype(jnp.bfloat16), w_bf16)


def cat_conv1x1_relu(a2d, b2d, wa_bf16, wb_bf16, out_dtype):
    """y = relu(a @ wa + b @ wb) == relu(concat(a, b, axis=-1) @ concat(wa, wb, axis=0))."""
    M, Ka = a2d.shape
    Kb = b2d.shape[1]
    N = wa_bf16.shape[1]
    tm, tn = _row_tile(M), _col_tile(N)
    # TODO(synk): a single K=Ka+Kb dot would halve MXU pushes on the 256-deep MXU, but staging
    # the concat in VMEM at a non-128-aligned lane offset risks a relayout; keep two dots.
    return pl.pallas_call(
        _cat_conv1x1_relu_kernel,
        out_shape=jax.ShapeDtypeStruct((M, N), out_dtype),
        grid=(pl.cdiv(M, tm), pl.cdiv(N, tn)),
        in_specs=[pl.BlockSpec((tm, Ka), lambda i, j: (i, 0)),
                  pl.BlockSpec((tm, Kb), lambda i, j: (i, 0)),
                  pl.BlockSpec((Ka, tn), lambda i, j: (0, j)),
                  pl.BlockSpec((Kb, tn), lambda i, j: (0, j))],
        out_specs=pl.BlockSpec((tm, tn), lambda i, j: (i, j)),
        compiler_params=pltpu.CompilerParams(
            dimension_semantics=("parallel", "parallel")),
    )(a2d.astype(jnp.bfloat16), b2d.astype(jnp.bfloat16), wa_bf16, wb_bf16)


# --------------------------------- JAX glue ------------------------------------

def _interp_matrix(out_size, in_size):
    """1-D bilinear (align_corners=True) interpolation matrix, (out_size, in_size)."""
    scale = (in_size - 1) / (out_size - 1)
    src = jnp.arange(out_size, dtype=jnp.float32) * scale
    i0 = jnp.clip(jnp.floor(src).astype(jnp.int32), 0, in_size - 1)
    i1 = jnp.clip(i0 + 1, 0, in_size - 1)
    w1 = src - i0.astype(jnp.float32)
    return ((1.0 - w1)[:, None] * jax.nn.one_hot(i0, in_size)
            + w1[:, None] * jax.nn.one_hot(i1, in_size))


def bilinear_up2_nhwc(x):
    """F.interpolate(scale_factor=2, mode='bilinear', align_corners=True) on NHWC."""
    _, H, W, _ = x.shape
    Ah = _interp_matrix(2 * H, H)
    Aw = _interp_matrix(2 * W, W)
    y = jnp.einsum('oh,nhwc->nowc', Ah, x)
    return jnp.einsum('pw,nowc->nopc', Aw, y)


def conv_merge_forward(params, nfeat_nchw, mfeat_nchw):
    """ConvMerge.forward: layer_m(m), layer_n(n), 2x bilinear upsample of n, cat, layer_mn."""
    nfeat = jnp.transpose(nfeat_nchw, (0, 2, 3, 1))            # NCHW -> NHWC
    mfeat = jnp.transpose(mfeat_nchw, (0, 2, 3, 1))
    B, Hm, Wm, Cm = mfeat.shape
    _, Hn, Wn, Cn = nfeat.shape

    # layer_m: bf16 out feeds the cat-conv MXU directly.
    mf = conv1x1_relu(mfeat.reshape(B * Hm * Wm, Cm), params['w_m'],
                      jnp.bfloat16).reshape(B, Hm, Wm, -1)
    # layer_n at low resolution (4x fewer rows); keep f32 so the bilinear interp stays accurate.
    nf = conv1x1_relu(nfeat.reshape(B * Hn * Wn, Cn), params['w_n'],
                      jnp.float32).reshape(B, Hn, Wn, -1)
    nf_up = bilinear_up2_nhwc(nf)                              # (B, 2Hn, 2Wn, innerdim1)

    id1 = nf_up.shape[-1]
    id2 = mf.shape[-1]
    out = cat_conv1x1_relu(nf_up.reshape(B * Hm * Wm, id1),
                           mf.reshape(B * Hm * Wm, id2),
                           params['w_mn_n'], params['w_mn_m'], jnp.float32)
    out = out.reshape(B, Hm, Wm, -1)
    return jnp.transpose(out, (0, 3, 1, 2))                    # NHWC -> NCHW


# --------------------------------- parameters -----------------------------------

def init_raw_params(key, n, m, innerdim1=None, innerdim2=None, out_dim=None):
    innerdim1 = n // 4 if innerdim1 is None else innerdim1
    innerdim2 = m // 4 if innerdim2 is None else innerdim2
    out_dim = m if out_dim is None else out_dim
    ks = jax.random.split(key, 3)

    def w(k, cin, cout):        # (Cin, Cout) channel matrix of a 1x1 conv
        return jax.random.normal(k, (cin, cout), jnp.float32) / jnp.sqrt(jnp.float32(cin))

    return {'w_n': w(ks[0], n, innerdim1),
            'w_m': w(ks[1], m, innerdim2),
            'w_mn': w(ks[2], innerdim1 + innerdim2, out_dim)}


def prepare_params(raw, innerdim1):
    """Fold eval-mode BatchNorm (default stats: mean=0, var=1, gamma=1, beta=0) into the conv
    weights and pre-cast to bf16 ONCE, so kernels run relu(x @ w_folded) with no extra operands.
    """
    # TODO(synk): non-default BN running stats / affine params need the general fold
    # (w * gamma / sqrt(var+eps), beta - mean * gamma / sqrt(var+eps)) plus a per-channel bias
    # epilogue in the kernels; not needed for the default-initialized module.
    fold = lambda w: (w * BN_SCALE).astype(jnp.bfloat16)
    w_mn = raw['w_mn']
    return {'w_n': fold(raw['w_n']),
            'w_m': fold(raw['w_m']),
            'w_mn_n': fold(w_mn[:innerdim1]),    # rows consuming the upsampled n features
            'w_mn_m': fold(w_mn[innerdim1:])}    # rows consuming the m features


if __name__ == "__main__":
    N_CH, M_CH = 256, 64                      # ConvMerge(n=256, m=64): inner 64 + 16 -> out 64
    key = jax.random.PRNGKey(0)
    k_p, k_n, k_m = jax.random.split(key, 3)
    nfeat = jax.random.normal(k_n, (2, N_CH, 16, 16), jnp.float32)   # coarse map (/32-style)
    mfeat = jax.random.normal(k_m, (2, M_CH, 32, 32), jnp.float32)   # fine map (2x spatial)

    raw = init_raw_params(k_p, N_CH, M_CH)
    params = prepare_params(raw, innerdim1=N_CH // 4)

    out = jax.jit(conv_merge_forward)(params, nfeat, mfeat)
    jax.block_until_ready(out)
    assert out.shape == (2, M_CH, 32, 32), out.shape
    print("KERNEL_OK")
</pallas_src>

<mosaic_0001>
module attributes {stable_mosaic.version = 11 : i64} {
  func.func @_conv1x1_relu_kernel(%arg0: i32, %arg1: i32, %arg2: memref<256x256xbf16, #tpu.memory_space<vmem>>, %arg3: memref<256x64xbf16, #tpu.memory_space<vmem>>, %arg4: memref<256x64xf32, #tpu.memory_space<vmem>>) attributes {dimension_semantics = [#tpu.dimension_semantics<parallel>, #tpu.dimension_semantics<parallel>], iteration_bounds = array<i64: 2, 1>, scalar_prefetch = 0 : i64, scratch_operands = 0 : i64, tpu.core_type = #tpu.core_type<tc>, window_params = [{transform_indices = @transform_0, window_bounds = array<i64: 256, 256>}, {transform_indices = @transform_1, window_bounds = array<i64: 256, 64>}, {transform_indices = @transform_2, window_bounds = array<i64: 256, 64>}]} {
    %c0 = arith.constant 0 : index
    %c0_0 = arith.constant 0 : index
    %0 = vector.load %arg2[%c0, %c0_0] : memref<256x256xbf16, #tpu.memory_space<vmem>>, vector<256x256xbf16>
    %c0_1 = arith.constant 0 : index
    %c0_2 = arith.constant 0 : index
    %1 = vector.load %arg3[%c0_1, %c0_2] : memref<256x64xbf16, #tpu.memory_space<vmem>>, vector<256x64xbf16>
    %cst = arith.constant dense<0.000000e+00> : vector<256x64xf32>
    %2 = tpu.matmul %0, %1, %cst {dimension_numbers = #tpu.dot_dimension_numbers<[1], [0], [0], [1], [0, 0, 1, 1], [], []>} : vector<256x256xbf16>, vector<256x64xbf16>, vector<256x64xf32> -> vector<256x64xf32>
    %cst_3 = arith.constant 0.000000e+00 : f32
    %3 = vector.broadcast %cst_3 : f32 to vector<256x64xf32>
    %4 = arith.maximumf %2, %3 : vector<256x64xf32>
    %c0_4 = arith.constant 0 : index
    %c0_5 = arith.constant 0 : index
    %5 = vector.load %arg4[%c0_4, %c0_5] : memref<256x64xf32, #tpu.memory_space<vmem>>, vector<256x64xf32>
    tpu.vector_store %arg4[%c0_4, %c0_5], %4 {strides = array<i32>} : memref<256x64xf32, #tpu.memory_space<vmem>>, vector<256x64xf32>,
    return
  }
  func.func @transform_0(%arg0: i32, %arg1: i32) -> (i32, i32) {
    %c0_i32 = arith.constant 0 : i32
    %c0_i32_0 = arith.constant 0 : i32
    return %arg0, %c0_i32 : i32, i32
  }
  func.func @transform_1(%arg0: i32, %arg1: i32) -> (i32, i32) {
    %c0_i32 = arith.constant 0 : i32
    %c0_i32_0 = arith.constant 0 : i32
    return %c0_i32, %arg1 : i32, i32
  }
  func.func @transform_2(%arg0: i32, %arg1: i32) -> (i32, i32) {
    %c0_i32 = arith.constant 0 : i32
    return %arg0, %arg1 : i32, i32
  }
}

module attributes {stable_mosaic.version = 11 : i64} {
  func.func @_conv1x1_relu_kernel(%arg0: i32, %arg1: i32, %arg2: memref<1024x64xbf16, #tpu.memory_space<vmem>>, %arg3: memref<64x16xbf16, #tpu.memory_space<vmem>>, %arg4: memref<1024x16xbf16, #tpu.memory_space<vmem>>) attributes {dimension_semantics = [#tpu.dimension_semantics<parallel>, #tpu.dimension_semantics<parallel>], iteration_bounds = array<i64: 2, 1>, scalar_prefetch = 0 : i64, scratch_operands = 0 : i64, tpu.core_type = #tpu.core_type<tc>, window_params = [{transform_indices = @transform_0, window_bounds = array<i64: 1024, 64>}, {transform_indices = @transform_1, window_bounds = array<i64: 64, 16>}, {transform_indices = @transform_2, window_bounds = array<i64: 1024, 16>}]} {
    %c0 = arith.constant 0 : index
    %c0_0 = arith.constant 0 : index
    %0 = vector.load %arg2[%c0, %c0_0] : memref<1024x64xbf16, #tpu.memory_space<vmem>>, vector<1024x64xbf16>
    %c0_1 = arith.constant 0 : index
    %c0_2 = arith.constant 0 : index
    %1 = vector.load %arg3[%c0_1, %c0_2] : memref<64x16xbf16, #tpu.memory_space<vmem>>, vector<64x16xbf16>
    %cst = arith.constant dense<0.000000e+00> : vector<1024x16xf32>
    %2 = tpu.matmul %0, %1, %cst {dimension_numbers = #tpu.dot_dimension_numbers<[1], [0], [0], [1], [0, 0, 1, 1], [], []>} : vector<1024x64xbf16>, vector<64x16xbf16>, vector<1024x16xf32> -> vector<1024x16xf32>
    %cst_3 = arith.constant 0.000000e+00 : f32
    %3 = vector.broadcast %cst_3 : f32 to vector<1024x16xf32>
    %4 = arith.maximumf %2, %3 : vector<1024x16xf32>
    %5 = arith.truncf %4 : vector<1024x16xf32> to vector<1024x16xbf16>
    %c0_4 = arith.constant 0 : index
    %c0_5 = arith.constant 0 : index
    %6 = vector.load %arg4[%c0_4, %c0_5] : memref<1024x16xbf16, #tpu.memory_space<vmem>>, vector<1024x16xbf16>
    tpu.vector_store %arg4[%c0_4, %c0_5], %5 {strides = array<i32>} : memref<1024x16xbf16, #tpu.memory_space<vmem>>, vector<1024x16xbf16>,
    return
  }
  func.func @transform_0(%arg0: i32, %arg1: i32) -> (i32, i32) {
    %c0_i32 = arith.constant 0 : i32
    %c0_i32_0 = arith.constant 0 : i32
    return %arg0, %c0_i32 : i32, i32
  }
  func.func @transform_1(%arg0: i32, %arg1: i32) -> (i32, i32) {
    %c0_i32 = arith.constant 0 : i32
    %c0_i32_0 = arith.constant 0 : i32
    return %c0_i32, %arg1 : i32, i32
  }
  func.func @transform_2(%arg0: i32, %arg1: i32) -> (i32, i32) {
    %c0_i32 = arith.constant 0 : i32
    return %arg0, %arg1 : i32, i32
  }
}

module attributes {stable_mosaic.version = 11 : i64} {
  func.func @_cat_conv1x1_relu_kernel(%arg0: i32, %arg1: i32, %arg2: memref<1024x64xbf16, #tpu.memory_space<vmem>>, %arg3: memref<1024x16xbf16, #tpu.memory_space<vmem>>, %arg4: memref<64x64xbf16, #tpu.memory_space<vmem>>, %arg5: memref<16x64xbf16, #tpu.memory_space<vmem>>, %arg6: memref<1024x64xf32, #tpu.memory_space<vmem>>) attributes {dimension_semantics = [#tpu.dimension_semantics<parallel>, #tpu.dimension_semantics<parallel>], iteration_bounds = array<i64: 2, 1>, scalar_prefetch = 0 : i64, scratch_operands = 0 : i64, tpu.core_type = #tpu.core_type<tc>, window_params = [{transform_indices = @transform_0, window_bounds = array<i64: 1024, 64>}, {transform_indices = @transform_1, window_bounds = array<i64: 1024, 16>}, {transform_indices = @transform_2, window_bounds = array<i64: 64, 64>}, {transform_indices = @transform_3, window_bounds = array<i64: 16, 64>}, {transform_indices = @transform_4, window_bounds = array<i64: 1024, 64>}]} {
    %c0 = arith.constant 0 : index
    %c0_0 = arith.constant 0 : index
    %0 = vector.load %arg2[%c0, %c0_0] : memref<1024x64xbf16, #tpu.memory_space<vmem>>, vector<1024x64xbf16>
    %c0_1 = arith.constant 0 : index
    %c0_2 = arith.constant 0 : index
    %1 = vector.load %arg4[%c0_1, %c0_2] : memref<64x64xbf16, #tpu.memory_space<vmem>>, vector<64x64xbf16>
    %cst = arith.constant dense<0.000000e+00> : vector<1024x64xf32>
    %2 = tpu.matmul %0, %1, %cst {dimension_numbers = #tpu.dot_dimension_numbers<[1], [0], [0], [1], [0, 0, 1, 1], [], []>} : vector<1024x64xbf16>, vector<64x64xbf16>, vector<1024x64xf32> -> vector<1024x64xf32>
    %c0_3 = arith.constant 0 : index
    %c0_4 = arith.constant 0 : index
    %3 = vector.load %arg3[%c0_3, %c0_4] : memref<1024x16xbf16, #tpu.memory_space<vmem>>, vector<1024x16xbf16>
    %c0_5 = arith.constant 0 : index
    %c0_6 = arith.constant 0 : index
    %4 = vector.load %arg5[%c0_5, %c0_6] : memref<16x64xbf16, #tpu.memory_space<vmem>>, vector<16x64xbf16>
    %cst_7 = arith.constant dense<0.000000e+00> : vector<1024x64xf32>
    %5 = tpu.matmul %3, %4, %cst_7 {dimension_numbers = #tpu.dot_dimension_numbers<[1], [0], [0], [1], [0, 0, 1, 1], [], []>} : vector<1024x16xbf16>, vector<16x64xbf16>, vector<1024x64xf32> -> vector<1024x64xf32>
    %6 = arith.addf %2, %5 : vector<1024x64xf32>
    %cst_8 = arith.constant 0.000000e+00 : f32
    %7 = vector.broadcast %cst_8 : f32 to vector<1024x64xf32>
    %8 = arith.maximumf %6, %7 : vector<1024x64xf32>
    %c0_9 = arith.constant 0 : index
    %c0_10 = arith.constant 0 : index
    %9 = vector.load %arg6[%c0_9, %c0_10] : memref<1024x64xf32, #tpu.memory_space<vmem>>, vector<1024x64xf32>
    tpu.vector_store %arg6[%c0_9, %c0_10], %8 {strides = array<i32>} : memref<1024x64xf32, #tpu.memory_space<vmem>>, vector<1024x64xf32>,
    return
  }
  func.func @transform_0(%arg0: i32, %arg1: i32) -> (i32, i32) {
    %c0_i32 = arith.constant 0 : i32
    %c0_i32_0 = arith.constant 0 : i32
    return %arg0, %c0_i32 : i32, i32
  }
  func.func @transform_1(%arg0: i32, %arg1: i32) -> (i32, i32) {
    %c0_i32 = arith.constant 0 : i32
    %c0_i32_0 = arith.constant 0 : i32
    return %arg0, %c0_i32 : i32, i32
  }
  func.func @transform_2(%arg0: i32, %arg1: i32) -> (i32, i32) {
    %c0_i32 = arith.constant 0 : i32
    %c0_i32_0 = arith.constant 0 : i32
    return %c0_i32, %arg1 : i32, i32
  }
  func.func @transform_3(%arg0: i32, %arg1: i32) -> (i32, i32) {
    %c0_i32 = arith.constant 0 : i32
    %c0_i32_0 = arith.constant 0 : i32
    return %c0_i32, %arg1 : i32, i32
  }
  func.func @transform_4(%arg0: i32, %arg1: i32) -> (i32, i32) {
    %c0_i32 = arith.constant 0 : i32
    return %arg0, %arg1 : i32, i32
  }
}

</mosaic_0001>

<llo_original>
// kernel: conv_merge_forward.4
$region0: #{conv_merge_forward.4}
  #allocation0 [shape = 'u32[]', space=smem, size = 0x4, offset = 0x4, fixed_abs, tag = 'smem constant byte address 0x4 - core index']
  #allocation1 [shape = 'u32[144,128]{1,0:T(1,128)}', space=vmem, size = 0x12000, scoped, tag = 'internal scratch']
  %s0 = inlined_call_operand.vmem [shape: bf16[512,256], index: 0, kind: input, shape index: {}]
  %s1 = inlined_call_operand.vmem [shape: bf16[256,64], index: 1, kind: input, shape index: {}]
  %s2 = inlined_call_operand.vmem [shape: f32[512,64], index: 2, kind: output, shape index: {}]
  %s3 = sld [smem:[#allocation0]]
  $region41: #{conv_merge_forward.4} parent=0
    _
  %s5 = ssub.s32 1, %s3
  %s6 = scalar_select 0, %s5, %s3
  loop: start=0, step=1, limit=4
  $region2: #{conv_merge_forward.4} parent=0 // loop_pre_header
    _
  $region3: #{conv_merge_forward.4} parent=0 // loop_header
    %s8 = sphi 0, %s12
    %p9 = scmp.ge.s32.totalorder %s8, 4
    %s15 = sphi 0, %s27
    %s16 = sphi 0, %s23
    %s17 = sphi 0, %s15
    %s18 = sphi 0, %s16
    %s19 = sphi 0, %s17
    %s20 = sphi 0, %s18
    %s30 = sphi 0, %s32
    %s33 = sphi 0, %s30
    %s34 = sphi 0, %s33
    %s50 = sphi 0, %s34
    %s56 = sphi 0, %s58
    %s59 = sphi 0, %s56
    %s60 = sphi 0, %s59
    %s76 = sphi 0, %s60
    %s84 = sphi 0, %s86
    %s87 = sphi 0, %s84
    %s88 = sphi 0, %s87
    %s104 = sphi 0, %s88
  $region4: #{conv_merge_forward.4} parent=0 // loop_header_branch
    %11 = sbr.rel (%p9) target = $region8
  $region5: #{conv_merge_forward.4} parent=0 // loop_body
    %s13 = ssub.s32 %s8, 1
    %s14 = ssub.s32 %s8, 2
    %s21 = sadd.s32 1, %s16
    %p22 = scmp.ge.s32.totalorder %s21, 1
    %s23 = scalar_select %p22, 0, %s21
    %s24 = sadd.s32 1, %s15
    %s25 = scalar_select %p22, %s24, %s15
    %p26 = scmp.ge.s32.totalorder %s25, 2
    %s27 = scalar_select %p26, 0, %s25
    %s28 = ssub.s32 %s15, %s27
    %p29 = scmp.eq.s32.totalorder %s28, 0
    %s31 = sadd.s32 %s30, 1
    %s32 = scalar_select %p29, %s30, %s31
    %p35 = pneg %p29
    %p36 = scmp.eq.s32.totalorder %s8, 1
    %p37 = por %p35, %p36
    %p38 = scmp.ne.s32.totalorder %s30, %s33
    %p39 = scmp.eq.s32.totalorder %s8, 0
    %p40 = por %p38, %p39
    %p41 = scmp.ne.s32.totalorder %s30, %s33
    %p42 = scmp.eq.s32.totalorder %s13, 1
    %p43 = por %p41, %p42
    %p44 = scmp.ne.s32.totalorder %s33, %s34
    %p45 = scmp.eq.s32.totalorder %s13, 0
    %p46 = por %p44, %p45
    %p47 = scmp.ne.s32.totalorder %s33, %s34
    %p48 = scmp.eq.s32.totalorder %s14, 1
    %p49 = por %p47, %p48
    %p51 = scmp.ne.s32.totalorder %s34, %s50
    %p52 = scmp.eq.s32.totalorder %s14, 0
    %p53 = por %p51, %p52
    %s54 = ssub.s32 %s16, %s23
    %p55 = scmp.eq.s32.totalorder %s54, 0
    %s57 = sadd.s32 %s56, 1
    %s58 = scalar_select %p55, %s56, %s57
    %p61 = pneg %p55
    %p62 = scmp.eq.s32.totalorder %s8, 1
    %p63 = por %p61, %p62
    %p64 = scmp.ne.s32.totalorder %s56, %s59
    %p65 = scmp.eq.s32.totalorder %s8, 0
    %p66 = por %p64, %p65
    %p67 = scmp.ne.s32.totalorder %s56, %s59
    %p68 = scmp.eq.s32.totalorder %s13, 1
    %p69 = por %p67, %p68
    %p70 = scmp.ne.s32.totalorder %s59, %s60
    %p71 = scmp.eq.s32.totalorder %s13, 0
    %p72 = por %p70, %p71
    %p73 = scmp.ne.s32.totalorder %s59, %s60
    %p74 = scmp.eq.s32.totalorder %s14, 1
    %p75 = por %p73, %p74
    %p77 = scmp.ne.s32.totalorder %s60, %s76
    %p78 = scmp.eq.s32.totalorder %s14, 0
    %p79 = por %p77, %p78
    %s80 = ssub.s32 %s15, %s27
    %s81 = ssub.s32 %s16, %s23
    %s82 = sor.u32 %s80, %s81
    %p83 = scmp.eq.s32.totalorder %s82, 0
    %s85 = sadd.s32 %s84, 1
    %s86 = scalar_select %p83, %s84, %s85
    %p89 = pneg %p83
    %p90 = scmp.eq.s32.totalorder %s8, 1
    %p91 = por %p89, %p90
    %p92 = scmp.ne.s32.totalorder %s84, %s87
    %p93 = scmp.eq.s32.totalorder %s8, 0
    %p94 = por %p92, %p93
    %p95 = scmp.ne.s32.totalorder %s84, %s87
    %p96 = scmp.eq.s32.totalorder %s13, 1
    %p97 = por %p95, %p96
    %p98 = scmp.ne.s32.totalorder %s87, %s88
    %p99 = scmp.eq.s32.totalorder %s13, 0
    %p100 = por %p98, %p99
    %p101 = scmp.ne.s32.totalorder %s87, %s88
    %p102 = scmp.eq.s32.totalorder %s14, 1
    %p103 = por %p101, %p102
    %p105 = scmp.ne.s32.totalorder %s88, %s104
    %p106 = scmp.eq.s32.totalorder %s14, 0
    %p107 = por %p105, %p106
    %p108 = scmp.le.s32.totalorder 1, %s8
    %p109 = scmp.lt.s32.totalorder %s8, 3
    %p110 = pnand %p108, %p109
    %p111 = pneg %p110
    // Predicated region
    $region9: #{conv_merge_forward.4} parent=5 // pred_check
      _
    $region10: #{conv_merge_forward.4} parent=5 // pred_check_branch
      %113 = sbr.rel (%p110) target = $region12
    $region11: #{conv_merge_forward.4} parent=5 // pred_region
      %s114 = ssub.s32 %s8, 1
      // Predicated region
      $region13: #{conv_merge_forward.4} parent=11 // pred_check
        %p115 = pneg %p72
      $region14: #{conv_merge_forward.4} parent=11 // pred_check_branch
        %117 = sbr.rel (%p115) target = $region16
      $region15: #{conv_merge_forward.4} parent=11 // pred_region
        %p118 = scmp.lt.s32.totalorder %s18, 0
        %s119 = scalar_select %p118, %s18, 0
        %s120 = smul.addr %s119, 4
        %s121 = scalar_lea.vmem %s1, %s120
      $region16: #{conv_merge_forward.4} parent=11 // pred_fallthru
        _
    $region12: #{conv_merge_forward.4} parent=5 // pred_fallthru
      _
    %p122 = scmp.lt.s32.totalorder %s8, 2
    // Predicated region
    $region17: #{conv_merge_forward.4} parent=5 // pred_check
      %p123 = pneg %p122
    $region18: #{conv_merge_forward.4} parent=5 // pred_check_branch
      %125 = sbr.rel (%p123) target = $region20
    $region19: #{conv_merge_forward.4} parent=5 // pred_region
      // Predicated region
      $region21: #{conv_merge_forward.4} parent=19 // pred_check
        %p126 = pneg %p40
      $region22: #{conv_merge_forward.4} parent=19 // pred_check_branch
        %128 = sbr.rel (%p126) target = $region24
      $region23: #{conv_merge_forward.4} parent=19 // pred_region
        %s129 = smul.u32 32, %s15
        %p130 = scmp.lt.s32.totalorder %s129, 63
        %s131 = scalar_select %p130, %s129, 63
        %s132 = smul.addr %s131, 2
        %s133 = smul.addr %s132, 4
        %s134 = scalar_lea.vmem %s0, %s133
        %s135 = smul.u32 32, %s15
      $region24: #{conv_merge_forward.4} parent=19 // pred_fallthru
        _
    $region20: #{conv_merge_forward.4} parent=5 // pred_fallthru
      _
    %p136 = scmp.le.s32.totalorder 1, %s8
    %p137 = scmp.lt.s32.totalorder %s8, 3
    %p138 = pnand %p136, %p137
    %p139 = pneg %p138
    // Predicated region
    $region25: #{conv_merge_forward.4} parent=5 // pred_check
      _
    $region26: #{conv_merge_forward.4} parent=5 // pred_check_branch
      %141 = sbr.rel (%p138) target = $region28
    $region27: #{conv_merge_forward.4} parent=5 // pred_region
      %s142 = ssub.s32 %s8, 1
      %s143 = smul.u32 32, %s17
      %p144 = scmp.lt.s32.totalorder %s143, 63
      %s145 = scalar_select %p144, %s143, 63
      %s146 = smul.addr %s145, 2
      %s147 = smul.addr %s146, 4
      %s148 = scalar_lea.vmem %s0, %s147
      %p149 = pneg %p46
      %p150 = pneg %p43
      %p151 = scmp.lt.s32.totalorder %s18, 0
      %s152 = scalar_select %p151, %s18, 0
      %s153 = smul.addr %s152, 4
      %s154 = scalar_lea.vmem %s1, %s153
      %p155 = pneg %p72
      %p156 = pneg %p69
      %p157 = pneg %p100
      %p158 = pneg %p97
      %s159 = smul.u32 32, %s17
      %p160 = scmp.lt.s32.totalorder %s159, 63
      %s161 = scalar_select %p160, %s159, 63
      %p162 = scmp.lt.s32.totalorder %s18, 0
      %s163 = scalar_select %p162, %s18, 0
      %s164 = sadd.s32 %s163, %s161
      %s165 = smul.addr %s164, 8
      %s166 = scalar_lea.vmem %s2, %s165
      %s167 = smul.u32 32, %s17
      %p168 = scmp.lt.s32.totalorder %s167, 63
      %s169 = scalar_select %p168, %s167, 63
      %s170 = smul.addr %s169, 2
      %s171 = smul.addr %s170, 4
      %s172 = scalar_lea.vmem %s0, %s171
      %s173 = smul.u32 32, %s17
      %p174 = scmp.lt.s32.totalorder %s18, 0
      %s175 = scalar_select %p174, %s18, 0
      %s176 = smul.addr %s175, 4
      %s177 = scalar_lea.vmem %s1, %s176
      %s178 = smul.u32 32, %s17
      %p179 = scmp.lt.s32.totalorder %s178, 63
      %s180 = scalar_select %p179, %s178, 63
      %p181 = scmp.lt.s32.totalorder %s18, 0
      %s182 = scalar_select %p181, %s18, 0
      %s183 = sadd.s32 %s182, %s180
      %s184 = smul.addr %s183, 8
      %s185 = scalar_lea.vmem %s2, %s184
      %s186 = smul.u32 32, %s17
      %v188 = vld [vmem:[%s172] sm:$0xff]
      %v189 = vld [vmem:[%s172 + $0x8] sm:$0xff]
      %v190 = vld [vmem:[%s172 + $0x10] sm:$0xff]
      %v191 = vld [vmem:[%s172 + $0x18] sm:$0xff]
      %v192 = vld [vmem:[%s172 + $0x20] sm:$0xff]
      %v193 = vld [vmem:[%s172 + $0x28] sm:$0xff]
      %v194 = vld [vmem:[%s172 + $0x30] sm:$0xff]
      %v195 = vld [vmem:[%s172 + $0x38] sm:$0xff]
      %v196 = vld [vmem:[%s172 + $0x40] sm:$0xff]
      %v197 = vld [vmem:[%s172 + $0x48] sm:$0xff]
      %v198 = vld [vmem:[%s172 + $0x50] sm:$0xff]
      %v199 = vld [vmem:[%s172 + $0x58] sm:$0xff]
      %v200 = vld [vmem:[%s172 + $0x60] sm:$0xff]
      %v201 = vld [vmem:[%s172 + $0x68] sm:$0xff]
      %v202 = vld [vmem:[%s172 + $0x70] sm:$0xff]
      %v203 = vld [vmem:[%s172 + $0x78] sm:$0xff]
      %v204 = vld [vmem:[%s172 + $0x80] sm:$0xff]
      %v205 = vld [vmem:[%s172 + $0x88] sm:$0xff]
      %v206 = vld [vmem:[%s172 + $0x90] sm:$0xff]
      %v207 = vld [vmem:[%s172 + $0x98] sm:$0xff]
      %v208 = vld [vmem:[%s172 + $0xa0] sm:$0xff]
      %v209 = vld [vmem:[%s172 + $0xa8] sm:$0xff]
      %v210 = vld [vmem:[%s172 + $0xb0] sm:$0xff]
      %v211 = vld [vmem:[%s172 + $0xb8] sm:$0xff]
      %v212 = vld [vmem:[%s172 + $0xc0] sm:$0xff]
      %v213 = vld [vmem:[%s172 + $0xc8] sm:$0xff]
      %v214 = vld [vmem:[%s172 + $0xd0] sm:$0xff]
      %v215 = vld [vmem:[%s172 + $0xd8] sm:$0xff]
      %v216 = vld [vmem:[%s172 + $0xe0] sm:$0xff]
      %v217 = vld [vmem:[%s172 + $0xe8] sm:$0xff]
      %v218 = vld [vmem:[%s172 + $0xf0] sm:$0xff]
      %v219 = vld [vmem:[%s172 + $0xf8] sm:$0xff]
      %v220 = vld [vmem:[%s177] sm:$0xf]
      %v221 = vld [vmem:[%s177 + $0x4] sm:$0xf]
      %v222 = vld [vmem:[%s177 + $0x8] sm:$0xf]
      %v223 = vld [vmem:[%s177 + $0xc] sm:$0xf]
      %v224 = vld [vmem:[%s177 + $0x10] sm:$0xf]
      %v225 = vld [vmem:[%s177 + $0x14] sm:$0xf]
      %v226 = vld [vmem:[%s177 + $0x18] sm:$0xf]
      %v227 = vld [vmem:[%s177 + $0x1c] sm:$0xf]
      %v228 = vld [vmem:[%s177 + $0x20] sm:$0xf]
      %v229 = vld [vmem:[%s177 + $0x24] sm:$0xf]
      %v230 = vld [vmem:[%s177 + $0x28] sm:$0xf]
      %v231 = vld [vmem:[%s177 + $0x2c] sm:$0xf]
      %v232 = vld [vmem:[%s177 + $0x30] sm:$0xf]
      %v233 = vld [vmem:[%s177 + $0x34] sm:$0xf]
      %v234 = vld [vmem:[%s177 + $0x38] sm:$0xf]
      %v235 = vld [vmem:[%s177 + $0x3c] sm:$0xf]
      %v236 = vld [vmem:[%s177 + $0x40] sm:$0xf]
      %v237 = vld [vmem:[%s177 + $0x44] sm:$0xf]
      %v238 = vld [vmem:[%s177 + $0x48] sm:$0xf]
      %v239 = vld [vmem:[%s177 + $0x4c] sm:$0xf]
      %v240 = vld [vmem:[%s177 + $0x50] sm:$0xf]
      %v241 = vld [vmem:[%s177 + $0x54] sm:$0xf]
      %v242 = vld [vmem:[%s177 + $0x58] sm:$0xf]
      %v243 = vld [vmem:[%s177 + $0x5c] sm:$0xf]
      %v244 = vld [vmem:[%s177 + $0x60] sm:$0xf]
      %v245 = vld [vmem:[%s177 + $0x64] sm:$0xf]
      %v246 = vld [vmem:[%s177 + $0x68] sm:$0xf]
      %v247 = vld [vmem:[%s177 + $0x6c] sm:$0xf]
      %v248 = vld [vmem:[%s177 + $0x70] sm:$0xf]
      %v249 = vld [vmem:[%s177 + $0x74] sm:$0xf]
      %v250 = vld [vmem:[%s177 + $0x78] sm:$0xf]
      %v251 = vld [vmem:[%s177 + $0x7c] sm:$0xf]
      %v284 = vunpack.c.l.b16 %v188
      %v285 = vunpack.c.h.b16 %v188
      %v286 = vunpack.c.l.b16 %v189
      %v287 = vunpack.c.h.b16 %v189
      %v288 = vunpack.c.l.b16 %v190
      %v289 = vunpack.c.h.b16 %v190
      %v290 = vunpack.c.l.b16 %v191
      %v291 = vunpack.c.h.b16 %v191
      %v292 = vunpack.c.l.b16 %v192
      %v293 = vunpack.c.h.b16 %v192
      %v294 = vunpack.c.l.b16 %v193
      %v295 = vunpack.c.h.b16 %v193
      %v296 = vunpack.c.l.b16 %v194
      %v297 = vunpack.c.h.b16 %v194
      %v298 = vunpack.c.l.b16 %v195
      %v299 = vunpack.c.h.b16 %v195
      %v300 = vunpack.c.l.b16 %v196
      %v301 = vunpack.c.h.b16 %v196
      %v302 = vunpack.c.l.b16 %v197
      %v303 = vunpack.c.h.b16 %v197
      %v304 = vunpack.c.l.b16 %v198
      %v305 = vunpack.c.h.b16 %v198
      %v306 = vunpack.c.l.b16 %v199
      %v307 = vunpack.c.h.b16 %v199
      %v308 = vunpack.c.l.b16 %v200
      %v309 = vunpack.c.h.b16 %v200
      %v310 = vunpack.c.l.b16 %v201
      %v311 = vunpack.c.h.b16 %v201
      %v312 = vunpack.c.l.b16 %v202
      %v313 = vunpack.c.h.b16 %v202
      %v314 = vunpack.c.l.b16 %v203
      %v315 = vunpack.c.h.b16 %v203
      %v316 = vunpack.c.l.b16 %v204
      %v317 = vunpack.c.h.b16 %v204
      %v318 = vunpack.c.l.b16 %v205
      %v319 = vunpack.c.h.b16 %v205
      %v320 = vunpack.c.l.b16 %v206
      %v321 = vunpack.c.h.b16 %v206
      %v322 = vunpack.c.l.b16 %v207
      %v323 = vunpack.c.h.b16 %v207
      %v324 = vunpack.c.l.b16 %v208
      %v325 = vunpack.c.h.b16 %v208
      %v326 = vunpack.c.l.b16 %v209
      %v327 = vunpack.c.h.b16 %v209
      %v328 = vunpack.c.l.b16 %v210
      %v329 = vunpack.c.h.b16 %v210
      %v330 = vunpack.c.l.b16 %v211
      %v331 = vunpack.c.h.b16 %v211
      %v332 = vunpack.c.l.b16 %v212
      %v333 = vunpack.c.h.b16 %v212
      %v334 = vunpack.c.l.b16 %v213
      %v335 = vunpack.c.h.b16 %v213
      %v336 = vunpack.c.l.b16 %v214
      %v337 = vunpack.c.h.b16 %v214
      %v338 = vunpack.c.l.b16 %v215
      %v339 = vunpack.c.h.b16 %v215
      %v340 = vunpack.c.l.b16 %v216
      %v341 = vunpack.c.h.b16 %v216
      %v342 = vunpack.c.l.b16 %v217
      %v343 = vunpack.c.h.b16 %v217
      %v344 = vunpack.c.l.b16 %v218
      %v345 = vunpack.c.h.b16 %v218
      %v346 = vunpack.c.l.b16 %v219
      %v347 = vunpack.c.h.b16 %v219
      %v348 = vpack.c.b16 %v286, %v284
      %v349 = vpack.c.b16 %v287, %v285
      %v350 = vpack.c.b16 %v290, %v288
      %v351 = vpack.c.b16 %v291, %v289
      %v352 = vpack.c.b16 %v294, %v292
      %v353 = vpack.c.b16 %v295, %v293
      %v354 = vpack.c.b16 %v298, %v296
      %v355 = vpack.c.b16 %v299, %v297
      %v356 = vpack.c.b16 %v302, %v300
      %v357 = vpack.c.b16 %v303, %v301
      %v358 = vpack.c.b16 %v306, %v304
      %v359 = vpack.c.b16 %v307, %v305
      %v360 = vpack.c.b16 %v310, %v308
      %v361 = vpack.c.b16 %v311, %v309
      %v362 = vpack.c.b16 %v314, %v312
      %v363 = vpack.c.b16 %v315, %v313
      %v364 = vpack.c.b16 %v318, %v316
      %v365 = vpack.c.b16 %v319, %v317
      %v366 = vpack.c.b16 %v322, %v320
      %v367 = vpack.c.b16 %v323, %v321
      %v368 = vpack.c.b16 %v326, %v324
      %v369 = vpack.c.b16 %v327, %v325
      %v370 = vpack.c.b16 %v330, %v328
      %v371 = vpack.c.b16 %v331, %v329
      %v372 = vpack.c.b16 %v334, %v332
      %v373 = vpack.c.b16 %v335, %v333
      %v374 = vpack.c.b16 %v338, %v336
      %v375 = vpack.c.b16 %v339, %v337
      %v376 = vpack.c.b16 %v342, %v340
      %v377 = vpack.c.b16 %v343, %v341
      %v378 = vpack.c.b16 %v346, %v344
      %v379 = vpack.c.b16 %v347, %v345
      %v444 = vunpack.c.l.b16 %v220
      %v445 = vunpack.c.l.b16 %v221
      %v446 = vunpack.c.l.b16 %v222
      %v447 = vunpack.c.l.b16 %v223
      %v448 = vunpack.c.l.b16 %v224
      %v449 = vunpack.c.l.b16 %v225
      %v450 = vunpack.c.l.b16 %v226
      %v451 = vunpack.c.l.b16 %v227
      %v452 = vunpack.c.l.b16 %v228
      %v453 = vunpack.c.l.b16 %v229
      %v454 = vunpack.c.l.b16 %v230
      %v455 = vunpack.c.l.b16 %v231
      %v456 = vunpack.c.l.b16 %v232
      %v457 = vunpack.c.l.b16 %v233
      %v458 = vunpack.c.l.b16 %v234
      %v459 = vunpack.c.l.b16 %v235
      %v460 = vunpack.c.l.b16 %v236
      %v461 = vunpack.c.l.b16 %v237
      %v462 = vunpack.c.l.b16 %v238
      %v463 = vunpack.c.l.b16 %v239
      %v464 = vunpack.c.l.b16 %v240
      %v465 = vunpack.c.l.b16 %v241
      %v466 = vunpack.c.l.b16 %v242
      %v467 = vunpack.c.l.b16 %v243
      %v468 = vunpack.c.l.b16 %v244
      %v469 = vunpack.c.l.b16 %v245
      %v470 = vunpack.c.l.b16 %v246
      %v471 = vunpack.c.l.b16 %v247
      %v472 = vunpack.c.l.b16 %v248
      %v473 = vunpack.c.l.b16 %v249
      %v474 = vunpack.c.l.b16 %v250
      %v475 = vunpack.c.l.b16 %v251
      %v476 = vpack.c.b16 %v445, %v444
      %v477 = vpack.c.b16 %v447, %v446
      %v478 = vpack.c.b16 %v449, %v448
      %v479 = vpack.c.b16 %v451, %v450
      %v480 = vpack.c.b16 %v453, %v452
      %v481 = vpack.c.b16 %v455, %v454
      %v482 = vpack.c.b16 %v457, %v456
      %v483 = vpack.c.b16 %v459, %v458
      %v484 = vpack.c.b16 %v461, %v460
      %v485 = vpack.c.b16 %v463, %v462
      %v486 = vpack.c.b16 %v465, %v464
      %v487 = vpack.c.b16 %v467, %v466
      %v488 = vpack.c.b16 %v469, %v468
      %v489 = vpack.c.b16 %v471, %v470
      %v490 = vpack.c.b16 %v473, %v472
      %v491 = vpack.c.b16 %v475, %v474
      %508 = vmatprep.subr.bf16.mxu0 0
      %509 = vmatpush1.bf16.msra.mxu0 %v476
      %510 = vmatprep.subr.bf16.mxu0 0
      %511 = vmatpush1.bf16.msra.mxu0 %v477
      %512 = vmatprep.subr.bf16.mxu0 0
      %513 = vmatpush1.bf16.msra.mxu0 %v478
      %514 = vmatprep.subr.bf16.mxu0 0
      %515 = vmatpush1.bf16.msra.mxu0 %v479
      %516 = vmatprep.subr.bf16.mxu0 0
      %517 = vmatpush1.bf16.msra.mxu0 %v480
      %518 = vmatprep.subr.bf16.mxu0 0
      %519 = vmatpush1.bf16.msra.mxu0 %v481
      %520 = vmatprep.subr.bf16.mxu0 0
      %521 = vmatpush1.bf16.msra.mxu0 %v482
      %522 = vmatprep.subr.bf16.mxu0 0
      %523 = vmatpush1.bf16.msra.mxu0 %v483
      %524 = vmatprep.subr.bf16.mxu0 0
      %525 = vmatpush1.bf16.msra.mxu0 %v484
      %526 = vmatprep.subr.bf16.mxu0 0
      %527 = vmatpush1.bf16.msra.mxu0 %v485
      %528 = vmatprep.subr.bf16.mxu0 0
      %529 = vmatpush1.bf16.msra.mxu0 %v486
      %530 = vmatprep.subr.bf16.mxu0 0
      %531 = vmatpush1.bf16.msra.mxu0 %v487
      %532 = vmatprep.subr.bf16.mxu0 0
      %533 = vmatpush1.bf16.msra.mxu0 %v488
      %534 = vmatprep.subr.bf16.mxu0 0
      %535 = vmatpush1.bf16.msra.mxu0 %v489
      %536 = vmatprep.subr.bf16.mxu0 0
      %537 = vmatpush1.bf16.msra.mxu0 %v490
      %538 = vmatprep.subr.bf16.mxu0 0
      %539 = vmatpush1.bf16.msra.mxu0 %v491
      %540 = vmatprep.mubr.bf16.mxu0 %v349
      %541 = vmatmul.mubr.bf16.gmra.mrb[0].mxu0 %v348
      %v542 = vpop.f32.mrb[0].mxu0
      %v543 = vadd.f32 0.0, %v542
      %v544 = vpop.f32.mrb[0].mxu0
      %v545 = vpop.f32.mrb[0].mxu0
      %v546 = vadd.f32 0.0, %v545
      %v547 = vpop.f32.mrb[0].mxu0
      %548 = vmatprep.mubr.bf16.mxu0 %v351
      %549 = vmatmul.mubr.bf16.gmra.mrb[0].mxu0 %v350
      %v550 = vpop.f32.mrb[0].mxu0
      %v551 = vadd.f32 0.0, %v550
      %v552 = vpop.f32.mrb[0].mxu0
      %v553 = vpop.f32.mrb[0].mxu0
      %v554 = vadd.f32 0.0, %v553
      %v555 = vpop.f32.mrb[0].mxu0
      %556 = vmatprep.mubr.bf16.mxu0 %v353
      %557 = vmatmul.mubr.bf16.gmra.mrb[0].mxu0 %v352
      %v558 = vpop.f32.mrb[0].mxu0
      %v559 = vadd.f32 0.0, %v558
      %v560 = vpop.f32.mrb[0].mxu0
      %v561 = vpop.f32.mrb[0].mxu0
      %v562 = vadd.f32 0.0, %v561
      %v563 = vpop.f32.mrb[0].mxu0
      %564 = vmatprep.mubr.bf16.mxu0 %v355
      %565 = vmatmul.mubr.bf16.gmra.mrb[0].mxu0 %v354
      %v566 = vpop.f32.mrb[0].mxu0
      %v567 = vadd.f32 0.0, %v566
      %v568 = vpop.f32.mrb[0].mxu0
      %v569 = vpop.f32.mrb[0].mxu0
      %v570 = vadd.f32 0.0, %v569
      %v571 = vpop.f32.mrb[0].mxu0
      %572 = vmatprep.mubr.bf16.mxu0 %v357
      %573 = vmatmul.mubr.bf16.gmra.mrb[0].mxu0 %v356
      %v574 = vpop.f32.mrb[0].mxu0
      %v575 = vadd.f32 0.0, %v574
      %v576 = vpop.f32.mrb[0].mxu0
      %v577 = vpop.f32.mrb[0].mxu0
      %v578 = vadd.f32 0.0, %v577
      %v579 = vpop.f32.mrb[0].mxu0
      %580 = vmatprep.mubr.bf16.mxu0 %v359
      %581 = vmatmul.mubr.bf16.gmra.mrb[0].mxu0 %v358
      %v582 = vpop.f32.mrb[0].mxu0
      %v583 = vadd.f32 0.0, %v582
      %v584 = vpop.f32.mrb[0].mxu0
      %v585 = vpop.f32.mrb[0].mxu0
      %v586 = vadd.f32 0.0, %v585
      %v587 = vpop.f32.mrb[0].mxu0
      %588 = vmatprep.mubr.bf16.mxu0 %v361
      %589 = vmatmul.mubr.bf16.gmra.mrb[0].mxu0 %v360
      %v590 = vpop.f32.mrb[0].mxu0
      %v591 = vadd.f32 0.0, %v590
      %v592 = vpop.f32.mrb[0].mxu0
      %v593 = vpop.f32.mrb[0].mxu0
      %v594 = vadd.f32 0.0, %v593
      %v595 = vpop.f32.mrb[0].mxu0
      %596 = vmatprep.mubr.bf16.mxu0 %v363
      %597 = vmatmul.mubr.bf16.gmra.mrb[0].mxu0 %v362
      %v598 = vpop.f32.mrb[0].mxu0
      %v599 = vadd.f32 0.0, %v598
      %v600 = vpop.f32.mrb[0].mxu0
      %v601 = vpop.f32.mrb[0].mxu0
      %v602 = vadd.f32 0.0, %v601
      %v603 = vpop.f32.mrb[0].mxu0
      %604 = vmatprep.mubr.bf16.mxu0 %v365
      %605 = vmatmul.mubr.bf16.gmra.mrb[0].mxu0 %v364
      %v606 = vpop.f32.mrb[0].mxu0
      %v607 = vadd.f32 0.0, %v606
      %v608 = vpop.f32.mrb[0].mxu0
      %v609 = vpop.f32.mrb[0].mxu0
      %v610 = vadd.f32 0.0, %v609
      %v611 = vpop.f32.mrb[0].mxu0
      %612 = vmatprep.mubr.bf16.mxu0 %v367
      %613 = vmatmul.mubr.bf16.gmra.mrb[0].mxu0 %v366
      %v614 = vpop.f32.mrb[0].mxu0
      %v615 = vadd.f32 0.0, %v614
      %v616 = vpop.f32.mrb[0].mxu0
      %v617 = vpop.f32.mrb[0].mxu0
      %v618 = vadd.f32 0.0, %v617
      %v619 = vpop.f32.mrb[0].mxu0
      %620 = vmatprep.mubr.bf16.mxu0 %v369
      %621 = vmatmul.mubr.bf16.gmra.mrb[0].mxu0 %v368
      %v622 = vpop.f32.mrb[0].mxu0
      %v623 = vadd.f32 0.0, %v622
      %v624 = vpop.f32.mrb[0].mxu0
      %v625 = vpop.f32.mrb[0].mxu0
      %v626 = vadd.f32 0.0, %v625
      %v627 = vpop.f32.mrb[0].mxu0
      %628 = vmatprep.mubr.bf16.mxu0 %v371
      %629 = vmatmul.mubr.bf16.gmra.mrb[0].mxu0 %v370
      %v630 = vpop.f32.mrb[0].mxu0
      %v631 = vadd.f32 0.0, %v630
      %v632 = vpop.f32.mrb[0].mxu0
      %v633 = vpop.f32.mrb[0].mxu0
      %v634 = vadd.f32 0.0, %v633
      %v635 = vpop.f32.mrb[0].mxu0
      %636 = vmatprep.mubr.bf16.mxu0 %v373
      %637 = vmatmul.mubr.bf16.gmra.mrb[0].mxu0 %v372
      %v638 = vpop.f32.mrb[0].mxu0
      %v639 = vadd.f32 0.0, %v638
      %v640 = vpop.f32.mrb[0].mxu0
      %v641 = vpop.f32.mrb[0].mxu0
      %v642 = vadd.f32 0.0, %v641
      %v643 = vpop.f32.mrb[0].mxu0
      %644 = vmatprep.mubr.bf16.mxu0 %v375
      %645 = vmatmul.mubr.bf16.gmra.mrb[0].mxu0 %v374
      %v646 = vpop.f32.mrb[0].mxu0
      %v647 = vadd.f32 0.0, %v646
      %v648 = vpop.f32.mrb[0].mxu0
      %v649 = vpop.f32.mrb[0].mxu0
      %v650 = vadd.f32 0.0, %v649
      %v651 = vpop.f32.mrb[0].mxu0
      %652 = vmatprep.mubr.bf16.mxu0 %v377
      %653 = vmatmul.mubr.bf16.gmra.mrb[0].mxu0 %v376
      %v654 = vpop.f32.mrb[0].mxu0
      %v655 = vadd.f32 0.0, %v654
      %v656 = vpop.f32.mrb[0].mxu0
      %v657 = vpop.f32.mrb[0].mxu0
      %v658 = vadd.f32 0.0, %v657
      %v659 = vpop.f32.mrb[0].mxu0
      %660 = vmatprep.mubr.bf16.mxu0 %v379
      %661 = vmatmul.mubr.bf16.gmra.mrb[0].mxu0 %v378
      %v662 = vpop.f32.mrb[0].mxu0
      %v663 = vadd.f32 0.0, %v662
      %v664 = vpop.f32.mrb[0].mxu0
      %v665 = vpop.f32.mrb[0].mxu0
      %v666 = vadd.f32 0.0, %v665
      %v667 = vpop.f32.mrb[0].mxu0
      %668 = vdwg.mxu0
      %v669 = vmax.f32 %v543, 0.0
      %v670 = vmax.f32 %v546, 0.0
      %v671 = vmax.f32 %v551, 0.0
      %v672 = vmax.f32 %v554, 0.0
      %v673 = vmax.f32 %v559, 0.0
      %v674 = vmax.f32 %v562, 0.0
      %v675 = vmax.f32 %v567, 0.0
      %v676 = vmax.f32 %v570, 0.0
      %v677 = vmax.f32 %v575, 0.0
      %v678 = vmax.f32 %v578, 0.0
      %v679 = vmax.f32 %v583, 0.0
      %v680 = vmax.f32 %v586, 0.0
      %v681 = vmax.f32 %v591, 0.0
      %v682 = vmax.f32 %v594, 0.0
      %v683 = vmax.f32 %v599, 0.0
      %v684 = vmax.f32 %v602, 0.0
      %v685 = vmax.f32 %v607, 0.0
      %v686 = vmax.f32 %v610, 0.0
      %v687 = vmax.f32 %v615, 0.0
      %v688 = vmax.f32 %v618, 0.0
      %v689 = vmax.f32 %v623, 0.0
      %v690 = vmax.f32 %v626, 0.0
      %v691 = vmax.f32 %v631, 0.0
      %v692 = vmax.f32 %v634, 0.0
      %v693 = vmax.f32 %v639, 0.0
      %v694 = vmax.f32 %v642, 0.0
      %v695 = vmax.f32 %v647, 0.0
      %v696 = vmax.f32 %v650, 0.0
      %v697 = vmax.f32 %v655, 0.0
      %v698 = vmax.f32 %v658, 0.0
      %v699 = vmax.f32 %v663, 0.0
      %v700 = vmax.f32 %v666, 0.0
      %vm701 = vcmask 523264
      %702 = vst.msk [vmem:[%s185] sm:$0xff] %vm701, %v669
      %703 = vst.msk [vmem:[%s185 + $0x8] sm:$0xff] %vm701, %v670
      %704 = vst.msk [vmem:[%s185 + $0x10] sm:$0xff] %vm701, %v671
      %705 = vst.msk [vmem:[%s185 + $0x18] sm:$0xff] %vm701, %v672
      %706 = vst.msk [vmem:[%s185 + $0x20] sm:$0xff] %vm701, %v673
      %707 = vst.msk [vmem:[%s185 + $0x28] sm:$0xff] %vm701, %v674
      %708 = vst.msk [vmem:[%s185 + $0x30] sm:$0xff] %vm701, %v675
      %709 = vst.msk [vmem:[%s185 + $0x38] sm:$0xff] %vm701, %v676
      %710 = vst.msk [vmem:[%s185 + $0x40] sm:$0xff] %vm701, %v677
      %711 = vst.msk [vmem:[%s185 + $0x48] sm:$0xff] %vm701, %v678
      %712 = vst.msk [vmem:[%s185 + $0x50] sm:$0xff] %vm701, %v679
      %713 = vst.msk [vmem:[%s185 + $0x58] sm:$0xff] %vm701, %v680
      %714 = vst.msk [vmem:[%s185 + $0x60] sm:$0xff] %vm701, %v681
      %715 = vst.msk [vmem:[%s185 + $0x68] sm:$0xff] %vm701, %v682
      %716 = vst.msk [vmem:[%s185 + $0x70] sm:$0xff] %vm701, %v683
      %717 = vst.msk [vmem:[%s185 + $0x78] sm:$0xff] %vm701, %v684
      %718 = vst.msk [vmem:[%s185 + $0x80] sm:$0xff] %vm701, %v685
      %719 = vst.msk [vmem:[%s185 + $0x88] sm:$0xff] %vm701, %v686
      %720 = vst.msk [vmem:[%s185 + $0x90] sm:$0xff] %vm701, %v687
      %721 = vst.msk [vmem:[%s185 + $0x98] sm:$0xff] %vm701, %v688
      %722 = vst.msk [vmem:[%s185 + $0xa0] sm:$0xff] %vm701, %v689
      %723 = vst.msk [vmem:[%s185 + $0xa8] sm:$0xff] %vm701, %v690
      %724 = vst.msk [vmem:[%s185 + $0xb0] sm:$0xff] %vm701, %v691
      %725 = vst.msk [vmem:[%s185 + $0xb8] sm:$0xff] %vm701, %v692
      %726 = vst.msk [vmem:[%s185 + $0xc0] sm:$0xff] %vm701, %v693
      %727 = vst.msk [vmem:[%s185 + $0xc8] sm:$0xff] %vm701, %v694
      %728 = vst.msk [vmem:[%s185 + $0xd0] sm:$0xff] %vm701, %v695
      %729 = vst.msk [vmem:[%s185 + $0xd8] sm:$0xff] %vm701, %v696
      %730 = vst.msk [vmem:[%s185 + $0xe0] sm:$0xff] %vm701, %v697
      %731 = vst.msk [vmem:[%s185 + $0xe8] sm:$0xff] %vm701, %v698
      %732 = vst.msk [vmem:[%s185 + $0xf0] sm:$0xff] %vm701, %v699
      %733 = vst.msk [vmem:[%s185 + $0xf8] sm:$0xff] %vm701, %v700
      %s734 = smul.u32 32, %s17
      %p735 = scmp.lt.s32.totalorder %s734, 63
      %s736 = scalar_select %p735, %s734, 63
      %p737 = scmp.lt.s32.totalorder %s18, 0
      %s738 = scalar_select %p737, %s18, 0
      %s739 = sadd.s32 %s738, %s736
      %s740 = smul.addr %s739, 8
      %s741 = scalar_lea.vmem %s2, %s740
      // Predicated region
      $region29: #{conv_merge_forward.4} parent=27 // pred_check
        %p742 = pneg %p97
      $region30: #{conv_merge_forward.4} parent=27 // pred_check_branch
        %744 = sbr.rel (%p742) target = $region32
      $region31: #{conv_merge_forward.4} parent=27 // pred_region
        %s745 = smul.u32 32, %s17
      $region32: #{conv_merge_forward.4} parent=27 // pred_fallthru
        _
    $region28: #{conv_merge_forward.4} parent=5 // pred_fallthru
      _
    %p746 = scmp.le.s32.totalorder 2, %s8
    // Predicated region
    $region33: #{conv_merge_forward.4} parent=5 // pred_check
      %p747 = pneg %p746
    $region34: #{conv_merge_forward.4} parent=5 // pred_check_branch
      %749 = sbr.rel (%p747) target = $region36
    $region35: #{conv_merge_forward.4} parent=5 // pred_region
      %s750 = ssub.s32 %s8, 2
      // Predicated region
      $region37: #{conv_merge_forward.4} parent=35 // pred_check
        %p751 = pneg %p103
      $region38: #{conv_merge_forward.4} parent=35 // pred_check_branch
        %753 = sbr.rel (%p751) target = $region40
      $region39: #{conv_merge_forward.4} parent=35 // pred_region
        %s754 = smul.u32 32, %s19
        %p755 = scmp.lt.s32.totalorder %s754, 63
        %s756 = scalar_select %p755, %s754, 63
        %p757 = scmp.lt.s32.totalorder %s20, 0
        %s758 = scalar_select %p757, %s20, 0
        %s759 = sadd.s32 %s758, %s756
        %s760 = smul.addr %s759, 8
        %s761 = scalar_lea.vmem %s2, %s760
      $region40: #{conv_merge_forward.4} parent=35 // pred_fallthru
        _
    $region36: #{conv_merge_forward.4} parent=5 // pred_fallthru
      _
  $region6: #{conv_merge_forward.4} parent=0 // loop_footer
    %s12 = sadd.s32 1, %s8
  $region7: #{conv_merge_forward.4} parent=0 // loop_footer_branch
    %7 = sbr.rel target = $region3
  $region8: #{conv_merge_forward.4} parent=0 // loop_exit
    _

// kernel: conv_merge_forward.3
$region0: #{conv_merge_forward.3}
  #allocation0 [shape = 'u32[]', space=smem, size = 0x4, offset = 0x4, fixed_abs, tag = 'smem constant byte address 0x4 - core index']
  #allocation1 [shape = 'u32[144,128]{1,0:T(1,128)}', space=vmem, size = 0x12000, scoped, tag = 'internal scratch']
  %s0 = inlined_call_operand.vmem [shape: bf16[2048,64], index: 0, kind: input, shape index: {}]
  %s1 = inlined_call_operand.vmem [shape: bf16[64,16], index: 1, kind: input, shape index: {}]
  %s2 = inlined_call_operand.vmem [shape: bf16[2048,16], index: 2, kind: output, shape index: {}]
  %s3 = sld [smem:[#allocation0]]
  $region41: #{conv_merge_forward.3} parent=0
    _
  %s5 = ssub.s32 1, %s3
  %s6 = scalar_select 0, %s5, %s3
  loop: start=0, step=1, limit=4
  $region2: #{conv_merge_forward.3} parent=0 // loop_pre_header
    _
  $region3: #{conv_merge_forward.3} parent=0 // loop_header
    %s8 = sphi 0, %s12
    %p9 = scmp.ge.s32.totalorder %s8, 4
    %s15 = sphi 0, %s27
    %s16 = sphi 0, %s23
    %s17 = sphi 0, %s15
    %s18 = sphi 0, %s16
    %s19 = sphi 0, %s17
    %s20 = sphi 0, %s18
    %s30 = sphi 0, %s32
    %s33 = sphi 0, %s30
    %s34 = sphi 0, %s33
    %s50 = sphi 0, %s34
    %s56 = sphi 0, %s58
    %s59 = sphi 0, %s56
    %s60 = sphi 0, %s59
    %s76 = sphi 0, %s60
    %s84 = sphi 0, %s86
    %s87 = sphi 0, %s84
    %s88 = sphi 0, %s87
    %s104 = sphi 0, %s88
  $region4: #{conv_merge_forward.3} parent=0 // loop_header_branch
    %11 = sbr.rel (%p9) target = $region8
  $region5: #{conv_merge_forward.3} parent=0 // loop_body
    %s13 = ssub.s32 %s8, 1
    %s14 = ssub.s32 %s8, 2
    %s21 = sadd.s32 1, %s16
    %p22 = scmp.ge.s32.totalorder %s21, 1
    %s23 = scalar_select %p22, 0, %s21
    %s24 = sadd.s32 1, %s15
    %s25 = scalar_select %p22, %s24, %s15
    %p26 = scmp.ge.s32.totalorder %s25, 2
    %s27 = scalar_select %p26, 0, %s25
    %s28 = ssub.s32 %s15, %s27
    %p29 = scmp.eq.s32.totalorder %s28, 0
    %s31 = sadd.s32 %s30, 1
    %s32 = scalar_select %p29, %s30, %s31
    %p35 = pneg %p29
    %p36 = scmp.eq.s32.totalorder %s8, 1
    %p37 = por %p35, %p36
    %p38 = scmp.ne.s32.totalorder %s30, %s33
    %p39 = scmp.eq.s32.totalorder %s8, 0
    %p40 = por %p38, %p39
    %p41 = scmp.ne.s32.totalorder %s30, %s33
    %p42 = scmp.eq.s32.totalorder %s13, 1
    %p43 = por %p41, %p42
    %p44 = scmp.ne.s32.totalorder %s33, %s34
    %p45 = scmp.eq.s32.totalorder %s13, 0
    %p46 = por %p44, %p45
    %p47 = scmp.ne.s32.totalorder %s33, %s34
    %p48 = scmp.eq.s32.totalorder %s14, 1
    %p49 = por %p47, %p48
    %p51 = scmp.ne.s32.totalorder %s34, %s50
    %p52 = scmp.eq.s32.totalorder %s14, 0
    %p53 = por %p51, %p52
    %s54 = ssub.s32 %s16, %s23
    %p55 = scmp.eq.s32.totalorder %s54, 0
    %s57 = sadd.s32 %s56, 1
    %s58 = scalar_select %p55, %s56, %s57
    %p61 = pneg %p55
    %p62 = scmp.eq.s32.totalorder %s8, 1
    %p63 = por %p61, %p62
    %p64 = scmp.ne.s32.totalorder %s56, %s59
    %p65 = scmp.eq.s32.totalorder %s8, 0
    %p66 = por %p64, %p65
    %p67 = scmp.ne.s32.totalorder %s56, %s59
    %p68 = scmp.eq.s32.totalorder %s13, 1
    %p69 = por %p67, %p68
    %p70 = scmp.ne.s32.totalorder %s59, %s60
    %p71 = scmp.eq.s32.totalorder %s13, 0
    %p72 = por %p70, %p71
    %p73 = scmp.ne.s32.totalorder %s59, %s60
    %p74 = scmp.eq.s32.totalorder %s14, 1
    %p75 = por %p73, %p74
    %p77 = scmp.ne.s32.totalorder %s60, %s76
    %p78 = scmp.eq.s32.totalorder %s14, 0
    %p79 = por %p77, %p78
    %s80 = ssub.s32 %s15, %s27
    %s81 = ssub.s32 %s16, %s23
    %s82 = sor.u32 %s80, %s81
    %p83 = scmp.eq.s32.totalorder %s82, 0
    %s85 = sadd.s32 %s84, 1
    %s86 = scalar_select %p83, %s84, %s85
    %p89 = pneg %p83
    %p90 = scmp.eq.s32.totalorder %s8, 1
    %p91 = por %p89, %p90
    %p92 = scmp.ne.s32.totalorder %s84, %s87
    %p93 = scmp.eq.s32.totalorder %s8, 0
    %p94 = por %p92, %p93
    %p95 = scmp.ne.s32.totalorder %s84, %s87
    %p96 = scmp.eq.s32.totalorder %s13, 1
    %p97 = por %p95, %p96
    %p98 = scmp.ne.s32.totalorder %s87, %s88
    %p99 = scmp.eq.s32.totalorder %s13, 0
    %p100 = por %p98, %p99
    %p101 = scmp.ne.s32.totalorder %s87, %s88
    %p102 = scmp.eq.s32.totalorder %s14, 1
    %p103 = por %p101, %p102
    %p105 = scmp.ne.s32.totalorder %s88, %s104
    %p106 = scmp.eq.s32.totalorder %s14, 0
    %p107 = por %p105, %p106
    %p108 = scmp.le.s32.totalorder 1, %s8
    %p109 = scmp.lt.s32.totalorder %s8, 3
    %p110 = pnand %p108, %p109
    %p111 = pneg %p110
    // Predicated region
    $region9: #{conv_merge_forward.3} parent=5 // pred_check
      _
    $region10: #{conv_merge_forward.3} parent=5 // pred_check_branch
      %113 = sbr.rel (%p110) target = $region12
    $region11: #{conv_merge_forward.3} parent=5 // pred_region
      %s114 = ssub.s32 %s8, 1
      // Predicated region
      $region13: #{conv_merge_forward.3} parent=11 // pred_check
        %p115 = pneg %p72
      $region14: #{conv_merge_forward.3} parent=11 // pred_check_branch
        %117 = sbr.rel (%p115) target = $region16
      $region15: #{conv_merge_forward.3} parent=11 // pred_region
        %p118 = scmp.lt.s32.totalorder %s18, 0
        %s119 = scalar_select %p118, %s18, 0
        %s120 = smul.addr %s119, 4
        %s121 = scalar_lea.vmem %s1, %s120
      $region16: #{conv_merge_forward.3} parent=11 // pred_fallthru
        _
    $region12: #{conv_merge_forward.3} parent=5 // pred_fallthru
      _
    %p122 = scmp.lt.s32.totalorder %s8, 2
    // Predicated region
    $region17: #{conv_merge_forward.3} parent=5 // pred_check
      %p123 = pneg %p122
    $region18: #{conv_merge_forward.3} parent=5 // pred_check_branch
      %125 = sbr.rel (%p123) target = $region20
    $region19: #{conv_merge_forward.3} parent=5 // pred_region
      // Predicated region
      $region21: #{conv_merge_forward.3} parent=19 // pred_check
        %p126 = pneg %p40
      $region22: #{conv_merge_forward.3} parent=19 // pred_check_branch
        %128 = sbr.rel (%p126) target = $region24
      $region23: #{conv_merge_forward.3} parent=19 // pred_region
        %s129 = smul.u32 128, %s15
        %p130 = scmp.lt.s32.totalorder %s129, 255
        %s131 = scalar_select %p130, %s129, 255
        %s132 = smul.addr %s131, 4
        %s133 = scalar_lea.vmem %s0, %s132
        %s134 = smul.u32 128, %s15
      $region24: #{conv_merge_forward.3} parent=19 // pred_fallthru
        _
    $region20: #{conv_merge_forward.3} parent=5 // pred_fallthru
      _
    %p135 = scmp.le.s32.totalorder 1, %s8
    %p136 = scmp.lt.s32.totalorder %s8, 3
    %p137 = pnand %p135, %p136
    %p138 = pneg %p137
    // Predicated region
    $region25: #{conv_merge_forward.3} parent=5 // pred_check
      _
    $region26: #{conv_merge_forward.3} parent=5 // pred_check_branch
      %140 = sbr.rel (%p137) target = $region28
    $region27: #{conv_merge_forward.3} parent=5 // pred_region
      %s141 = ssub.s32 %s8, 1
      %s142 = smul.u32 128, %s17
      %p143 = scmp.lt.s32.totalorder %s142, 255
      %s144 = scalar_select %p143, %s142, 255
      %s145 = smul.addr %s144, 4
      %s146 = scalar_lea.vmem %s0, %s145
      %p147 = pneg %p46
      %p148 = pneg %p43
      %p149 = scmp.lt.s32.totalorder %s18, 0
      %s150 = scalar_select %p149, %s18, 0
      %s151 = smul.addr %s150, 4
      %s152 = scalar_lea.vmem %s1, %s151
      %p153 = pneg %p72
      %p154 = pneg %p69
      %p155 = pneg %p100
      %p156 = pneg %p97
      %s157 = smul.u32 128, %s17
      %p158 = scmp.lt.s32.totalorder %s157, 255
      %s159 = scalar_select %p158, %s157, 255
      %p160 = scmp.lt.s32.totalorder %s18, 0
      %s161 = scalar_select %p160, %s18, 0
      %s162 = sadd.s32 %s161, %s159
      %s163 = smul.addr %s162, 4
      %s164 = scalar_lea.vmem %s2, %s163
      %s165 = smul.u32 128, %s17
      %p166 = scmp.lt.s32.totalorder %s165, 255
      %s167 = scalar_select %p166, %s165, 255
      %s168 = smul.addr %s167, 4
      %s169 = scalar_lea.vmem %s0, %s168
      %s170 = smul.u32 128, %s17
      %p171 = scmp.lt.s32.totalorder %s18, 0
      %s172 = scalar_select %p171, %s18, 0
      %s173 = smul.addr %s172, 4
      %s174 = scalar_lea.vmem %s1, %s173
      %s175 = smul.u32 128, %s17
      %p176 = scmp.lt.s32.totalorder %s175, 255
      %s177 = scalar_select %p176, %s175, 255
      %p178 = scmp.lt.s32.totalorder %s18, 0
      %s179 = scalar_select %p178, %s18, 0
      %s180 = sadd.s32 %s179, %s177
      %s181 = smul.addr %s180, 4
      %s182 = scalar_lea.vmem %s2, %s181
      %s183 = smul.u32 128, %s17
      %v185 = vld [vmem:[%s169] sm:$0xf]
      %v186 = vld [vmem:[%s169 + $0x4] sm:$0xf]
      %v187 = vld [vmem:[%s169 + $0x8] sm:$0xf]
      %v188 = vld [vmem:[%s169 + $0xc] sm:$0xf]
      %v189 = vld [vmem:[%s169 + $0x10] sm:$0xf]
      %v190 = vld [vmem:[%s169 + $0x14] sm:$0xf]
      %v191 = vld [vmem:[%s169 + $0x18] sm:$0xf]
      %v192 = vld [vmem:[%s169 + $0x1c] sm:$0xf]
      %v193 = vld [vmem:[%s169 + $0x20] sm:$0xf]
      %v194 = vld [vmem:[%s169 + $0x24] sm:$0xf]
      %v195 = vld [vmem:[%s169 + $0x28] sm:$0xf]
      %v196 = vld [vmem:[%s169 + $0x2c] sm:$0xf]
      %v197 = vld [vmem:[%s169 + $0x30] sm:$0xf]
      %v198 = vld [vmem:[%s169 + $0x34] sm:$0xf]
      %v199 = vld [vmem:[%s169 + $0x38] sm:$0xf]
      %v200 = vld [vmem:[%s169 + $0x3c] sm:$0xf]
      %v201 = vld [vmem:[%s169 + $0x40] sm:$0xf]
      %v202 = vld [vmem:[%s169 + $0x44] sm:$0xf]
      %v203 = vld [vmem:[%s169 + $0x48] sm:$0xf]
      %v204 = vld [vmem:[%s169 + $0x4c] sm:$0xf]
      %v205 = vld [vmem:[%s169 + $0x50] sm:$0xf]
      %v206 = vld [vmem:[%s169 + $0x54] sm:$0xf]
      %v207 = vld [vmem:[%s169 + $0x58] sm:$0xf]
      %v208 = vld [vmem:[%s169 + $0x5c] sm:$0xf]
      %v209 = vld [vmem:[%s169 + $0x60] sm:$0xf]
      %v210 = vld [vmem:[%s169 + $0x64] sm:$0xf]
      %v211 = vld [vmem:[%s169 + $0x68] sm:$0xf]
      %v212 = vld [vmem:[%s169 + $0x6c] sm:$0xf]
      %v213 = vld [vmem:[%s169 + $0x70] sm:$0xf]
      %v214 = vld [vmem:[%s169 + $0x74] sm:$0xf]
      %v215 = vld [vmem:[%s169 + $0x78] sm:$0xf]
      %v216 = vld [vmem:[%s169 + $0x7c] sm:$0xf]
      %v217 = vld [vmem:[%s169 + $0x80] sm:$0xf]
      %v218 = vld [vmem:[%s169 + $0x84] sm:$0xf]
      %v219 = vld [vmem:[%s169 + $0x88] sm:$0xf]
      %v220 = vld [vmem:[%s169 + $0x8c] sm:$0xf]
      %v221 = vld [vmem:[%s169 + $0x90] sm:$0xf]
      %v222 = vld [vmem:[%s169 + $0x94] sm:$0xf]
      %v223 = vld [vmem:[%s169 + $0x98] sm:$0xf]
      %v224 = vld [vmem:[%s169 + $0x9c] sm:$0xf]
      %v225 = vld [vmem:[%s169 + $0xa0] sm:$0xf]
      %v226 = vld [vmem:[%s169 + $0xa4] sm:$0xf]
      %v227 = vld [vmem:[%s169 + $0xa8] sm:$0xf]
      %v228 = vld [vmem:[%s169 + $0xac] sm:$0xf]
      %v229 = vld [vmem:[%s169 + $0xb0] sm:$0xf]
      %v230 = vld [vmem:[%s169 + $0xb4] sm:$0xf]
      %v231 = vld [vmem:[%s169 + $0xb8] sm:$0xf]
      %v232 = vld [vmem:[%s169 + $0xbc] sm:$0xf]
      %v233 = vld [vmem:[%s169 + $0xc0] sm:$0xf]
      %v234 = vld [vmem:[%s169 + $0xc4] sm:$0xf]
      %v235 = vld [vmem:[%s169 + $0xc8] sm:$0xf]
      %v236 = vld [vmem:[%s169 + $0xcc] sm:$0xf]
      %v237 = vld [vmem:[%s169 + $0xd0] sm:$0xf]
      %v238 = vld [vmem:[%s169 + $0xd4] sm:$0xf]
      %v239 = vld [vmem:[%s169 + $0xd8] sm:$0xf]
      %v240 = vld [vmem:[%s169 + $0xdc] sm:$0xf]
      %v241 = vld [vmem:[%s169 + $0xe0] sm:$0xf]
      %v242 = vld [vmem:[%s169 + $0xe4] sm:$0xf]
      %v243 = vld [vmem:[%s169 + $0xe8] sm:$0xf]
      %v244 = vld [vmem:[%s169 + $0xec] sm:$0xf]
      %v245 = vld [vmem:[%s169 + $0xf0] sm:$0xf]
      %v246 = vld [vmem:[%s169 + $0xf4] sm:$0xf]
      %v247 = vld [vmem:[%s169 + $0xf8] sm:$0xf]
      %v248 = vld [vmem:[%s169 + $0xfc] sm:$0xf]
      %v249 = vld [vmem:[%s169 + $0x100] sm:$0xf]
      %v250 = vld [vmem:[%s169 + $0x104] sm:$0xf]
      %v251 = vld [vmem:[%s169 + $0x108] sm:$0xf]
      %v252 = vld [vmem:[%s169 + $0x10c] sm:$0xf]
      %v253 = vld [vmem:[%s169 + $0x110] sm:$0xf]
      %v254 = vld [vmem:[%s169 + $0x114] sm:$0xf]
      %v255 = vld [vmem:[%s169 + $0x118] sm:$0xf]
      %v256 = vld [vmem:[%s169 + $0x11c] sm:$0xf]
      %v257 = vld [vmem:[%s169 + $0x120] sm:$0xf]
      %v258 = vld [vmem:[%s169 + $0x124] sm:$0xf]
      %v259 = vld [vmem:[%s169 + $0x128] sm:$0xf]
      %v260 = vld [vmem:[%s169 + $0x12c] sm:$0xf]
      %v261 = vld [vmem:[%s169 + $0x130] sm:$0xf]
      %v262 = vld [vmem:[%s169 + $0x134] sm:$0xf]
      %v263 = vld [vmem:[%s169 + $0x138] sm:$0xf]
      %v264 = vld [vmem:[%s169 + $0x13c] sm:$0xf]
      %v265 = vld [vmem:[%s169 + $0x140] sm:$0xf]
      %v266 = vld [vmem:[%s169 + $0x144] sm:$0xf]
      %v267 = vld [vmem:[%s169 + $0x148] sm:$0xf]
      %v268 = vld [vmem:[%s169 + $0x14c] sm:$0xf]
      %v269 = vld [vmem:[%s169 + $0x150] sm:$0xf]
      %v270 = vld [vmem:[%s169 + $0x154] sm:$0xf]
      %v271 = vld [vmem:[%s169 + $0x158] sm:$0xf]
      %v272 = vld [vmem:[%s169 + $0x15c] sm:$0xf]
      %v273 = vld [vmem:[%s169 + $0x160] sm:$0xf]
      %v274 = vld [vmem:[%s169 + $0x164] sm:$0xf]
      %v275 = vld [vmem:[%s169 + $0x168] sm:$0xf]
      %v276 = vld [vmem:[%s169 + $0x16c] sm:$0xf]
      %v277 = vld [vmem:[%s169 + $0x170] sm:$0xf]
      %v278 = vld [vmem:[%s169 + $0x174] sm:$0xf]
      %v279 = vld [vmem:[%s169 + $0x178] sm:$0xf]
      %v280 = vld [vmem:[%s169 + $0x17c] sm:$0xf]
      %v281 = vld [vmem:[%s169 + $0x180] sm:$0xf]
      %v282 = vld [vmem:[%s169 + $0x184] sm:$0xf]
      %v283 = vld [vmem:[%s169 + $0x188] sm:$0xf]
      %v284 = vld [vmem:[%s169 + $0x18c] sm:$0xf]
      %v285 = vld [vmem:[%s169 + $0x190] sm:$0xf]
      %v286 = vld [vmem:[%s169 + $0x194] sm:$0xf]
      %v287 = vld [vmem:[%s169 + $0x198] sm:$0xf]
      %v288 = vld [vmem:[%s169 + $0x19c] sm:$0xf]
      %v289 = vld [vmem:[%s169 + $0x1a0] sm:$0xf]
      %v290 = vld [vmem:[%s169 + $0x1a4] sm:$0xf]
      %v291 = vld [vmem:[%s169 + $0x1a8] sm:$0xf]
      %v292 = vld [vmem:[%s169 + $0x1ac] sm:$0xf]
      %v293 = vld [vmem:[%s169 + $0x1b0] sm:$0xf]
      %v294 = vld [vmem:[%s169 + $0x1b4] sm:$0xf]
      %v295 = vld [vmem:[%s169 + $0x1b8] sm:$0xf]
      %v296 = vld [vmem:[%s169 + $0x1bc] sm:$0xf]
      %v297 = vld [vmem:[%s169 + $0x1c0] sm:$0xf]
      %v298 = vld [vmem:[%s169 + $0x1c4] sm:$0xf]
      %v299 = vld [vmem:[%s169 + $0x1c8] sm:$0xf]
      %v300 = vld [vmem:[%s169 + $0x1cc] sm:$0xf]
      %v301 = vld [vmem:[%s169 + $0x1d0] sm:$0xf]
      %v302 = vld [vmem:[%s169 + $0x1d4] sm:$0xf]
      %v303 = vld [vmem:[%s169 + $0x1d8] sm:$0xf]
      %v304 = vld [vmem:[%s169 + $0x1dc] sm:$0xf]
      %v305 = vld [vmem:[%s169 + $0x1e0] sm:$0xf]
      %v306 = vld [vmem:[%s169 + $0x1e4] sm:$0xf]
      %v307 = vld [vmem:[%s169 + $0x1e8] sm:$0xf]
      %v308 = vld [vmem:[%s169 + $0x1ec] sm:$0xf]
      %v309 = vld [vmem:[%s169 + $0x1f0] sm:$0xf]
      %v310 = vld [vmem:[%s169 + $0x1f4] sm:$0xf]
      %v311 = vld [vmem:[%s169 + $0x1f8] sm:$0xf]
      %v312 = vld [vmem:[%s169 + $0x1fc] sm:$0xf]
      %v313 = vld [vmem:[%s174] sm:$0xf]
      %v314 = vld [vmem:[%s174 + $0x4] sm:$0xf]
      %v315 = vld [vmem:[%s174 + $0x8] sm:$0xf]
      %v316 = vld [vmem:[%s174 + $0xc] sm:$0xf]
      %v317 = vld [vmem:[%s174 + $0x10] sm:$0xf]
      %v318 = vld [vmem:[%s174 + $0x14] sm:$0xf]
      %v319 = vld [vmem:[%s174 + $0x18] sm:$0xf]
      %v320 = vld [vmem:[%s174 + $0x1c] sm:$0xf]
      %v449 = vunpack.c.l.b16 %v185
      %v450 = vunpack.c.l.b16 %v186
      %v451 = vunpack.c.l.b16 %v187
      %v452 = vunpack.c.l.b16 %v188
      %v453 = vunpack.c.l.b16 %v189
      %v454 = vunpack.c.l.b16 %v190
      %v455 = vunpack.c.l.b16 %v191
      %v456 = vunpack.c.l.b16 %v192
      %v457 = vunpack.c.l.b16 %v193
      %v458 = vunpack.c.l.b16 %v194
      %v459 = vunpack.c.l.b16 %v195
      %v460 = vunpack.c.l.b16 %v196
      %v461 = vunpack.c.l.b16 %v197
      %v462 = vunpack.c.l.b16 %v198
      %v463 = vunpack.c.l.b16 %v199
      %v464 = vunpack.c.l.b16 %v200
      %v465 = vunpack.c.l.b16 %v201
      %v466 = vunpack.c.l.b16 %v202
      %v467 = vunpack.c.l.b16 %v203
      %v468 = vunpack.c.l.b16 %v204
      %v469 = vunpack.c.l.b16 %v205
      %v470 = vunpack.c.l.b16 %v206
      %v471 = vunpack.c.l.b16 %v207
      %v472 = vunpack.c.l.b16 %v208
      %v473 = vunpack.c.l.b16 %v209
      %v474 = vunpack.c.l.b16 %v210
      %v475 = vunpack.c.l.b16 %v211
      %v476 = vunpack.c.l.b16 %v212
      %v477 = vunpack.c.l.b16 %v213
      %v478 = vunpack.c.l.b16 %v214
      %v479 = vunpack.c.l.b16 %v215
      %v480 = vunpack.c.l.b16 %v216
      %v481 = vunpack.c.l.b16 %v217
      %v482 = vunpack.c.l.b16 %v218
      %v483 = vunpack.c.l.b16 %v219
      %v484 = vunpack.c.l.b16 %v220
      %v485 = vunpack.c.l.b16 %v221
      %v486 = vunpack.c.l.b16 %v222
      %v487 = vunpack.c.l.b16 %v223
      %v488 = vunpack.c.l.b16 %v224
      %v489 = vunpack.c.l.b16 %v225
      %v490 = vunpack.c.l.b16 %v226
      %v491 = vunpack.c.l.b16 %v227
      %v492 = vunpack.c.l.b16 %v228
      %v493 = vunpack.c.l.b16 %v229
      %v494 = vunpack.c.l.b16 %v230
      %v495 = vunpack.c.l.b16 %v231
      %v496 = vunpack.c.l.b16 %v232
      %v497 = vunpack.c.l.b16 %v233
      %v498 = vunpack.c.l.b16 %v234
      %v499 = vunpack.c.l.b16 %v235
      %v500 = vunpack.c.l.b16 %v236
      %v501 = vunpack.c.l.b16 %v237
      %v502 = vunpack.c.l.b16 %v238
      %v503 = vunpack.c.l.b16 %v239
      %v504 = vunpack.c.l.b16 %v240
      %v505 = vunpack.c.l.b16 %v241
      %v506 = vunpack.c.l.b16 %v242
      %v507 = vunpack.c.l.b16 %v243
      %v508 = vunpack.c.l.b16 %v244
      %v509 = vunpack.c.l.b16 %v245
      %v510 = vunpack.c.l.b16 %v246
      %v511 = vunpack.c.l.b16 %v247
      %v512 = vunpack.c.l.b16 %v248
      %v513 = vunpack.c.l.b16 %v249
      %v514 = vunpack.c.l.b16 %v250
      %v515 = vunpack.c.l.b16 %v251
      %v516 = vunpack.c.l.b16 %v252
      %v517 = vunpack.c.l.b16 %v253
      %v518 = vunpack.c.l.b16 %v254
      %v519 = vunpack.c.l.b16 %v255
      %v520 = vunpack.c.l.b16 %v256
      %v521 = vunpack.c.l.b16 %v257
      %v522 = vunpack.c.l.b16 %v258
      %v523 = vunpack.c.l.b16 %v259
      %v524 = vunpack.c.l.b16 %v260
      %v525 = vunpack.c.l.b16 %v261
      %v526 = vunpack.c.l.b16 %v262
      %v527 = vunpack.c.l.b16 %v263
      %v528 = vunpack.c.l.b16 %v264
      %v529 = vunpack.c.l.b16 %v265
      %v530 = vunpack.c.l.b16 %v266
      %v531 = vunpack.c.l.b16 %v267
      %v532 = vunpack.c.l.b16 %v268
      %v533 = vunpack.c.l.b16 %v269
      %v534 = vunpack.c.l.b16 %v270
      %v535 = vunpack.c.l.b16 %v271
      %v536 = vunpack.c.l.b16 %v272
      %v537 = vunpack.c.l.b16 %v273
      %v538 = vunpack.c.l.b16 %v274
      %v539 = vunpack.c.l.b16 %v275
      %v540 = vunpack.c.l.b16 %v276
      %v541 = vunpack.c.l.b16 %v277
      %v542 = vunpack.c.l.b16 %v278
      %v543 = vunpack.c.l.b16 %v279
      %v544 = vunpack.c.l.b16 %v280
      %v545 = vunpack.c.l.b16 %v281
      %v546 = vunpack.c.l.b16 %v282
      %v547 = vunpack.c.l.b16 %v283
      %v548 = vunpack.c.l.b16 %v284
      %v549 = vunpack.c.l.b16 %v285
      %v550 = vunpack.c.l.b16 %v286
      %v551 = vunpack.c.l.b16 %v287
      %v552 = vunpack.c.l.b16 %v288
      %v553 = vunpack.c.l.b16 %v289
      %v554 = vunpack.c.l.b16 %v290
      %v555 = vunpack.c.l.b16 %v291
      %v556 = vunpack.c.l.b16 %v292
      %v557 = vunpack.c.l.b16 %v293
      %v558 = vunpack.c.l.b16 %v294
      %v559 = vunpack.c.l.b16 %v295
      %v560 = vunpack.c.l.b16 %v296
      %v561 = vunpack.c.l.b16 %v297
      %v562 = vunpack.c.l.b16 %v298
      %v563 = vunpack.c.l.b16 %v299
      %v564 = vunpack.c.l.b16 %v300
      %v565 = vunpack.c.l.b16 %v301
      %v566 = vunpack.c.l.b16 %v302
      %v567 = vunpack.c.l.b16 %v303
      %v568 = vunpack.c.l.b16 %v304
      %v569 = vunpack.c.l.b16 %v305
      %v570 = vunpack.c.l.b16 %v306
      %v571 = vunpack.c.l.b16 %v307
      %v572 = vunpack.c.l.b16 %v308
      %v573 = vunpack.c.l.b16 %v309
      %v574 = vunpack.c.l.b16 %v310
      %v575 = vunpack.c.l.b16 %v311
      %v576 = vunpack.c.l.b16 %v312
      %v577 = vpack.c.b16 %v450, %v449
      %v578 = vpack.c.b16 %v452, %v451
      %v579 = vpack.c.b16 %v454, %v453
      %v580 = vpack.c.b16 %v456, %v455
      %v581 = vpack.c.b16 %v458, %v457
      %v582 = vpack.c.b16 %v460, %v459
      %v583 = vpack.c.b16 %v462, %v461
      %v584 = vpack.c.b16 %v464, %v463
      %v585 = vpack.c.b16 %v466, %v465
      %v586 = vpack.c.b16 %v468, %v467
      %v587 = vpack.c.b16 %v470, %v469
      %v588 = vpack.c.b16 %v472, %v471
      %v589 = vpack.c.b16 %v474, %v473
      %v590 = vpack.c.b16 %v476, %v475
      %v591 = vpack.c.b16 %v478, %v477
      %v592 = vpack.c.b16 %v480, %v479
      %v593 = vpack.c.b16 %v482, %v481
      %v594 = vpack.c.b16 %v484, %v483
      %v595 = vpack.c.b16 %v486, %v485
      %v596 = vpack.c.b16 %v488, %v487
      %v597 = vpack.c.b16 %v490, %v489
      %v598 = vpack.c.b16 %v492, %v491
      %v599 = vpack.c.b16 %v494, %v493
      %v600 = vpack.c.b16 %v496, %v495
      %v601 = vpack.c.b16 %v498, %v497
      %v602 = vpack.c.b16 %v500, %v499
      %v603 = vpack.c.b16 %v502, %v501
      %v604 = vpack.c.b16 %v504, %v503
      %v605 = vpack.c.b16 %v506, %v505
      %v606 = vpack.c.b16 %v508, %v507
      %v607 = vpack.c.b16 %v510, %v509
      %v608 = vpack.c.b16 %v512, %v511
      %v609 = vpack.c.b16 %v514, %v513
      %v610 = vpack.c.b16 %v516, %v515
      %v611 = vpack.c.b16 %v518, %v517
      %v612 = vpack.c.b16 %v520, %v519
      %v613 = vpack.c.b16 %v522, %v521
      %v614 = vpack.c.b16 %v524, %v523
      %v615 = vpack.c.b16 %v526, %v525
      %v616 = vpack.c.b16 %v528, %v527
      %v617 = vpack.c.b16 %v530, %v529
      %v618 = vpack.c.b16 %v532, %v531
      %v619 = vpack.c.b16 %v534, %v533
      %v620 = vpack.c.b16 %v536, %v535
      %v621 = vpack.c.b16 %v538, %v537
      %v622 = vpack.c.b16 %v540, %v539
      %v623 = vpack.c.b16 %v542, %v541
      %v624 = vpack.c.b16 %v544, %v543
      %v625 = vpack.c.b16 %v546, %v545
      %v626 = vpack.c.b16 %v548, %v547
      %v627 = vpack.c.b16 %v550, %v549
      %v628 = vpack.c.b16 %v552, %v551
      %v629 = vpack.c.b16 %v554, %v553
      %v630 = vpack.c.b16 %v556, %v555
      %v631 = vpack.c.b16 %v558, %v557
      %v632 = vpack.c.b16 %v560, %v559
      %v633 = vpack.c.b16 %v562, %v561
      %v634 = vpack.c.b16 %v564, %v563
      %v635 = vpack.c.b16 %v566, %v565
      %v636 = vpack.c.b16 %v568, %v567
      %v637 = vpack.c.b16 %v570, %v569
      %v638 = vpack.c.b16 %v572, %v571
      %v639 = vpack.c.b16 %v574, %v573
      %v640 = vpack.c.b16 %v576, %v575
      %v649 = vunpack.c.l.b16 %v313
      %v650 = vunpack.c.l.b16 %v314
      %v651 = vunpack.c.l.b16 %v315
      %v652 = vunpack.c.l.b16 %v316
      %v653 = vunpack.c.l.b16 %v317
      %v654 = vunpack.c.l.b16 %v318
      %v655 = vunpack.c.l.b16 %v319
      %v656 = vunpack.c.l.b16 %v320
      %v657 = vpack.c.b16 %v650, %v649
      %v658 = vpack.c.b16 %v652, %v651
      %v659 = vpack.c.b16 %v654, %v653
      %v660 = vpack.c.b16 %v656, %v655
      %vm665 = vcmask 523264
      %v667 = vsel %vm665, %v577, 0
      %v670 = vsel %vm665, %v578, 0
      %v673 = vsel %vm665, %v579, 0
      %v676 = vsel %vm665, %v580, 0
      %v679 = vsel %vm665, %v581, 0
      %v682 = vsel %vm665, %v582, 0
      %v685 = vsel %vm665, %v583, 0
      %v688 = vsel %vm665, %v584, 0
      %v691 = vsel %vm665, %v585, 0
      %v694 = vsel %vm665, %v586, 0
      %v697 = vsel %vm665, %v587, 0
      %v700 = vsel %vm665, %v588, 0
      %v703 = vsel %vm665, %v589, 0
      %v706 = vsel %vm665, %v590, 0
      %v709 = vsel %vm665, %v591, 0
      %v712 = vsel %vm665, %v592, 0
      %v715 = vsel %vm665, %v593, 0
      %v718 = vsel %vm665, %v594, 0
      %v721 = vsel %vm665, %v595, 0
      %v724 = vsel %vm665, %v596, 0
      %v727 = vsel %vm665, %v597, 0
      %v730 = vsel %vm665, %v598, 0
      %v733 = vsel %vm665, %v599, 0
      %v736 = vsel %vm665, %v600, 0
      %v739 = vsel %vm665, %v601, 0
      %v742 = vsel %vm665, %v602, 0
      %v745 = vsel %vm665, %v603, 0
      %v748 = vsel %vm665, %v604, 0
      %v751 = vsel %vm665, %v605, 0
      %v754 = vsel %vm665, %v606, 0
      %v757 = vsel %vm665, %v607, 0
      %v760 = vsel %vm665, %v608, 0
      %v763 = vsel %vm665, %v609, 0
      %v766 = vsel %vm665, %v610, 0
      %v769 = vsel %vm665, %v611, 0
      %v772 = vsel %vm665, %v612, 0
      %v775 = vsel %vm665, %v613, 0
      %v778 = vsel %vm665, %v614, 0
      %v781 = vsel %vm665, %v615, 0
      %v784 = vsel %vm665, %v616, 0
      %v787 = vsel %vm665, %v617, 0
      %v790 = vsel %vm665, %v618, 0
      %v793 = vsel %vm665, %v619, 0
      %v796 = vsel %vm665, %v620, 0
      %v799 = vsel %vm665, %v621, 0
      %v802 = vsel %vm665, %v622, 0
      %v805 = vsel %vm665, %v623, 0
      %v808 = vsel %vm665, %v624, 0
      %v811 = vsel %vm665, %v625, 0
      %v814 = vsel %vm665, %v626, 0
      %v817 = vsel %vm665, %v627, 0
      %v820 = vsel %vm665, %v628, 0
      %v823 = vsel %vm665, %v629, 0
      %v826 = vsel %vm665, %v630, 0
      %v829 = vsel %vm665, %v631, 0
      %v832 = vsel %vm665, %v632, 0
      %v835 = vsel %vm665, %v633, 0
      %v838 = vsel %vm665, %v634, 0
      %v841 = vsel %vm665, %v635, 0
      %v844 = vsel %vm665, %v636, 0
      %v847 = vsel %vm665, %v637, 0
      %v850 = vsel %vm665, %v638, 0
      %v853 = vsel %vm665, %v639, 0
      %v856 = vsel %vm665, %v640, 0
      %858 = vmatprep.subr.bf16.mxu0 0
      %859 = vmatpush1.bf16.msra.mxu0 %v657
      %860 = vmatprep.subr.bf16.mxu0 0
      %861 = vmatpush1.bf16.msra.mxu0 %v658
      %862 = vmatprep.subr.bf16.mxu0 0
      %863 = vmatpush1.bf16.msra.mxu0 %v659
      %864 = vmatprep.subr.bf16.mxu0 0
      %865 = vmatpush1.bf16.msra.mxu0 %v660
      %866 = vmatprep.subr.bf16.mxu0 0
      %867 = vmatpush1.bf16.msra.mxu0 0
      %868 = vmatprep.subr.bf16.mxu0 0
      %869 = vmatpush1.bf16.msra.mxu0 0
      %870 = vmatprep.subr.bf16.mxu0 0
      %871 = vmatpush1.bf16.msra.mxu0 0
      %872 = vmatprep.subr.bf16.mxu0 0
      %873 = vmatpush1.bf16.msra.mxu0 0
      %874 = vmatprep.subr.bf16.mxu0 0
      %875 = vmatpush1.bf16.msra.mxu0 0
      %876 = vmatprep.subr.bf16.mxu0 0
      %877 = vmatpush1.bf16.msra.mxu0 0
      %878 = vmatprep.subr.bf16.mxu0 0
      %879 = vmatpush1.bf16.msra.mxu0 0
      %880 = vmatprep.subr.bf16.mxu0 0
      %881 = vmatpush1.bf16.msra.mxu0 0
      %882 = vmatprep.subr.bf16.mxu0 0
      %883 = vmatpush1.bf16.msra.mxu0 0
      %884 = vmatprep.subr.bf16.mxu0 0
      %885 = vmatpush1.bf16.msra.mxu0 0
      %886 = vmatprep.subr.bf16.mxu0 0
      %887 = vmatpush1.bf16.msra.mxu0 0
      %888 = vmatprep.subr.bf16.mxu0 0
      %889 = vmatpush1.bf16.msra.mxu0 0
      %890 = vmatprep.mubr.bf16.mxu0 0
      %891 = vmatmul.mubr.bf16.gmra.mrb[0].mxu0 %v667
      %v892 = vpop.f32.mrb[0].mxu0
      %v893 = vadd.f32 0.0, %v892
      %v894 = vpop.f32.mrb[0].mxu0
      %v895 = vpop.f32.mrb[0].mxu0
      %v896 = vadd.f32 0.0, %v895
      %v897 = vpop.f32.mrb[0].mxu0
      %898 = vmatprep.mubr.bf16.mxu0 0
      %899 = vmatmul.mubr.bf16.gmra.mrb[0].mxu0 %v670
      %v900 = vpop.f32.mrb[0].mxu0
      %v901 = vadd.f32 0.0, %v900
      %v902 = vpop.f32.mrb[0].mxu0
      %v903 = vpop.f32.mrb[0].mxu0
      %v904 = vadd.f32 0.0, %v903
      %v905 = vpop.f32.mrb[0].mxu0
      %906 = vmatprep.mubr.bf16.mxu0 0
      %907 = vmatmul.mubr.bf16.gmra.mrb[0].mxu0 %v673
      %v908 = vpop.f32.mrb[0].mxu0
      %v909 = vadd.f32 0.0, %v908
      %v910 = vpop.f32.mrb[0].mxu0
      %v911 = vpop.f32.mrb[0].mxu0
      %v912 = vadd.f32 0.0, %v911
      %v913 = vpop.f32.mrb[0].mxu0
      %914 = vmatprep.mubr.bf16.mxu0 0
      %915 = vmatmul.mubr.bf16.gmra.mrb[0].mxu0 %v676
      %v916 = vpop.f32.mrb[0].mxu0
      %v917 = vadd.f32 0.0, %v916
      %v918 = vpop.f32.mrb[0].mxu0
      %v919 = vpop.f32.mrb[0].mxu0
      %v920 = vadd.f32 0.0, %v919
      %v921 = vpop.f32.mrb[0].mxu0
      %922 = vmatprep.mubr.bf16.mxu0 0
      %923 = vmatmul.mubr.bf16.gmra.mrb[0].mxu0 %v679
      %v924 = vpop.f32.mrb[0].mxu0
      %v925 = vadd.f32 0.0, %v924
      %v926 = vpop.f32.mrb[0].mxu0
      %v927 = vpop.f32.mrb[0].mxu0
      %v928 = vadd.f32 0.0, %v927
      %v929 = vpop.f32.mrb[0].mxu0
      %930 = vmatprep.mubr.bf16.mxu0 0
      %931 = vmatmul.mubr.bf16.gmra.mrb[0].mxu0 %v682
      %v932 = vpop.f32.mrb[0].mxu0
      %v933 = vadd.f32 0.0, %v932
      %v934 = vpop.f32.mrb[0].mxu0
      %v935 = vpop.f32.mrb[0].mxu0
      %v936 = vadd.f32 0.0, %v935
      %v937 = vpop.f32.mrb[0].mxu0
      %938 = vmatprep.mubr.bf16.mxu0 0
      %939 = vmatmul.mubr.bf16.gmra.mrb[0].mxu0 %v685
      %v940 = vpop.f32.mrb[0].mxu0
      %v941 = vadd.f32 0.0, %v940
      %v942 = vpop.f32.mrb[0].mxu0
      %v943 = vpop.f32.mrb[0].mxu0
      %v944 = vadd.f32 0.0, %v943
      %v945 = vpop.f32.mrb[0].mxu0
      %946 = vmatprep.mubr.bf16.mxu0 0
      %947 = vmatmul.mubr.bf16.gmra.mrb[0].mxu0 %v688
      %v948 = vpop.f32.mrb[0].mxu0
      %v949 = vadd.f32 0.0, %v948
      %v950 = vpop.f32.mrb[0].mxu0
      %v951 = vpop.f32.mrb[0].mxu0
      %v952 = vadd.f32 0.0, %v951
      %v953 = vpop.f32.mrb[0].mxu0
      %954 = vmatprep.mubr.bf16.mxu0 0
      %955 = vmatmul.mubr.bf16.gmra.mrb[0].mxu0 %v691
      %v956 = vpop.f32.mrb[0].mxu0
      %v957 = vadd.f32 0.0, %v956
      %v958 = vpop.f32.mrb[0].mxu0
      %v959 = vpop.f32.mrb[0].mxu0
      %v960 = vadd.f32 0.0, %v959
      %v961 = vpop.f32.mrb[0].mxu0
      %962 = vmatprep.mubr.bf16.mxu0 0
      %963 = vmatmul.mubr.bf16.gmra.mrb[0].mxu0 %v694
      %v964 = vpop.f32.mrb[0].mxu0
      %v965 = vadd.f32 0.0, %v964
      %v966 = vpop.f32.mrb[0].mxu0
      %v967 = vpop.f32.mrb[0].mxu0
      %v968 = vadd.f32 0.0, %v967
      %v969 = vpop.f32.mrb[0].mxu0
      %970 = vmatprep.mubr.bf16.mxu0 0
      %971 = vmatmul.mubr.bf16.gmra.mrb[0].mxu0 %v697
      %v972 = vpop.f32.mrb[0].mxu0
      %v973 = vadd.f32 0.0, %v972
      %v974 = vpop.f32.mrb[0].mxu0
      %v975 = vpop.f32.mrb[0].mxu0
      %v976 = vadd.f32 0.0, %v975
      %v977 = vpop.f32.mrb[0].mxu0
      %978 = vmatprep.mubr.bf16.mxu0 0
      %979 = vmatmul.mubr.bf16.gmra.mrb[0].mxu0 %v700
      %v980 = vpop.f32.mrb[0].mxu0
      %v981 = vadd.f32 0.0, %v980
      %v982 = vpop.f32.mrb[0].mxu0
      %v983 = vpop.f32.mrb[0].mxu0
      %v984 = vadd.f32 0.0, %v983
      %v985 = vpop.f32.mrb[0].mxu0
      %986 = vmatprep.mubr.bf16.mxu0 0
      %987 = vmatmul.mubr.bf16.gmra.mrb[0].mxu0 %v703
      %v988 = vpop.f32.mrb[0].mxu0
      %v989 = vadd.f32 0.0, %v988
      %v990 = vpop.f32.mrb[0].mxu0
      %v991 = vpop.f32.mrb[0].mxu0
      %v992 = vadd.f32 0.0, %v991
      %v993 = vpop.f32.mrb[0].mxu0
      %994 = vmatprep.mubr.bf16.mxu0 0
      %995 = vmatmul.mubr.bf16.gmra.mrb[0].mxu0 %v706
      %v996 = vpop.f32.mrb[0].mxu0
      %v997 = vadd.f32 0.0, %v996
      %v998 = vpop.f32.mrb[0].mxu0
      %v999 = vpop.f32.mrb[0].mxu0
      %v1000 = vadd.f32 0.0, %v999
      %v1001 = vpop.f32.mrb[0].mxu0
      %1002 = vmatprep.mubr.bf16.mxu0 0
      %1003 = vmatmul.mubr.bf16.gmra.mrb[0].mxu0 %v709
      %v1004 = vpop.f32.mrb[0].mxu0
      %v1005 = vadd.f32 0.0, %v1004
      %v1006 = vpop.f32.mrb[0].mxu0
      %v1007 = vpop.f32.mrb[0].mxu0
      %v1008 = vadd.f32 0.0, %v1007
      %v1009 = vpop.f32.mrb[0].mxu0
      %1010 = vmatprep.mubr.bf16.mxu0 0
      %1011 = vmatmul.mubr.bf16.gmra.mrb[0].mxu0 %v712
      %v1012 = vpop.f32.mrb[0].mxu0
      %v1013 = vadd.f32 0.0, %v1012
      %v1014 = vpop.f32.mrb[0].mxu0
      %v1015 = vpop.f32.mrb[0].mxu0
      %v1016 = vadd.f32 0.0, %v1015
      %v1017 = vpop.f32.mrb[0].mxu0
      %1018 = vmatprep.mubr.bf16.mxu0 0
      %1019 = vmatmul.mubr.bf16.gmra.mrb[0].mxu0 %v715
      %v1020 = vpop.f32.mrb[0].mxu0
      %v1021 = vadd.f32 0.0, %v1020
      %v1022 = vpop.f32.mrb[0].mxu0
      %v1023 = vpop.f32.mrb[0].mxu0
      %v1024 = vadd.f32 0.0, %v1023
      %v1025 = vpop.f32.mrb[0].mxu0
      %1026 = vmatprep.mubr.bf16.mxu0 0
      %1027 = vmatmul.mubr.bf16.gmra.mrb[0].mxu0 %v718
      %v1028 = vpop.f32.mrb[0].mxu0
      %v1029 = vadd.f32 0.0, %v1028
      %v1030 = vpop.f32.mrb[0].mxu0
      %v1031 = vpop.f32.mrb[0].mxu0
      %v1032 = vadd.f32 0.0, %v1031
      %v1033 = vpop.f32.mrb[0].mxu0
      %1034 = vmatprep.mubr.bf16.mxu0 0
      %1035 = vmatmul.mubr.bf16.gmra.mrb[0].mxu0 %v721
      %v1036 = vpop.f32.mrb[0].mxu0
      %v1037 = vadd.f32 0.0, %v1036
      %v1038 = vpop.f32.mrb[0].mxu0
      %v1039 = vpop.f32.mrb[0].mxu0
      %v1040 = vadd.f32 0.0, %v1039
      %v1041 = vpop.f32.mrb[0].mxu0
      %1042 = vmatprep.mubr.bf16.mxu0 0
      %1043 = vmatmul.mubr.bf16.gmra.mrb[0].mxu0 %v724
      %v1044 = vpop.f32.mrb[0].mxu0
      %v1045 = vadd.f32 0.0, %v1044
      %v1046 = vpop.f32.mrb[0].mxu0
      %v1047 = vpop.f32.mrb[0].mxu0
      %v1048 = vadd.f32 0.0, %v1047
      %v1049 = vpop.f32.mrb[0].mxu0
      %1050 = vmatprep.mubr.bf16.mxu0 0
      %1051 = vmatmul.mubr.bf16.gmra.mrb[0].mxu0 %v727
      %v1052 = vpop.f32.mrb[0].mxu0
      %v1053 = vadd.f32 0.0, %v1052
      %v1054 = vpop.f32.mrb[0].mxu0
      %v1055 = vpop.f32.mrb[0].mxu0
      %v1056 = vadd.f32 0.0, %v1055
      %v1057 = vpop.f32.mrb[0].mxu0
      %1058 = vmatprep.mubr.bf16.mxu0 0
      %1059 = vmatmul.mubr.bf16.gmra.mrb[0].mxu0 %v730
      %v1060 = vpop.f32.mrb[0].mxu0
      %v1061 = vadd.f32 0.0, %v1060
      %v1062 = vpop.f32.mrb[0].mxu0
      %v1063 = vpop.f32.mrb[0].mxu0
      %v1064 = vadd.f32 0.0, %v1063
      %v1065 = vpop.f32.mrb[0].mxu0
      %1066 = vmatprep.mubr.bf16.mxu0 0
      %1067 = vmatmul.mubr.bf16.gmra.mrb[0].mxu0 %v733
      %v1068 = vpop.f32.mrb[0].mxu0
      %v1069 = vadd.f32 0.0, %v1068
      %v1070 = vpop.f32.mrb[0].mxu0
      %v1071 = vpop.f32.mrb[0].mxu0
      %v1072 = vadd.f32 0.0, %v1071
      %v1073 = vpop.f32.mrb[0].mxu0
      %1074 = vmatprep.mubr.bf16.mxu0 0
      %1075 = vmatmul.mubr.bf16.gmra.mrb[0].mxu0 %v736
      %v1076 = vpop.f32.mrb[0].mxu0
      %v1077 = vadd.f32 0.0, %v1076
      %v1078 = vpop.f32.mrb[0].mxu0
      %v1079 = vpop.f32.mrb[0].mxu0
      %v1080 = vadd.f32 0.0, %v1079
      %v1081 = vpop.f32.mrb[0].mxu0
      %1082 = vmatprep.mubr.bf16.mxu0 0
      %1083 = vmatmul.mubr.bf16.gmra.mrb[0].mxu0 %v739
      %v1084 = vpop.f32.mrb[0].mxu0
      %v1085 = vadd.f32 0.0, %v1084
      %v1086 = vpop.f32.mrb[0].mxu0
      %v1087 = vpop.f32.mrb[0].mxu0
      %v1088 = vadd.f32 0.0, %v1087
      %v1089 = vpop.f32.mrb[0].mxu0
      %1090 = vmatprep.mubr.bf16.mxu0 0
      %1091 = vmatmul.mubr.bf16.gmra.mrb[0].mxu0 %v742
      %v1092 = vpop.f32.mrb[0].mxu0
      %v1093 = vadd.f32 0.0, %v1092
      %v1094 = vpop.f32.mrb[0].mxu0
      %v1095 = vpop.f32.mrb[0].mxu0
      %v1096 = vadd.f32 0.0, %v1095
      %v1097 = vpop.f32.mrb[0].mxu0
      %1098 = vmatprep.mubr.bf16.mxu0 0
      %1099 = vmatmul.mubr.bf16.gmra.mrb[0].mxu0 %v745
      %v1100 = vpop.f32.mrb[0].mxu0
      %v1101 = vadd.f32 0.0, %v1100
      %v1102 = vpop.f32.mrb[0].mxu0
      %v1103 = vpop.f32.mrb[0].mxu0
      %v1104 = vadd.f32 0.0, %v1103
      %v1105 = vpop.f32.mrb[0].mxu0
      %1106 = vmatprep.mubr.bf16.mxu0 0
      %1107 = vmatmul.mubr.bf16.gmra.mrb[0].mxu0 %v748
      %v1108 = vpop.f32.mrb[0].mxu0
      %v1109 = vadd.f32 0.0, %v1108
      %v1110 = vpop.f32.mrb[0].mxu0
      %v1111 = vpop.f32.mrb[0].mxu0
      %v1112 = vadd.f32 0.0, %v1111
      %v1113 = vpop.f32.mrb[0].mxu0
      %1114 = vmatprep.mubr.bf16.mxu0 0
      %1115 = vmatmul.mubr.bf16.gmra.mrb[0].mxu0 %v751
      %v1116 = vpop.f32.mrb[0].mxu0
      %v1117 = vadd.f32 0.0, %v1116
      %v1118 = vpop.f32.mrb[0].mxu0
      %v1119 = vpop.f32.mrb[0].mxu0
      %v1120 = vadd.f32 0.0, %v1119
      %v1121 = vpop.f32.mrb[0].mxu0
      %1122 = vmatprep.mubr.bf16.mxu0 0
      %1123 = vmatmul.mubr.bf16.gmra.mrb[0].mxu0 %v754
      %v1124 = vpop.f32.mrb[0].mxu0
      %v1125 = vadd.f32 0.0, %v1124
      %v1126 = vpop.f32.mrb[0].mxu0
      %v1127 = vpop.f32.mrb[0].mxu0
      %v1128 = vadd.f32 0.0, %v1127
      %v1129 = vpop.f32.mrb[0].mxu0
      %1130 = vmatprep.mubr.bf16.mxu0 0
      %1131 = vmatmul.mubr.bf16.gmra.mrb[0].mxu0 %v757
      %v1132 = vpop.f32.mrb[0].mxu0
      %v1133 = vadd.f32 0.0, %v1132
      %v1134 = vpop.f32.mrb[0].mxu0
      %v1135 = vpop.f32.mrb[0].mxu0
      %v1136 = vadd.f32 0.0, %v1135
      %v1137 = vpop.f32.mrb[0].mxu0
      %1138 = vmatprep.mubr.bf16.mxu0 0
      %1139 = vmatmul.mubr.bf16.gmra.mrb[0].mxu0 %v760
      %v1140 = vpop.f32.mrb[0].mxu0
      %v1141 = vadd.f32 0.0, %v1140
      %v1142 = vpop.f32.mrb[0].mxu0
      %v1143 = vpop.f32.mrb[0].mxu0
      %v1144 = vadd.f32 0.0, %v1143
      %v1145 = vpop.f32.mrb[0].mxu0
      %1146 = vmatprep.mubr.bf16.mxu0 0
      %1147 = vmatmul.mubr.bf16.gmra.mrb[0].mxu0 %v763
      %v1148 = vpop.f32.mrb[0].mxu0
      %v1149 = vadd.f32 0.0, %v1148
      %v1150 = vpop.f32.mrb[0].mxu0
      %v1151 = vpop.f32.mrb[0].mxu0
      %v1152 = vadd.f32 0.0, %v1151
      %v1153 = vpop.f32.mrb[0].mxu0
      %1154 = vmatprep.mubr.bf16.mxu0 0
      %1155 = vmatmul.mubr.bf16.gmra.mrb[0].mxu0 %v766
      %v1156 = vpop.f32.mrb[0].mxu0
      %v1157 = vadd.f32 0.0, %v1156
      %v1158 = vpop.f32.mrb[0].mxu0
      %v1159 = vpop.f32.mrb[0].mxu0
      %v1160 = vadd.f32 0.0, %v1159
      %v1161 = vpop.f32.mrb[0].mxu0
      %1162 = vmatprep.mubr.bf16.mxu0 0
      %1163 = vmatmul.mubr.bf16.gmra.mrb[0].mxu0 %v769
      %v1164 = vpop.f32.mrb[0].mxu0
      %v1165 = vadd.f32 0.0, %v1164
      %v1166 = vpop.f32.mrb[0].mxu0
      %v1167 = vpop.f32.mrb[0].mxu0
      %v1168 = vadd.f32 0.0, %v1167
      %v1169 = vpop.f32.mrb[0].mxu0
      %1170 = vmatprep.mubr.bf16.mxu0 0
      %1171 = vmatmul.mubr.bf16.gmra.mrb[0].mxu0 %v772
      %v1172 = vpop.f32.mrb[0].mxu0
      %v1173 = vadd.f32 0.0, %v1172
      %v1174 = vpop.f32.mrb[0].mxu0
      %v1175 = vpop.f32.mrb[0].mxu0
      %v1176 = vadd.f32 0.0, %v1175
      %v1177 = vpop.f32.mrb[0].mxu0
      %1178 = vmatprep.mubr.bf16.mxu0 0
      %1179 = vmatmul.mubr.bf16.gmra.mrb[0].mxu0 %v775
      %v1180 = vpop.f32.mrb[0].mxu0
      %v1181 = vadd.f32 0.0, %v1180
      %v1182 = vpop.f32.mrb[0].mxu0
      %v1183 = vpop.f32.mrb[0].mxu0
      %v1184 = vadd.f32 0.0, %v1183
      %v1185 = vpop.f32.mrb[0].mxu0
      %1186 = vmatprep.mubr.bf16.mxu0 0
      %1187 = vmatmul.mubr.bf16.gmra.mrb[0].mxu0 %v778
      %v1188 = vpop.f32.mrb[0].mxu0
      %v1189 = vadd.f32 0.0, %v1188
      %v1190 = vpop.f32.mrb[0].mxu0
      %v1191 = vpop.f32.mrb[0].mxu0
      %v1192 = vadd.f32 0.0, %v1191
      %v1193 = vpop.f32.mrb[0].mxu0
      %1194 = vmatprep.mubr.bf16.mxu0 0
      %1195 = vmatmul.mubr.bf16.gmra.mrb[0].mxu0 %v781
      %v1196 = vpop.f32.mrb[0].mxu0
      %v1197 = vadd.f32 0.0, %v1196
      %v1198 = vpop.f32.mrb[0].mxu0
      %v1199 = vpop.f32.mrb[0].mxu0
      %v1200 = vadd.f32 0.0, %v1199
      %v1201 = vpop.f32.mrb[0].mxu0
      %1202 = vmatprep.mubr.bf16.mxu0 0
      %1203 = vmatmul.mubr.bf16.gmra.mrb[0].mxu0 %v784
      %v1204 = vpop.f32.mrb[0].mxu0
      %v1205 = vadd.f32 0.0, %v1204
      %v1206 = vpop.f32.mrb[0].mxu0
      %v1207 = vpop.f32.mrb[0].mxu0
      %v1208 = vadd.f32 0.0, %v1207
      %v1209 = vpop.f32.mrb[0].mxu0
      %1210 = vmatprep.mubr.bf16.mxu0 0
      %1211 = vmatmul.mubr.bf16.gmra.mrb[0].mxu0 %v787
      %v1212 = vpop.f32.mrb[0].mxu0
      %v1213 = vadd.f32 0.0, %v1212
      %v1214 = vpop.f32.mrb[0].mxu0
      %v1215 = vpop.f32.mrb[0].mxu0
      %v1216 = vadd.f32 0.0, %v1215
      %v1217 = vpop.f32.mrb[0].mxu0
      %1218 = vmatprep.mubr.bf16.mxu0 0
      %1219 = vmatmul.mubr.bf16.gmra.mrb[0].mxu0 %v790
      %v1220 = vpop.f32.mrb[0].mxu0
      %v1221 = vadd.f32 0.0, %v1220
      %v1222 = vpop.f32.mrb[0].mxu0
      %v1223 = vpop.f32.mrb[0].mxu0
      %v1224 = vadd.f32 0.0, %v1223
      %v1225 = vpop.f32.mrb[0].mxu0
      %1226 = vmatprep.mubr.bf16.mxu0 0
      %1227 = vmatmul.mubr.bf16.gmra.mrb[0].mxu0 %v793
      %v1228 = vpop.f32.mrb[0].mxu0
      %v1229 = vadd.f32 0.0, %v1228
      %v1230 = vpop.f32.mrb[0].mxu0
      %v1231 = vpop.f32.mrb[0].mxu0
      %v1232 = vadd.f32 0.0, %v1231
      %v1233 = vpop.f32.mrb[0].mxu0
      %1234 = vmatprep.mubr.bf16.mxu0 0
      %1235 = vmatmul.mubr.bf16.gmra.mrb[0].mxu0 %v796
      %v1236 = vpop.f32.mrb[0].mxu0
      %v1237 = vadd.f32 0.0, %v1236
      %v1238 = vpop.f32.mrb[0].mxu0
      %v1239 = vpop.f32.mrb[0].mxu0
      %v1240 = vadd.f32 0.0, %v1239
      %v1241 = vpop.f32.mrb[0].mxu0
      %1242 = vmatprep.mubr.bf16.mxu0 0
      %1243 = vmatmul.mubr.bf16.gmra.mrb[0].mxu0 %v799
      %v1244 = vpop.f32.mrb[0].mxu0
      %v1245 = vadd.f32 0.0, %v1244
      %v1246 = vpop.f32.mrb[0].mxu0
      %v1247 = vpop.f32.mrb[0].mxu0
      %v1248 = vadd.f32 0.0, %v1247
      %v1249 = vpop.f32.mrb[0].mxu0
      %1250 = vmatprep.mubr.bf16.mxu0 0
      %1251 = vmatmul.mubr.bf16.gmra.mrb[0].mxu0 %v802
      %v1252 = vpop.f32.mrb[0].mxu0
      %v1253 = vadd.f32 0.0, %v1252
      %v1254 = vpop.f32.mrb[0].mxu0
      %v1255 = vpop.f32.mrb[0].mxu0
      %v1256 = vadd.f32 0.0, %v1255
      %v1257 = vpop.f32.mrb[0].mxu0
      %1258 = vmatprep.mubr.bf16.mxu0 0
      %1259 = vmatmul.mubr.bf16.gmra.mrb[0].mxu0 %v805
      %v1260 = vpop.f32.mrb[0].mxu0
      %v1261 = vadd.f32 0.0, %v1260
      %v1262 = vpop.f32.mrb[0].mxu0
      %v1263 = vpop.f32.mrb[0].mxu0
      %v1264 = vadd.f32 0.0, %v1263
      %v1265 = vpop.f32.mrb[0].mxu0
      %1266 = vmatprep.mubr.bf16.mxu0 0
      %1267 = vmatmul.mubr.bf16.gmra.mrb[0].mxu0 %v808
      %v1268 = vpop.f32.mrb[0].mxu0
      %v1269 = vadd.f32 0.0, %v1268
      %v1270 = vpop.f32.mrb[0].mxu0
      %v1271 = vpop.f32.mrb[0].mxu0
      %v1272 = vadd.f32 0.0, %v1271
      %v1273 = vpop.f32.mrb[0].mxu0
      %1274 = vmatprep.mubr.bf16.mxu0 0
      %1275 = vmatmul.mubr.bf16.gmra.mrb[0].mxu0 %v811
      %v1276 = vpop.f32.mrb[0].mxu0
      %v1277 = vadd.f32 0.0, %v1276
      %v1278 = vpop.f32.mrb[0].mxu0
      %v1279 = vpop.f32.mrb[0].mxu0
      %v1280 = vadd.f32 0.0, %v1279
      %v1281 = vpop.f32.mrb[0].mxu0
      %1282 = vmatprep.mubr.bf16.mxu0 0
      %1283 = vmatmul.mubr.bf16.gmra.mrb[0].mxu0 %v814
      %v1284 = vpop.f32.mrb[0].mxu0
      %v1285 = vadd.f32 0.0, %v1284
      %v1286 = vpop.f32.mrb[0].mxu0
      %v1287 = vpop.f32.mrb[0].mxu0
      %v1288 = vadd.f32 0.0, %v1287
      %v1289 = vpop.f32.mrb[0].mxu0
      %1290 = vmatprep.mubr.bf16.mxu0 0
      %1291 = vmatmul.mubr.bf16.gmra.mrb[0].mxu0 %v817
      %v1292 = vpop.f32.mrb[0].mxu0
      %v1293 = vadd.f32 0.0, %v1292
      %v1294 = vpop.f32.mrb[0].mxu0
      %v1295 = vpop.f32.mrb[0].mxu0
      %v1296 = vadd.f32 0.0, %v1295
      %v1297 = vpop.f32.mrb[0].mxu0
      %1298 = vmatprep.mubr.bf16.mxu0 0
      %1299 = vmatmul.mubr.bf16.gmra.mrb[0].mxu0 %v820
      %v1300 = vpop.f32.mrb[0].mxu0
      %v1301 = vadd.f32 0.0, %v1300
      %v1302 = vpop.f32.mrb[0].mxu0
      %v1303 = vpop.f32.mrb[0].mxu0
      %v1304 = vadd.f32 0.0, %v1303
      %v1305 = vpop.f32.mrb[0].mxu0
      %1306 = vmatprep.mubr.bf16.mxu0 0
      %1307 = vmatmul.mubr.bf16.gmra.mrb[0].mxu0 %v823
      %v1308 = vpop.f32.mrb[0].mxu0
      %v1309 = vadd.f32 0.0, %v1308
      %v1310 = vpop.f32.mrb[0].mxu0
      %v1311 = vpop.f32.mrb[0].mxu0
      %v1312 = vadd.f32 0.0, %v1311
      %v1313 = vpop.f32.mrb[0].mxu0
      %1314 = vmatprep.mubr.bf16.mxu0 0
      %1315 = vmatmul.mubr.bf16.gmra.mrb[0].mxu0 %v826
      %v1316 = vpop.f32.mrb[0].mxu0
      %v1317 = vadd.f32 0.0, %v1316
      %v1318 = vpop.f32.mrb[0].mxu0
      %v1319 = vpop.f32.mrb[0].mxu0
      %v1320 = vadd.f32 0.0, %v1319
      %v1321 = vpop.f32.mrb[0].mxu0
      %1322 = vmatprep.mubr.bf16.mxu0 0
      %1323 = vmatmul.mubr.bf16.gmra.mrb[0].mxu0 %v829
      %v1324 = vpop.f32.mrb[0].mxu0
      %v1325 = vadd.f32 0.0, %v1324
      %v1326 = vpop.f32.mrb[0].mxu0
      %v1327 = vpop.f32.mrb[0].mxu0
      %v1328 = vadd.f32 0.0, %v1327
      %v1329 = vpop.f32.mrb[0].mxu0
      %1330 = vmatprep.mubr.bf16.mxu0 0
      %1331 = vmatmul.mubr.bf16.gmra.mrb[0].mxu0 %v832
      %v1332 = vpop.f32.mrb[0].mxu0
      %v1333 = vadd.f32 0.0, %v1332
      %v1334 = vpop.f32.mrb[0].mxu0
      %v1335 = vpop.f32.mrb[0].mxu0
      %v1336 = vadd.f32 0.0, %v1335
      %v1337 = vpop.f32.mrb[0].mxu0
      %1338 = vmatprep.mubr.bf16.mxu0 0
      %1339 = vmatmul.mubr.bf16.gmra.mrb[0].mxu0 %v835
      %v1340 = vpop.f32.mrb[0].mxu0
      %v1341 = vadd.f32 0.0, %v1340
      %v1342 = vpop.f32.mrb[0].mxu0
      %v1343 = vpop.f32.mrb[0].mxu0
      %v1344 = vadd.f32 0.0, %v1343
      %v1345 = vpop.f32.mrb[0].mxu0
      %1346 = vmatprep.mubr.bf16.mxu0 0
      %1347 = vmatmul.mubr.bf16.gmra.mrb[0].mxu0 %v838
      %v1348 = vpop.f32.mrb[0].mxu0
      %v1349 = vadd.f32 0.0, %v1348
      %v1350 = vpop.f32.mrb[0].mxu0
      %v1351 = vpop.f32.mrb[0].mxu0
      %v1352 = vadd.f32 0.0, %v1351
      %v1353 = vpop.f32.mrb[0].mxu0
      %1354 = vmatprep.mubr.bf16.mxu0 0
      %1355 = vmatmul.mubr.bf16.gmra.mrb[0].mxu0 %v841
      %v1356 = vpop.f32.mrb[0].mxu0
      %v1357 = vadd.f32 0.0, %v1356
      %v1358 = vpop.f32.mrb[0].mxu0
      %v1359 = vpop.f32.mrb[0].mxu0
      %v1360 = vadd.f32 0.0, %v1359
      %v1361 = vpop.f32.mrb[0].mxu0
      %1362 = vmatprep.mubr.bf16.mxu0 0
      %1363 = vmatmul.mubr.bf16.gmra.mrb[0].mxu0 %v844
      %v1364 = vpop.f32.mrb[0].mxu0
      %v1365 = vadd.f32 0.0, %v1364
      %v1366 = vpop.f32.mrb[0].mxu0
      %v1367 = vpop.f32.mrb[0].mxu0
      %v1368 = vadd.f32 0.0, %v1367
      %v1369 = vpop.f32.mrb[0].mxu0
      %1370 = vmatprep.mubr.bf16.mxu0 0
      %1371 = vmatmul.mubr.bf16.gmra.mrb[0].mxu0 %v847
      %v1372 = vpop.f32.mrb[0].mxu0
      %v1373 = vadd.f32 0.0, %v1372
      %v1374 = vpop.f32.mrb[0].mxu0
      %v1375 = vpop.f32.mrb[0].mxu0
      %v1376 = vadd.f32 0.0, %v1375
      %v1377 = vpop.f32.mrb[0].mxu0
      %1378 = vmatprep.mubr.bf16.mxu0 0
      %1379 = vmatmul.mubr.bf16.gmra.mrb[0].mxu0 %v850
      %v1380 = vpop.f32.mrb[0].mxu0
      %v1381 = vadd.f32 0.0, %v1380
      %v1382 = vpop.f32.mrb[0].mxu0
      %v1383 = vpop.f32.mrb[0].mxu0
      %v1384 = vadd.f32 0.0, %v1383
      %v1385 = vpop.f32.mrb[0].mxu0
      %1386 = vmatprep.mubr.bf16.mxu0 0
      %1387 = vmatmul.mubr.bf16.gmra.mrb[0].mxu0 %v853
      %v1388 = vpop.f32.mrb[0].mxu0
      %v1389 = vadd.f32 0.0, %v1388
      %v1390 = vpop.f32.mrb[0].mxu0
      %v1391 = vpop.f32.mrb[0].mxu0
      %v1392 = vadd.f32 0.0, %v1391
      %v1393 = vpop.f32.mrb[0].mxu0
      %1394 = vmatprep.mubr.bf16.mxu0 0
      %1395 = vmatmul.mubr.bf16.gmra.mrb[0].mxu0 %v856
      %v1396 = vpop.f32.mrb[0].mxu0
      %v1397 = vadd.f32 0.0, %v1396
      %v1398 = vpop.f32.mrb[0].mxu0
      %v1399 = vpop.f32.mrb[0].mxu0
      %v1400 = vadd.f32 0.0, %v1399
      %v1401 = vpop.f32.mrb[0].mxu0
      %1402 = vdwg.mxu0
      %v1403 = vmax.f32 %v893, 0.0
      %v1404 = vmax.f32 %v896, 0.0
      %v1405 = vmax.f32 %v901, 0.0
      %v1406 = vmax.f32 %v904, 0.0
      %v1407 = vmax.f32 %v909, 0.0
      %v1408 = vmax.f32 %v912, 0.0
      %v1409 = vmax.f32 %v917, 0.0
      %v1410 = vmax.f32 %v920, 0.0
      %v1411 = vmax.f32 %v925, 0.0
      %v1412 = vmax.f32 %v928, 0.0
      %v1413 = vmax.f32 %v933, 0.0
      %v1414 = vmax.f32 %v936, 0.0
      %v1415 = vmax.f32 %v941, 0.0
      %v1416 = vmax.f32 %v944, 0.0
      %v1417 = vmax.f32 %v949, 0.0
      %v1418 = vmax.f32 %v952, 0.0
      %v1419 = vmax.f32 %v957, 0.0
      %v1420 = vmax.f32 %v960, 0.0
      %v1421 = vmax.f32 %v965, 0.0
      %v1422 = vmax.f32 %v968, 0.0
      %v1423 = vmax.f32 %v973, 0.0
      %v1424 = vmax.f32 %v976, 0.0
      %v1425 = vmax.f32 %v981, 0.0
      %v1426 = vmax.f32 %v984, 0.0
      %v1427 = vmax.f32 %v989, 0.0
      %v1428 = vmax.f32 %v992, 0.0
      %v1429 = vmax.f32 %v997, 0.0
      %v1430 = vmax.f32 %v1000, 0.0
      %v1431 = vmax.f32 %v1005, 0.0
      %v1432 = vmax.f32 %v1008, 0.0
      %v1433 = vmax.f32 %v1013, 0.0
      %v1434 = vmax.f32 %v1016, 0.0
      %v1435 = vmax.f32 %v1021, 0.0
      %v1436 = vmax.f32 %v1024, 0.0
      %v1437 = vmax.f32 %v1029, 0.0
      %v1438 = vmax.f32 %v1032, 0.0
      %v1439 = vmax.f32 %v1037, 0.0
      %v1440 = vmax.f32 %v1040, 0.0
      %v1441 = vmax.f32 %v1045, 0.0
      %v1442 = vmax.f32 %v1048, 0.0
      %v1443 = vmax.f32 %v1053, 0.0
      %v1444 = vmax.f32 %v1056, 0.0
      %v1445 = vmax.f32 %v1061, 0.0
      %v1446 = vmax.f32 %v1064, 0.0
      %v1447 = vmax.f32 %v1069, 0.0
      %v1448 = vmax.f32 %v1072, 0.0
      %v1449 = vmax.f32 %v1077, 0.0
      %v1450 = vmax.f32 %v1080, 0.0
      %v1451 = vmax.f32 %v1085, 0.0
      %v1452 = vmax.f32 %v1088, 0.0
      %v1453 = vmax.f32 %v1093, 0.0
      %v1454 = vmax.f32 %v1096, 0.0
      %v1455 = vmax.f32 %v1101, 0.0
      %v1456 = vmax.f32 %v1104, 0.0
      %v1457 = vmax.f32 %v1109, 0.0
      %v1458 = vmax.f32 %v1112, 0.0
      %v1459 = vmax.f32 %v1117, 0.0
      %v1460 = vmax.f32 %v1120, 0.0
      %v1461 = vmax.f32 %v1125, 0.0
      %v1462 = vmax.f32 %v1128, 0.0
      %v1463 = vmax.f32 %v1133, 0.0
      %v1464 = vmax.f32 %v1136, 0.0
      %v1465 = vmax.f32 %v1141, 0.0
      %v1466 = vmax.f32 %v1144, 0.0
      %v1467 = vmax.f32 %v1149, 0.0
      %v1468 = vmax.f32 %v1152, 0.0
      %v1469 = vmax.f32 %v1157, 0.0
      %v1470 = vmax.f32 %v1160, 0.0
      %v1471 = vmax.f32 %v1165, 0.0
      %v1472 = vmax.f32 %v1168, 0.0
      %v1473 = vmax.f32 %v1173, 0.0
      %v1474 = vmax.f32 %v1176, 0.0
      %v1475 = vmax.f32 %v1181, 0.0
      %v1476 = vmax.f32 %v1184, 0.0
      %v1477 = vmax.f32 %v1189, 0.0
      %v1478 = vmax.f32 %v1192, 0.0
      %v1479 = vmax.f32 %v1197, 0.0
      %v1480 = vmax.f32 %v1200, 0.0
      %v1481 = vmax.f32 %v1205, 0.0
      %v1482 = vmax.f32 %v1208, 0.0
      %v1483 = vmax.f32 %v1213, 0.0
      %v1484 = vmax.f32 %v1216, 0.0
      %v1485 = vmax.f32 %v1221, 0.0
      %v1486 = vmax.f32 %v1224, 0.0
      %v1487 = vmax.f32 %v1229, 0.0
      %v1488 = vmax.f32 %v1232, 0.0
      %v1489 = vmax.f32 %v1237, 0.0
      %v1490 = vmax.f32 %v1240, 0.0
      %v1491 = vmax.f32 %v1245, 0.0
      %v1492 = vmax.f32 %v1248, 0.0
      %v1493 = vmax.f32 %v1253, 0.0
      %v1494 = vmax.f32 %v1256, 0.0
      %v1495 = vmax.f32 %v1261, 0.0
      %v1496 = vmax.f32 %v1264, 0.0
      %v1497 = vmax.f32 %v1269, 0.0
      %v1498 = vmax.f32 %v1272, 0.0
      %v1499 = vmax.f32 %v1277, 0.0
      %v1500 = vmax.f32 %v1280, 0.0
      %v1501 = vmax.f32 %v1285, 0.0
      %v1502 = vmax.f32 %v1288, 0.0
      %v1503 = vmax.f32 %v1293, 0.0
      %v1504 = vmax.f32 %v1296, 0.0
      %v1505 = vmax.f32 %v1301, 0.0
      %v1506 = vmax.f32 %v1304, 0.0
      %v1507 = vmax.f32 %v1309, 0.0
      %v1508 = vmax.f32 %v1312, 0.0
      %v1509 = vmax.f32 %v1317, 0.0
      %v1510 = vmax.f32 %v1320, 0.0
      %v1511 = vmax.f32 %v1325, 0.0
      %v1512 = vmax.f32 %v1328, 0.0
      %v1513 = vmax.f32 %v1333, 0.0
      %v1514 = vmax.f32 %v1336, 0.0
      %v1515 = vmax.f32 %v1341, 0.0
      %v1516 = vmax.f32 %v1344, 0.0
      %v1517 = vmax.f32 %v1349, 0.0
      %v1518 = vmax.f32 %v1352, 0.0
      %v1519 = vmax.f32 %v1357, 0.0
      %v1520 = vmax.f32 %v1360, 0.0
      %v1521 = vmax.f32 %v1365, 0.0
      %v1522 = vmax.f32 %v1368, 0.0
      %v1523 = vmax.f32 %v1373, 0.0
      %v1524 = vmax.f32 %v1376, 0.0
      %v1525 = vmax.f32 %v1381, 0.0
      %v1526 = vmax.f32 %v1384, 0.0
      %v1527 = vmax.f32 %v1389, 0.0
      %v1528 = vmax.f32 %v1392, 0.0
      %v1529 = vmax.f32 %v1397, 0.0
      %v1530 = vmax.f32 %v1400, 0.0
      %v1531 = vpack.c.bf16 %v1404, %v1403
      %v1532 = vpack.c.bf16 %v1406, %v1405
      %v1533 = vpack.c.bf16 %v1408, %v1407
      %v1534 = vpack.c.bf16 %v1410, %v1409
      %v1535 = vpack.c.bf16 %v1412, %v1411
      %v1536 = vpack.c.bf16 %v1414, %v1413
      %v1537 = vpack.c.bf16 %v1416, %v1415
      %v1538 = vpack.c.bf16 %v1418, %v1417
      %v1539 = vpack.c.bf16 %v1420, %v1419
      %v1540 = vpack.c.bf16 %v1422, %v1421
      %v1541 = vpack.c.bf16 %v1424, %v1423
      %v1542 = vpack.c.bf16 %v1426, %v1425
      %v1543 = vpack.c.bf16 %v1428, %v1427
      %v1544 = vpack.c.bf16 %v1430, %v1429
      %v1545 = vpack.c.bf16 %v1432, %v1431
      %v1546 = vpack.c.bf16 %v1434, %v1433
      %v1547 = vpack.c.bf16 %v1436, %v1435
      %v1548 = vpack.c.bf16 %v1438, %v1437
      %v1549 = vpack.c.bf16 %v1440, %v1439
      %v1550 = vpack.c.bf16 %v1442, %v1441
      %v1551 = vpack.c.bf16 %v1444, %v1443
      %v1552 = vpack.c.bf16 %v1446, %v1445
      %v1553 = vpack.c.bf16 %v1448, %v1447
      %v1554 = vpack.c.bf16 %v1450, %v1449
      %v1555 = vpack.c.bf16 %v1452, %v1451
      %v1556 = vpack.c.bf16 %v1454, %v1453
      %v1557 = vpack.c.bf16 %v1456, %v1455
      %v1558 = vpack.c.bf16 %v1458, %v1457
      %v1559 = vpack.c.bf16 %v1460, %v1459
      %v1560 = vpack.c.bf16 %v1462, %v1461
      %v1561 = vpack.c.bf16 %v1464, %v1463
      %v1562 = vpack.c.bf16 %v1466, %v1465
      %v1563 = vpack.c.bf16 %v1468, %v1467
      %v1564 = vpack.c.bf16 %v1470, %v1469
      %v1565 = vpack.c.bf16 %v1472, %v1471
      %v1566 = vpack.c.bf16 %v1474, %v1473
      %v1567 = vpack.c.bf16 %v1476, %v1475
      %v1568 = vpack.c.bf16 %v1478, %v1477
      %v1569 = vpack.c.bf16 %v1480, %v1479
      %v1570 = vpack.c.bf16 %v1482, %v1481
      %v1571 = vpack.c.bf16 %v1484, %v1483
      %v1572 = vpack.c.bf16 %v1486, %v1485
      %v1573 = vpack.c.bf16 %v1488, %v1487
      %v1574 = vpack.c.bf16 %v1490, %v1489
      %v1575 = vpack.c.bf16 %v1492, %v1491
      %v1576 = vpack.c.bf16 %v1494, %v1493
      %v1577 = vpack.c.bf16 %v1496, %v1495
      %v1578 = vpack.c.bf16 %v1498, %v1497
      %v1579 = vpack.c.bf16 %v1500, %v1499
      %v1580 = vpack.c.bf16 %v1502, %v1501
      %v1581 = vpack.c.bf16 %v1504, %v1503
      %v1582 = vpack.c.bf16 %v1506, %v1505
      %v1583 = vpack.c.bf16 %v1508, %v1507
      %v1584 = vpack.c.bf16 %v1510, %v1509
      %v1585 = vpack.c.bf16 %v1512, %v1511
      %v1586 = vpack.c.bf16 %v1514, %v1513
      %v1587 = vpack.c.bf16 %v1516, %v1515
      %v1588 = vpack.c.bf16 %v1518, %v1517
      %v1589 = vpack.c.bf16 %v1520, %v1519
      %v1590 = vpack.c.bf16 %v1522, %v1521
      %v1591 = vpack.c.bf16 %v1524, %v1523
      %v1592 = vpack.c.bf16 %v1526, %v1525
      %v1593 = vpack.c.bf16 %v1528, %v1527
      %v1594 = vpack.c.bf16 %v1530, %v1529
      %v1659 = vunpack.c.l.b16 %v1531
      %v1660 = vunpack.c.h.b16 %v1531
      %v1661 = vunpack.c.l.b16 %v1532
      %v1662 = vunpack.c.h.b16 %v1532
      %v1663 = vunpack.c.l.b16 %v1533
      %v1664 = vunpack.c.h.b16 %v1533
      %v1665 = vunpack.c.l.b16 %v1534
      %v1666 = vunpack.c.h.b16 %v1534
      %v1667 = vunpack.c.l.b16 %v1535
      %v1668 = vunpack.c.h.b16 %v1535
      %v1669 = vunpack.c.l.b16 %v1536
      %v1670 = vunpack.c.h.b16 %v1536
      %v1671 = vunpack.c.l.b16 %v1537
      %v1672 = vunpack.c.h.b16 %v1537
      %v1673 = vunpack.c.l.b16 %v1538
      %v1674 = vunpack.c.h.b16 %v1538
      %v1675 = vunpack.c.l.b16 %v1539
      %v1676 = vunpack.c.h.b16 %v1539
      %v1677 = vunpack.c.l.b16 %v1540
      %v1678 = vunpack.c.h.b16 %v1540
      %v1679 = vunpack.c.l.b16 %v1541
      %v1680 = vunpack.c.h.b16 %v1541
      %v1681 = vunpack.c.l.b16 %v1542
      %v1682 = vunpack.c.h.b16 %v1542
      %v1683 = vunpack.c.l.b16 %v1543
      %v1684 = vunpack.c.h.b16 %v1543
      %v1685 = vunpack.c.l.b16 %v1544
      %v1686 = vunpack.c.h.b16 %v1544
      %v1687 = vunpack.c.l.b16 %v1545
      %v1688 = vunpack.c.h.b16 %v1545
      %v1689 = vunpack.c.l.b16 %v1546
      %v1690 = vunpack.c.h.b16 %v1546
      %v1691 = vunpack.c.l.b16 %v1547
      %v1692 = vunpack.c.h.b16 %v1547
      %v1693 = vunpack.c.l.b16 %v1548
      %v1694 = vunpack.c.h.b16 %v1548
      %v1695 = vunpack.c.l.b16 %v1549
      %v1696 = vunpack.c.h.b16 %v1549
      %v1697 = vunpack.c.l.b16 %v1550
      %v1698 = vunpack.c.h.b16 %v1550
      %v1699 = vunpack.c.l.b16 %v1551
      %v1700 = vunpack.c.h.b16 %v1551
      %v1701 = vunpack.c.l.b16 %v1552
      %v1702 = vunpack.c.h.b16 %v1552
      %v1703 = vunpack.c.l.b16 %v1553
      %v1704 = vunpack.c.h.b16 %v1553
      %v1705 = vunpack.c.l.b16 %v1554
      %v1706 = vunpack.c.h.b16 %v1554
      %v1707 = vunpack.c.l.b16 %v1555
      %v1708 = vunpack.c.h.b16 %v1555
      %v1709 = vunpack.c.l.b16 %v1556
      %v1710 = vunpack.c.h.b16 %v1556
      %v1711 = vunpack.c.l.b16 %v1557
      %v1712 = vunpack.c.h.b16 %v1557
      %v1713 = vunpack.c.l.b16 %v1558
      %v1714 = vunpack.c.h.b16 %v1558
      %v1715 = vunpack.c.l.b16 %v1559
      %v1716 = vunpack.c.h.b16 %v1559
      %v1717 = vunpack.c.l.b16 %v1560
      %v1718 = vunpack.c.h.b16 %v1560
      %v1719 = vunpack.c.l.b16 %v1561
      %v1720 = vunpack.c.h.b16 %v1561
      %v1721 = vunpack.c.l.b16 %v1562
      %v1722 = vunpack.c.h.b16 %v1562
      %v1723 = vunpack.c.l.b16 %v1563
      %v1724 = vunpack.c.h.b16 %v1563
      %v1725 = vunpack.c.l.b16 %v1564
      %v1726 = vunpack.c.h.b16 %v1564
      %v1727 = vunpack.c.l.b16 %v1565
      %v1728 = vunpack.c.h.b16 %v1565
      %v1729 = vunpack.c.l.b16 %v1566
      %v1730 = vunpack.c.h.b16 %v1566
      %v1731 = vunpack.c.l.b16 %v1567
      %v1732 = vunpack.c.h.b16 %v1567
      %v1733 = vunpack.c.l.b16 %v1568
      %v1734 = vunpack.c.h.b16 %v1568
      %v1735 = vunpack.c.l.b16 %v1569
      %v1736 = vunpack.c.h.b16 %v1569
      %v1737 = vunpack.c.l.b16 %v1570
      %v1738 = vunpack.c.h.b16 %v1570
      %v1739 = vunpack.c.l.b16 %v1571
      %v1740 = vunpack.c.h.b16 %v1571
      %v1741 = vunpack.c.l.b16 %v1572
      %v1742 = vunpack.c.h.b16 %v1572
      %v1743 = vunpack.c.l.b16 %v1573
      %v1744 = vunpack.c.h.b16 %v1573
      %v1745 = vunpack.c.l.b16 %v1574
      %v1746 = vunpack.c.h.b16 %v1574
      %v1747 = vunpack.c.l.b16 %v1575
      %v1748 = vunpack.c.h.b16 %v1575
      %v1749 = vunpack.c.l.b16 %v1576
      %v1750 = vunpack.c.h.b16 %v1576
      %v1751 = vunpack.c.l.b16 %v1577
      %v1752 = vunpack.c.h.b16 %v1577
      %v1753 = vunpack.c.l.b16 %v1578
      %v1754 = vunpack.c.h.b16 %v1578
      %v1755 = vunpack.c.l.b16 %v1579
      %v1756 = vunpack.c.h.b16 %v1579
      %v1757 = vunpack.c.l.b16 %v1580
      %v1758 = vunpack.c.h.b16 %v1580
      %v1759 = vunpack.c.l.b16 %v1581
      %v1760 = vunpack.c.h.b16 %v1581
      %v1761 = vunpack.c.l.b16 %v1582
      %v1762 = vunpack.c.h.b16 %v1582
      %v1763 = vunpack.c.l.b16 %v1583
      %v1764 = vunpack.c.h.b16 %v1583
      %v1765 = vunpack.c.l.b16 %v1584
      %v1766 = vunpack.c.h.b16 %v1584
      %v1767 = vunpack.c.l.b16 %v1585
      %v1768 = vunpack.c.h.b16 %v1585
      %v1769 = vunpack.c.l.b16 %v1586
      %v1770 = vunpack.c.h.b16 %v1586
      %v1771 = vunpack.c.l.b16 %v1587
      %v1772 = vunpack.c.h.b16 %v1587
      %v1773 = vunpack.c.l.b16 %v1588
      %v1774 = vunpack.c.h.b16 %v1588
      %v1775 = vunpack.c.l.b16 %v1589
      %v1776 = vunpack.c.h.b16 %v1589
      %v1777 = vunpack.c.l.b16 %v1590
      %v1778 = vunpack.c.h.b16 %v1590
      %v1779 = vunpack.c.l.b16 %v1591
      %v1780 = vunpack.c.h.b16 %v1591
      %v1781 = vunpack.c.l.b16 %v1592
      %v1782 = vunpack.c.h.b16 %v1592
      %v1783 = vunpack.c.l.b16 %v1593
      %v1784 = vunpack.c.h.b16 %v1593
      %v1785 = vunpack.c.l.b16 %v1594
      %v1786 = vunpack.c.h.b16 %v1594
      %v1787 = vpack.c.b16 %v1659, %v1659
      %v1788 = vpack.c.b16 %v1660, %v1660
      %v1789 = vpack.c.b16 %v1661, %v1661
      %v1790 = vpack.c.b16 %v1662, %v1662
      %v1791 = vpack.c.b16 %v1663, %v1663
      %v1792 = vpack.c.b16 %v1664, %v1664
      %v1793 = vpack.c.b16 %v1665, %v1665
      %v1794 = vpack.c.b16 %v1666, %v1666
      %v1795 = vpack.c.b16 %v1667, %v1667
      %v1796 = vpack.c.b16 %v1668, %v1668
      %v1797 = vpack.c.b16 %v1669, %v1669
      %v1798 = vpack.c.b16 %v1670, %v1670
      %v1799 = vpack.c.b16 %v1671, %v1671
      %v1800 = vpack.c.b16 %v1672, %v1672
      %v1801 = vpack.c.b16 %v1673, %v1673
      %v1802 = vpack.c.b16 %v1674, %v1674
      %v1803 = vpack.c.b16 %v1675, %v1675
      %v1804 = vpack.c.b16 %v1676, %v1676
      %v1805 = vpack.c.b16 %v1677, %v1677
      %v1806 = vpack.c.b16 %v1678, %v1678
      %v1807 = vpack.c.b16 %v1679, %v1679
      %v1808 = vpack.c.b16 %v1680, %v1680
      %v1809 = vpack.c.b16 %v1681, %v1681
      %v1810 = vpack.c.b16 %v1682, %v1682
      %v1811 = vpack.c.b16 %v1683, %v1683
      %v1812 = vpack.c.b16 %v1684, %v1684
      %v1813 = vpack.c.b16 %v1685, %v1685
      %v1814 = vpack.c.b16 %v1686, %v1686
      %v1815 = vpack.c.b16 %v1687, %v1687
      %v1816 = vpack.c.b16 %v1688, %v1688
      %v1817 = vpack.c.b16 %v1689, %v1689
      %v1818 = vpack.c.b16 %v1690, %v1690
      %v1819 = vpack.c.b16 %v1691, %v1691
      %v1820 = vpack.c.b16 %v1692, %v1692
      %v1821 = vpack.c.b16 %v1693, %v1693
      %v1822 = vpack.c.b16 %v1694, %v1694
      %v1823 = vpack.c.b16 %v1695, %v1695
      %v1824 = vpack.c.b16 %v1696, %v1696
      %v1825 = vpack.c.b16 %v1697, %v1697
      %v1826 = vpack.c.b16 %v1698, %v1698
      %v1827 = vpack.c.b16 %v1699, %v1699
      %v1828 = vpack.c.b16 %v1700, %v1700
      %v1829 = vpack.c.b16 %v1701, %v1701
      %v1830 = vpack.c.b16 %v1702, %v1702
      %v1831 = vpack.c.b16 %v1703, %v1703
      %v1832 = vpack.c.b16 %v1704, %v1704
      %v1833 = vpack.c.b16 %v1705, %v1705
      %v1834 = vpack.c.b16 %v1706, %v1706
      %v1835 = vpack.c.b16 %v1707, %v1707
      %v1836 = vpack.c.b16 %v1708, %v1708
      %v1837 = vpack.c.b16 %v1709, %v1709
      %v1838 = vpack.c.b16 %v1710, %v1710
      %v1839 = vpack.c.b16 %v1711, %v1711
      %v1840 = vpack.c.b16 %v1712, %v1712
      %v1841 = vpack.c.b16 %v1713, %v1713
      %v1842 = vpack.c.b16 %v1714, %v1714
      %v1843 = vpack.c.b16 %v1715, %v1715
      %v1844 = vpack.c.b16 %v1716, %v1716
      %v1845 = vpack.c.b16 %v1717, %v1717
      %v1846 = vpack.c.b16 %v1718, %v1718
      %v1847 = vpack.c.b16 %v1719, %v1719
      %v1848 = vpack.c.b16 %v1720, %v1720
      %v1849 = vpack.c.b16 %v1721, %v1721
      %v1850 = vpack.c.b16 %v1722, %v1722
      %v1851 = vpack.c.b16 %v1723, %v1723
      %v1852 = vpack.c.b16 %v1724, %v1724
      %v1853 = vpack.c.b16 %v1725, %v1725
      %v1854 = vpack.c.b16 %v1726, %v1726
      %v1855 = vpack.c.b16 %v1727, %v1727
      %v1856 = vpack.c.b16 %v1728, %v1728
      %v1857 = vpack.c.b16 %v1729, %v1729
      %v1858 = vpack.c.b16 %v1730, %v1730
      %v1859 = vpack.c.b16 %v1731, %v1731
      %v1860 = vpack.c.b16 %v1732, %v1732
      %v1861 = vpack.c.b16 %v1733, %v1733
      %v1862 = vpack.c.b16 %v1734, %v1734
      %v1863 = vpack.c.b16 %v1735, %v1735
      %v1864 = vpack.c.b16 %v1736, %v1736
      %v1865 = vpack.c.b16 %v1737, %v1737
      %v1866 = vpack.c.b16 %v1738, %v1738
      %v1867 = vpack.c.b16 %v1739, %v1739
      %v1868 = vpack.c.b16 %v1740, %v1740
      %v1869 = vpack.c.b16 %v1741, %v1741
      %v1870 = vpack.c.b16 %v1742, %v1742
      %v1871 = vpack.c.b16 %v1743, %v1743
      %v1872 = vpack.c.b16 %v1744, %v1744
      %v1873 = vpack.c.b16 %v1745, %v1745
      %v1874 = vpack.c.b16 %v1746, %v1746
      %v1875 = vpack.c.b16 %v1747, %v1747
      %v1876 = vpack.c.b16 %v1748, %v1748
      %v1877 = vpack.c.b16 %v1749, %v1749
      %v1878 = vpack.c.b16 %v1750, %v1750
      %v1879 = vpack.c.b16 %v1751, %v1751
      %v1880 = vpack.c.b16 %v1752, %v1752
      %v1881 = vpack.c.b16 %v1753, %v1753
      %v1882 = vpack.c.b16 %v1754, %v1754
      %v1883 = vpack.c.b16 %v1755, %v1755
      %v1884 = vpack.c.b16 %v1756, %v1756
      %v1885 = vpack.c.b16 %v1757, %v1757
      %v1886 = vpack.c.b16 %v1758, %v1758
      %v1887 = vpack.c.b16 %v1759, %v1759
      %v1888 = vpack.c.b16 %v1760, %v1760
      %v1889 = vpack.c.b16 %v1761, %v1761
      %v1890 = vpack.c.b16 %v1762, %v1762
      %v1891 = vpack.c.b16 %v1763, %v1763
      %v1892 = vpack.c.b16 %v1764, %v1764
      %v1893 = vpack.c.b16 %v1765, %v1765
      %v1894 = vpack.c.b16 %v1766, %v1766
      %v1895 = vpack.c.b16 %v1767, %v1767
      %v1896 = vpack.c.b16 %v1768, %v1768
      %v1897 = vpack.c.b16 %v1769, %v1769
      %v1898 = vpack.c.b16 %v1770, %v1770
      %v1899 = vpack.c.b16 %v1771, %v1771
      %v1900 = vpack.c.b16 %v1772, %v1772
      %v1901 = vpack.c.b16 %v1773, %v1773
      %v1902 = vpack.c.b16 %v1774, %v1774
      %v1903 = vpack.c.b16 %v1775, %v1775
      %v1904 = vpack.c.b16 %v1776, %v1776
      %v1905 = vpack.c.b16 %v1777, %v1777
      %v1906 = vpack.c.b16 %v1778, %v1778
      %v1907 = vpack.c.b16 %v1779, %v1779
      %v1908 = vpack.c.b16 %v1780, %v1780
      %v1909 = vpack.c.b16 %v1781, %v1781
      %v1910 = vpack.c.b16 %v1782, %v1782
      %v1911 = vpack.c.b16 %v1783, %v1783
      %v1912 = vpack.c.b16 %v1784, %v1784
      %v1913 = vpack.c.b16 %v1785, %v1785
      %v1914 = vpack.c.b16 %v1786, %v1786
      %vm2043 = vcmask 125952
      %2044 = vst.msk [vmem:[%s182] sm:$0xf] %vm2043, %v1787
      %2045 = vst.msk [vmem:[%s182 + $0x4] sm:$0xf] %vm2043, %v1788
      %2046 = vst.msk [vmem:[%s182 + $0x8] sm:$0xf] %vm2043, %v1789
      %2047 = vst.msk [vmem:[%s182 + $0xc] sm:$0xf] %vm2043, %v1790
      %2048 = vst.msk [vmem:[%s182 + $0x10] sm:$0xf] %vm2043, %v1791
      %2049 = vst.msk [vmem:[%s182 + $0x14] sm:$0xf] %vm2043, %v1792
      %2050 = vst.msk [vmem:[%s182 + $0x18] sm:$0xf] %vm2043, %v1793
      %2051 = vst.msk [vmem:[%s182 + $0x1c] sm:$0xf] %vm2043, %v1794
      %2052 = vst.msk [vmem:[%s182 + $0x20] sm:$0xf] %vm2043, %v1795
      %2053 = vst.msk [vmem:[%s182 + $0x24] sm:$0xf] %vm2043, %v1796
      %2054 = vst.msk [vmem:[%s182 + $0x28] sm:$0xf] %vm2043, %v1797
      %2055 = vst.msk [vmem:[%s182 + $0x2c] sm:$0xf] %vm2043, %v1798
      %2056 = vst.msk [vmem:[%s182 + $0x30] sm:$0xf] %vm2043, %v1799
      %2057 = vst.msk [vmem:[%s182 + $0x34] sm:$0xf] %vm2043, %v1800
      %2058 = vst.msk [vmem:[%s182 + $0x38] sm:$0xf] %vm2043, %v1801
      %2059 = vst.msk [vmem:[%s182 + $0x3c] sm:$0xf] %vm2043, %v1802
      %2060 = vst.msk [vmem:[%s182 + $0x40] sm:$0xf] %vm2043, %v1803
      %2061 = vst.msk [vmem:[%s182 + $0x44] sm:$0xf] %vm2043, %v1804
      %2062 = vst.msk [vmem:[%s182 + $0x48] sm:$0xf] %vm2043, %v1805
      %2063 = vst.msk [vmem:[%s182 + $0x4c] sm:$0xf] %vm2043, %v1806
      %2064 = vst.msk [vmem:[%s182 + $0x50] sm:$0xf] %vm2043, %v1807
      %2065 = vst.msk [vmem:[%s182 + $0x54] sm:$0xf] %vm2043, %v1808
      %2066 = vst.msk [vmem:[%s182 + $0x58] sm:$0xf] %vm2043, %v1809
      %2067 = vst.msk [vmem:[%s182 + $0x5c] sm:$0xf] %vm2043, %v1810
      %2068 = vst.msk [vmem:[%s182 + $0x60] sm:$0xf] %vm2043, %v1811
      %2069 = vst.msk [vmem:[%s182 + $0x64] sm:$0xf] %vm2043, %v1812
      %2070 = vst.msk [vmem:[%s182 + $0x68] sm:$0xf] %vm2043, %v1813
      %2071 = vst.msk [vmem:[%s182 + $0x6c] sm:$0xf] %vm2043, %v1814
      %2072 = vst.msk [vmem:[%s182 + $0x70] sm:$0xf] %vm2043, %v1815
      %2073 = vst.msk [vmem:[%s182 + $0x74] sm:$0xf] %vm2043, %v1816
      %2074 = vst.msk [vmem:[%s182 + $0x78] sm:$0xf] %vm2043, %v1817
      %2075 = vst.msk [vmem:[%s182 + $0x7c] sm:$0xf] %vm2043, %v1818
      %2076 = vst.msk [vmem:[%s182 + $0x80] sm:$0xf] %vm2043, %v1819
      %2077 = vst.msk [vmem:[%s182 + $0x84] sm:$0xf] %vm2043, %v1820
      %2078 = vst.msk [vmem:[%s182 + $0x88] sm:$0xf] %vm2043, %v1821
      %2079 = vst.msk [vmem:[%s182 + $0x8c] sm:$0xf] %vm2043, %v1822
      %2080 = vst.msk [vmem:[%s182 + $0x90] sm:$0xf] %vm2043, %v1823
      %2081 = vst.msk [vmem:[%s182 + $0x94] sm:$0xf] %vm2043, %v1824
      %2082 = vst.msk [vmem:[%s182 + $0x98] sm:$0xf] %vm2043, %v1825
      %2083 = vst.msk [vmem:[%s182 + $0x9c] sm:$0xf] %vm2043, %v1826
      %2084 = vst.msk [vmem:[%s182 + $0xa0] sm:$0xf] %vm2043, %v1827
      %2085 = vst.msk [vmem:[%s182 + $0xa4] sm:$0xf] %vm2043, %v1828
      %2086 = vst.msk [vmem:[%s182 + $0xa8] sm:$0xf] %vm2043, %v1829
      %2087 = vst.msk [vmem:[%s182 + $0xac] sm:$0xf] %vm2043, %v1830
      %2088 = vst.msk [vmem:[%s182 + $0xb0] sm:$0xf] %vm2043, %v1831
      %2089 = vst.msk [vmem:[%s182 + $0xb4] sm:$0xf] %vm2043, %v1832
      %2090 = vst.msk [vmem:[%s182 + $0xb8] sm:$0xf] %vm2043, %v1833
      %2091 = vst.msk [vmem:[%s182 + $0xbc] sm:$0xf] %vm2043, %v1834
      %2092 = vst.msk [vmem:[%s182 + $0xc0] sm:$0xf] %vm2043, %v1835
      %2093 = vst.msk [vmem:[%s182 + $0xc4] sm:$0xf] %vm2043, %v1836
      %2094 = vst.msk [vmem:[%s182 + $0xc8] sm:$0xf] %vm2043, %v1837
      %2095 = vst.msk [vmem:[%s182 + $0xcc] sm:$0xf] %vm2043, %v1838
      %2096 = vst.msk [vmem:[%s182 + $0xd0] sm:$0xf] %vm2043, %v1839
      %2097 = vst.msk [vmem:[%s182 + $0xd4] sm:$0xf] %vm2043, %v1840
      %2098 = vst.msk [vmem:[%s182 + $0xd8] sm:$0xf] %vm2043, %v1841
      %2099 = vst.msk [vmem:[%s182 + $0xdc] sm:$0xf] %vm2043, %v1842
      %2100 = vst.msk [vmem:[%s182 + $0xe0] sm:$0xf] %vm2043, %v1843
      %2101 = vst.msk [vmem:[%s182 + $0xe4] sm:$0xf] %vm2043, %v1844
      %2102 = vst.msk [vmem:[%s182 + $0xe8] sm:$0xf] %vm2043, %v1845
      %2103 = vst.msk [vmem:[%s182 + $0xec] sm:$0xf] %vm2043, %v1846
      %2104 = vst.msk [vmem:[%s182 + $0xf0] sm:$0xf] %vm2043, %v1847
      %2105 = vst.msk [vmem:[%s182 + $0xf4] sm:$0xf] %vm2043, %v1848
      %2106 = vst.msk [vmem:[%s182 + $0xf8] sm:$0xf] %vm2043, %v1849
      %2107 = vst.msk [vmem:[%s182 + $0xfc] sm:$0xf] %vm2043, %v1850
      %2108 = vst.msk [vmem:[%s182 + $0x100] sm:$0xf] %vm2043, %v1851
      %2109 = vst.msk [vmem:[%s182 + $0x104] sm:$0xf] %vm2043, %v1852
      %2110 = vst.msk [vmem:[%s182 + $0x108] sm:$0xf] %vm2043, %v1853
      %2111 = vst.msk [vmem:[%s182 + $0x10c] sm:$0xf] %vm2043, %v1854
      %2112 = vst.msk [vmem:[%s182 + $0x110] sm:$0xf] %vm2043, %v1855
      %2113 = vst.msk [vmem:[%s182 + $0x114] sm:$0xf] %vm2043, %v1856
      %2114 = vst.msk [vmem:[%s182 + $0x118] sm:$0xf] %vm2043, %v1857
      %2115 = vst.msk [vmem:[%s182 + $0x11c] sm:$0xf] %vm2043, %v1858
      %2116 = vst.msk [vmem:[%s182 + $0x120] sm:$0xf] %vm2043, %v1859
      %2117 = vst.msk [vmem:[%s182 + $0x124] sm:$0xf] %vm2043, %v1860
      %2118 = vst.msk [vmem:[%s182 + $0x128] sm:$0xf] %vm2043, %v1861
      %2119 = vst.msk [vmem:[%s182 + $0x12c] sm:$0xf] %vm2043, %v1862
      %2120 = vst.msk [vmem:[%s182 + $0x130] sm:$0xf] %vm2043, %v1863
      %2121 = vst.msk [vmem:[%s182 + $0x134] sm:$0xf] %vm2043, %v1864
      %2122 = vst.msk [vmem:[%s182 + $0x138] sm:$0xf] %vm2043, %v1865
      %2123 = vst.msk [vmem:[%s182 + $0x13c] sm:$0xf] %vm2043, %v1866
      %2124 = vst.msk [vmem:[%s182 + $0x140] sm:$0xf] %vm2043, %v1867
      %2125 = vst.msk [vmem:[%s182 + $0x144] sm:$0xf] %vm2043, %v1868
      %2126 = vst.msk [vmem:[%s182 + $0x148] sm:$0xf] %vm2043, %v1869
      %2127 = vst.msk [vmem:[%s182 + $0x14c] sm:$0xf] %vm2043, %v1870
      %2128 = vst.msk [vmem:[%s182 + $0x150] sm:$0xf] %vm2043, %v1871
      %2129 = vst.msk [vmem:[%s182 + $0x154] sm:$0xf] %vm2043, %v1872
      %2130 = vst.msk [vmem:[%s182 + $0x158] sm:$0xf] %vm2043, %v1873
      %2131 = vst.msk [vmem:[%s182 + $0x15c] sm:$0xf] %vm2043, %v1874
      %2132 = vst.msk [vmem:[%s182 + $0x160] sm:$0xf] %vm2043, %v1875
      %2133 = vst.msk [vmem:[%s182 + $0x164] sm:$0xf] %vm2043, %v1876
      %2134 = vst.msk [vmem:[%s182 + $0x168] sm:$0xf] %vm2043, %v1877
      %2135 = vst.msk [vmem:[%s182 + $0x16c] sm:$0xf] %vm2043, %v1878
      %2136 = vst.msk [vmem:[%s182 + $0x170] sm:$0xf] %vm2043, %v1879
      %2137 = vst.msk [vmem:[%s182 + $0x174] sm:$0xf] %vm2043, %v1880
      %2138 = vst.msk [vmem:[%s182 + $0x178] sm:$0xf] %vm2043, %v1881
      %2139 = vst.msk [vmem:[%s182 + $0x17c] sm:$0xf] %vm2043, %v1882
      %2140 = vst.msk [vmem:[%s182 + $0x180] sm:$0xf] %vm2043, %v1883
      %2141 = vst.msk [vmem:[%s182 + $0x184] sm:$0xf] %vm2043, %v1884
      %2142 = vst.msk [vmem:[%s182 + $0x188] sm:$0xf] %vm2043, %v1885
      %2143 = vst.msk [vmem:[%s182 + $0x18c] sm:$0xf] %vm2043, %v1886
      %2144 = vst.msk [vmem:[%s182 + $0x190] sm:$0xf] %vm2043, %v1887
      %2145 = vst.msk [vmem:[%s182 + $0x194] sm:$0xf] %vm2043, %v1888
      %2146 = vst.msk [vmem:[%s182 + $0x198] sm:$0xf] %vm2043, %v1889
      %2147 = vst.msk [vmem:[%s182 + $0x19c] sm:$0xf] %vm2043, %v1890
      %2148 = vst.msk [vmem:[%s182 + $0x1a0] sm:$0xf] %vm2043, %v1891
      %2149 = vst.msk [vmem:[%s182 + $0x1a4] sm:$0xf] %vm2043, %v1892
      %2150 = vst.msk [vmem:[%s182 + $0x1a8] sm:$0xf] %vm2043, %v1893
      %2151 = vst.msk [vmem:[%s182 + $0x1ac] sm:$0xf] %vm2043, %v1894
      %2152 = vst.msk [vmem:[%s182 + $0x1b0] sm:$0xf] %vm2043, %v1895
      %2153 = vst.msk [vmem:[%s182 + $0x1b4] sm:$0xf] %vm2043, %v1896
      %2154 = vst.msk [vmem:[%s182 + $0x1b8] sm:$0xf] %vm2043, %v1897
      %2155 = vst.msk [vmem:[%s182 + $0x1bc] sm:$0xf] %vm2043, %v1898
      %2156 = vst.msk [vmem:[%s182 + $0x1c0] sm:$0xf] %vm2043, %v1899
      %2157 = vst.msk [vmem:[%s182 + $0x1c4] sm:$0xf] %vm2043, %v1900
      %2158 = vst.msk [vmem:[%s182 + $0x1c8] sm:$0xf] %vm2043, %v1901
      %2159 = vst.msk [vmem:[%s182 + $0x1cc] sm:$0xf] %vm2043, %v1902
      %2160 = vst.msk [vmem:[%s182 + $0x1d0] sm:$0xf] %vm2043, %v1903
      %2161 = vst.msk [vmem:[%s182 + $0x1d4] sm:$0xf] %vm2043, %v1904
      %2162 = vst.msk [vmem:[%s182 + $0x1d8] sm:$0xf] %vm2043, %v1905
      %2163 = vst.msk [vmem:[%s182 + $0x1dc] sm:$0xf] %vm2043, %v1906
      %2164 = vst.msk [vmem:[%s182 + $0x1e0] sm:$0xf] %vm2043, %v1907
      %2165 = vst.msk [vmem:[%s182 + $0x1e4] sm:$0xf] %vm2043, %v1908
      %2166 = vst.msk [vmem:[%s182 + $0x1e8] sm:$0xf] %vm2043, %v1909
      %2167 = vst.msk [vmem:[%s182 + $0x1ec] sm:$0xf] %vm2043, %v1910
      %2168 = vst.msk [vmem:[%s182 + $0x1f0] sm:$0xf] %vm2043, %v1911
      %2169 = vst.msk [vmem:[%s182 + $0x1f4] sm:$0xf] %vm2043, %v1912
      %2170 = vst.msk [vmem:[%s182 + $0x1f8] sm:$0xf] %vm2043, %v1913
      %2171 = vst.msk [vmem:[%s182 + $0x1fc] sm:$0xf] %vm2043, %v1914
      %s2172 = smul.u32 128, %s17
      %p2173 = scmp.lt.s32.totalorder %s2172, 255
      %s2174 = scalar_select %p2173, %s2172, 255
      %p2175 = scmp.lt.s32.totalorder %s18, 0
      %s2176 = scalar_select %p2175, %s18, 0
      %s2177 = sadd.s32 %s2176, %s2174
      %s2178 = smul.addr %s2177, 4
      %s2179 = scalar_lea.vmem %s2, %s2178
      // Predicated region
      $region29: #{conv_merge_forward.3} parent=27 // pred_check
        %p2180 = pneg %p97
      $region30: #{conv_merge_forward.3} parent=27 // pred_check_branch
        %2182 = sbr.rel (%p2180) target = $region32
      $region31: #{conv_merge_forward.3} parent=27 // pred_region
        %s2183 = smul.u32 128, %s17
      $region32: #{conv_merge_forward.3} parent=27 // pred_fallthru
        _
    $region28: #{conv_merge_forward.3} parent=5 // pred_fallthru
      _
    %p2184 = scmp.le.s32.totalorder 2, %s8
    // Predicated region
    $region33: #{conv_merge_forward.3} parent=5 // pred_check
      %p2185 = pneg %p2184
    $region34: #{conv_merge_forward.3} parent=5 // pred_check_branch
      %2187 = sbr.rel (%p2185) target = $region36
    $region35: #{conv_merge_forward.3} parent=5 // pred_region
      %s2188 = ssub.s32 %s8, 2
      // Predicated region
      $region37: #{conv_merge_forward.3} parent=35 // pred_check
        %p2189 = pneg %p103
      $region38: #{conv_merge_forward.3} parent=35 // pred_check_branch
        %2191 = sbr.rel (%p2189) target = $region40
      $region39: #{conv_merge_forward.3} parent=35 // pred_region
        %s2192 = smul.u32 128, %s19
        %p2193 = scmp.lt.s32.totalorder %s2192, 255
        %s2194 = scalar_select %p2193, %s2192, 255
        %p2195 = scmp.lt.s32.totalorder %s20, 0
        %s2196 = scalar_select %p2195, %s20, 0
        %s2197 = sadd.s32 %s2196, %s2194
        %s2198 = smul.addr %s2197, 4
        %s2199 = scalar_lea.vmem %s2, %s2198
      $region40: #{conv_merge_forward.3} parent=35 // pred_fallthru
        _
    $region36: #{conv_merge_forward.3} parent=5 // pred_fallthru
      _
  $region6: #{conv_merge_forward.3} parent=0 // loop_footer
    %s12 = sadd.s32 1, %s8
  $region7: #{conv_merge_forward.3} parent=0 // loop_footer_branch
    %7 = sbr.rel target = $region3
  $region8: #{conv_merge_forward.3} parent=0 // loop_exit
    _

// kernel: conv_merge_forward.5
$region0: #{conv_merge_forward.5}
  #allocation0 [shape = 'u32[]', space=smem, size = 0x4, offset = 0x4, fixed_abs, tag = 'smem constant byte address 0x4 - core index']
  #allocation1 [shape = 'u32[144,128]{1,0:T(1,128)}', space=vmem, size = 0x12000, scoped, tag = 'internal scratch']
  %s0 = inlined_call_operand.vmem [shape: bf16[2048,64], index: 0, kind: input, shape index: {}]
  %s1 = inlined_call_operand.vmem [shape: bf16[2048,16], index: 1, kind: input, shape index: {}]
  %s2 = inlined_call_operand.vmem [shape: bf16[64,64], index: 2, kind: input, shape index: {}]
  %s3 = inlined_call_operand.vmem [shape: bf16[16,64], index: 3, kind: input, shape index: {}]
  %s4 = inlined_call_operand.hbm [shape: f32[2048,64], index: 4, kind: output, shape index: {}]
  %s5 = sld [smem:[#allocation0]]
  $region49: #{conv_merge_forward.5} parent=0
    _
  %s7 = ssub.s32 1, %s5
  %s8 = scalar_select 0, %s7, %s5
  $region1: #{conv_merge_forward.5} parent=0
    #allocation2 [shape = 'u8[1048576]{0}', space=vmem, size = 0x100000, scoped, tag = 'output window, operand 0']
    #allocation3 [shape = 's32[2]{0}', space=sflag, size = 0x8, scoped, tag = 'scoped memory for conv_merge_forward.5']
    %9 = vsyncpa [#allocation3], 0
    %s10 = scalar_lea.sflag [#allocation3], 1
    %11 = vsyncpa %s10, 0
    loop: start=0, step=1, limit=4
    $region2: #{conv_merge_forward.5} parent=1 // loop_pre_header
      _
    $region3: #{conv_merge_forward.5} parent=1 // loop_header
      %s13 = sphi 0, %s17
      %p14 = scmp.ge.s32.totalorder %s13, 4
      %s20 = sphi 0, %s32
      %s21 = sphi 0, %s28
      %s22 = sphi 0, %s20
      %s23 = sphi 0, %s21
      %s24 = sphi 0, %s22
      %s25 = sphi 0, %s23
      %s35 = sphi 0, %s37
      %s38 = sphi 0, %s35
      %s39 = sphi 0, %s38
      %s55 = sphi 0, %s39
      %s61 = sphi 0, %s63
      %s64 = sphi 0, %s61
      %s65 = sphi 0, %s64
      %s81 = sphi 0, %s65
      %s87 = sphi 0, %s89
      %s90 = sphi 0, %s87
      %s91 = sphi 0, %s90
      %s107 = sphi 0, %s91
      %s113 = sphi 0, %s115
      %s116 = sphi 0, %s113
      %s117 = sphi 0, %s116
      %s133 = sphi 0, %s117
      %s141 = sphi 0, %s143
      %s144 = sphi 0, %s141
      %s145 = sphi 0, %s144
      %s161 = sphi 0, %s145
    $region4: #{conv_merge_forward.5} parent=1 // loop_header_branch
      %16 = sbr.rel (%p14) target = $region8
    $region5: #{conv_merge_forward.5} parent=1 // loop_body
      %s18 = ssub.s32 %s13, 1
      %s19 = ssub.s32 %s13, 2
      %s26 = sadd.s32 1, %s21
      %p27 = scmp.ge.s32.totalorder %s26, 1
      %s28 = scalar_select %p27, 0, %s26
      %s29 = sadd.s32 1, %s20
      %s30 = scalar_select %p27, %s29, %s20
      %p31 = scmp.ge.s32.totalorder %s30, 2
      %s32 = scalar_select %p31, 0, %s30
      %s33 = ssub.s32 %s20, %s32
      %p34 = scmp.eq.s32.totalorder %s33, 0
      %s36 = sadd.s32 %s35, 1
      %s37 = scalar_select %p34, %s35, %s36
      %p40 = pneg %p34
      %p41 = scmp.eq.s32.totalorder %s13, 1
      %p42 = por %p40, %p41
      %p43 = scmp.ne.s32.totalorder %s35, %s38
      %p44 = scmp.eq.s32.totalorder %s13, 0
      %p45 = por %p43, %p44
      %p46 = scmp.ne.s32.totalorder %s35, %s38
      %p47 = scmp.eq.s32.totalorder %s18, 1
      %p48 = por %p46, %p47
      %p49 = scmp.ne.s32.totalorder %s38, %s39
      %p50 = scmp.eq.s32.totalorder %s18, 0
      %p51 = por %p49, %p50
      %p52 = scmp.ne.s32.totalorder %s38, %s39
      %p53 = scmp.eq.s32.totalorder %s19, 1
      %p54 = por %p52, %p53
      %p56 = scmp.ne.s32.totalorder %s39, %s55
      %p57 = scmp.eq.s32.totalorder %s19, 0
      %p58 = por %p56, %p57
      %s59 = ssub.s32 %s20, %s32
      %p60 = scmp.eq.s32.totalorder %s59, 0
      %s62 = sadd.s32 %s61, 1
      %s63 = scalar_select %p60, %s61, %s62
      %p66 = pneg %p60
      %p67 = scmp.eq.s32.totalorder %s13, 1
      %p68 = por %p66, %p67
      %p69 = scmp.ne.s32.totalorder %s61, %s64
      %p70 = scmp.eq.s32.totalorder %s13, 0
      %p71 = por %p69, %p70
      %p72 = scmp.ne.s32.totalorder %s61, %s64
      %p73 = scmp.eq.s32.totalorder %s18, 1
      %p74 = por %p72, %p73
      %p75 = scmp.ne.s32.totalorder %s64, %s65
      %p76 = scmp.eq.s32.totalorder %s18, 0
      %p77 = por %p75, %p76
      %p78 = scmp.ne.s32.totalorder %s64, %s65
      %p79 = scmp.eq.s32.totalorder %s19, 1
      %p80 = por %p78, %p79
      %p82 = scmp.ne.s32.totalorder %s65, %s81
      %p83 = scmp.eq.s32.totalorder %s19, 0
      %p84 = por %p82, %p83
      %s85 = ssub.s32 %s21, %s28
      %p86 = scmp.eq.s32.totalorder %s85, 0
      %s88 = sadd.s32 %s87, 1
      %s89 = scalar_select %p86, %s87, %s88
      %p92 = pneg %p86
      %p93 = scmp.eq.s32.totalorder %s13, 1
      %p94 = por %p92, %p93
      %p95 = scmp.ne.s32.totalorder %s87, %s90
      %p96 = scmp.eq.s32.totalorder %s13, 0
      %p97 = por %p95, %p96
      %p98 = scmp.ne.s32.totalorder %s87, %s90
      %p99 = scmp.eq.s32.totalorder %s18, 1
      %p100 = por %p98, %p99
      %p101 = scmp.ne.s32.totalorder %s90, %s91
      %p102 = scmp.eq.s32.totalorder %s18, 0
      %p103 = por %p101, %p102
      %p104 = scmp.ne.s32.totalorder %s90, %s91
      %p105 = scmp.eq.s32.totalorder %s19, 1
      %p106 = por %p104, %p105
      %p108 = scmp.ne.s32.totalorder %s91, %s107
      %p109 = scmp.eq.s32.totalorder %s19, 0
      %p110 = por %p108, %p109
      %s111 = ssub.s32 %s21, %s28
      %p112 = scmp.eq.s32.totalorder %s111, 0
      %s114 = sadd.s32 %s113, 1
      %s115 = scalar_select %p112, %s113, %s114
      %p118 = pneg %p112
      %p119 = scmp.eq.s32.totalorder %s13, 1
      %p120 = por %p118, %p119
      %p121 = scmp.ne.s32.totalorder %s113, %s116
      %p122 = scmp.eq.s32.totalorder %s13, 0
      %p123 = por %p121, %p122
      %p124 = scmp.ne.s32.totalorder %s113, %s116
      %p125 = scmp.eq.s32.totalorder %s18, 1
      %p126 = por %p124, %p125
      %p127 = scmp.ne.s32.totalorder %s116, %s117
      %p128 = scmp.eq.s32.totalorder %s18, 0
      %p129 = por %p127, %p128
      %p130 = scmp.ne.s32.totalorder %s116, %s117
      %p131 = scmp.eq.s32.totalorder %s19, 1
      %p132 = por %p130, %p131
      %p134 = scmp.ne.s32.totalorder %s117, %s133
      %p135 = scmp.eq.s32.totalorder %s19, 0
      %p136 = por %p134, %p135
      %s137 = ssub.s32 %s20, %s32
      %s138 = ssub.s32 %s21, %s28
      %s139 = sor.u32 %s137, %s138
      %p140 = scmp.eq.s32.totalorder %s139, 0
      %s142 = sadd.s32 %s141, 1
      %s143 = scalar_select %p140, %s141, %s142
      %p146 = pneg %p140
      %p147 = scmp.eq.s32.totalorder %s13, 1
      %p148 = por %p146, %p147
      %p149 = scmp.ne.s32.totalorder %s141, %s144
      %p150 = scmp.eq.s32.totalorder %s13, 0
      %p151 = por %p149, %p150
      %p152 = scmp.ne.s32.totalorder %s141, %s144
      %p153 = scmp.eq.s32.totalorder %s18, 1
      %p154 = por %p152, %p153
      %p155 = scmp.ne.s32.totalorder %s144, %s145
      %p156 = scmp.eq.s32.totalorder %s18, 0
      %p157 = por %p155, %p156
      %p158 = scmp.ne.s32.totalorder %s144, %s145
      %p159 = scmp.eq.s32.totalorder %s19, 1
      %p160 = por %p158, %p159
      %p162 = scmp.ne.s32.totalorder %s145, %s161
      %p163 = scmp.eq.s32.totalorder %s19, 0
      %p164 = por %p162, %p163
      %p165 = scmp.le.s32.totalorder 1, %s13
      %p166 = scmp.lt.s32.totalorder %s13, 3
      %p167 = pnand %p165, %p166
      %p168 = pneg %p167
      // Predicated region
      $region9: #{conv_merge_forward.5} parent=5 // pred_check
        _
      $region10: #{conv_merge_forward.5} parent=5 // pred_check_branch
        %170 = sbr.rel (%p167) target = $region12
      $region11: #{conv_merge_forward.5} parent=5 // pred_region
        %s171 = ssub.s32 %s13, 1
        // Predicated region
        $region13: #{conv_merge_forward.5} parent=11 // pred_check
          %p172 = pneg %p103
        $region14: #{conv_merge_forward.5} parent=11 // pred_check_branch
          %174 = sbr.rel (%p172) target = $region16
        $region15: #{conv_merge_forward.5} parent=11 // pred_region
          %p175 = scmp.lt.s32.totalorder %s23, 0
          %s176 = scalar_select %p175, %s23, 0
          %s177 = smul.addr %s176, 4
          %s178 = scalar_lea.vmem %s2, %s177
        $region16: #{conv_merge_forward.5} parent=11 // pred_fallthru
          _
        // Predicated region
        $region17: #{conv_merge_forward.5} parent=11 // pred_check
          %p179 = pneg %p129
        $region18: #{conv_merge_forward.5} parent=11 // pred_check_branch
          %181 = sbr.rel (%p179) target = $region20
        $region19: #{conv_merge_forward.5} parent=11 // pred_region
          %p182 = scmp.lt.s32.totalorder %s23, 0
          %s183 = scalar_select %p182, %s23, 0
          %s184 = smul.addr %s183, 4
          %s185 = scalar_lea.vmem %s3, %s184
        $region20: #{conv_merge_forward.5} parent=11 // pred_fallthru
          _
      $region12: #{conv_merge_forward.5} parent=5 // pred_fallthru
        _
      %p186 = scmp.lt.s32.totalorder %s13, 2
      // Predicated region
      $region21: #{conv_merge_forward.5} parent=5 // pred_check
        %p187 = pneg %p186
      $region22: #{conv_merge_forward.5} parent=5 // pred_check_branch
        %189 = sbr.rel (%p187) target = $region24
      $region23: #{conv_merge_forward.5} parent=5 // pred_region
        // Predicated region
        $region25: #{conv_merge_forward.5} parent=23 // pred_check
          %p190 = pneg %p45
        $region26: #{conv_merge_forward.5} parent=23 // pred_check_branch
          %192 = sbr.rel (%p190) target = $region28
        $region27: #{conv_merge_forward.5} parent=23 // pred_region
          %s193 = smul.u32 128, %s20
          %p194 = scmp.lt.s32.totalorder %s193, 255
          %s195 = scalar_select %p194, %s193, 255
          %s196 = smul.addr %s195, 4
          %s197 = scalar_lea.vmem %s0, %s196
          %s198 = smul.u32 128, %s20
        $region28: #{conv_merge_forward.5} parent=23 // pred_fallthru
          _
        // Predicated region
        $region29: #{conv_merge_forward.5} parent=23 // pred_check
          %p199 = pneg %p71
        $region30: #{conv_merge_forward.5} parent=23 // pred_check_branch
          %201 = sbr.rel (%p199) target = $region32
        $region31: #{conv_merge_forward.5} parent=23 // pred_region
          %s202 = smul.u32 128, %s20
          %p203 = scmp.lt.s32.totalorder %s202, 255
          %s204 = scalar_select %p203, %s202, 255
          %s205 = smul.addr %s204, 4
          %s206 = scalar_lea.vmem %s1, %s205
          %s207 = smul.u32 128, %s20
        $region32: #{conv_merge_forward.5} parent=23 // pred_fallthru
          _
      $region24: #{conv_merge_forward.5} parent=5 // pred_fallthru
        _
      %p208 = scmp.le.s32.totalorder 1, %s13
      %p209 = scmp.lt.s32.totalorder %s13, 3
      %p210 = pnand %p208, %p209
      %p211 = pneg %p210
      // Predicated region
      $region33: #{conv_merge_forward.5} parent=5 // pred_check
        _
      $region34: #{conv_merge_forward.5} parent=5 // pred_check_branch
        %213 = sbr.rel (%p210) target = $region36
      $region35: #{conv_merge_forward.5} parent=5 // pred_region
        %s214 = ssub.s32 %s13, 1
        %s215 = smul.u32 128, %s22
        %p216 = scmp.lt.s32.totalorder %s215, 255
        %s217 = scalar_select %p216, %s215, 255
        %s218 = smul.addr %s217, 4
        %s219 = scalar_lea.vmem %s0, %s218
        %p220 = pneg %p51
        %p221 = pneg %p48
        %s222 = smul.u32 128, %s22
        %p223 = scmp.lt.s32.totalorder %s222, 255
        %s224 = scalar_select %p223, %s222, 255
        %s225 = smul.addr %s224, 4
        %s226 = scalar_lea.vmem %s1, %s225
        %p227 = pneg %p77
        %p228 = pneg %p74
        %p229 = scmp.lt.s32.totalorder %s23, 0
        %s230 = scalar_select %p229, %s23, 0
        %s231 = smul.addr %s230, 4
        %s232 = scalar_lea.vmem %s2, %s231
        %p233 = pneg %p103
        %p234 = pneg %p100
        %p235 = scmp.lt.s32.totalorder %s23, 0
        %s236 = scalar_select %p235, %s23, 0
        %s237 = smul.addr %s236, 4
        %s238 = scalar_lea.vmem %s3, %s237
        %p239 = pneg %p129
        %p240 = pneg %p126
        %p241 = pneg %p157
        %p242 = pneg %p154
        %s243 = sand.u32 %s144, 1
        %s244 = scalar_lea.sflag [#allocation3], %s243
        %s245 = sand.u32 %s144, 1
        %s246 = smul.addr %s245, 1024
        %s247 = scalar_lea.vmem [#allocation2], %s246
        %s248 = smul.u32 128, %s22
        %p249 = scmp.lt.s32.totalorder %s248, 255
        %s250 = scalar_select %p249, %s248, 255
        %s251 = smul.addr %s250, 4
        %s252 = scalar_lea.vmem %s0, %s251
        %s253 = smul.u32 128, %s22
        %s254 = smul.u32 128, %s22
        %p255 = scmp.lt.s32.totalorder %s254, 255
        %s256 = scalar_select %p255, %s254, 255
        %s257 = smul.addr %s256, 4
        %s258 = scalar_lea.vmem %s1, %s257
        %s259 = smul.u32 128, %s22
        %p260 = scmp.lt.s32.totalorder %s23, 0
        %s261 = scalar_select %p260, %s23, 0
        %s262 = smul.addr %s261, 4
        %s263 = scalar_lea.vmem %s2, %s262
        %p264 = scmp.lt.s32.totalorder %s23, 0
        %s265 = scalar_select %p264, %s23, 0
        %s266 = smul.addr %s265, 4
        %s267 = scalar_lea.vmem %s3, %s266
        %s268 = smul.u32 128, %s22
        %v270 = vld [vmem:[%s252] sm:$0xf]
        %v271 = vld [vmem:[%s252 + $0x4] sm:$0xf]
        %v272 = vld [vmem:[%s252 + $0x8] sm:$0xf]
        %v273 = vld [vmem:[%s252 + $0xc] sm:$0xf]
        %v274 = vld [vmem:[%s252 + $0x10] sm:$0xf]
        %v275 = vld [vmem:[%s252 + $0x14] sm:$0xf]
        %v276 = vld [vmem:[%s252 + $0x18] sm:$0xf]
        %v277 = vld [vmem:[%s252 + $0x1c] sm:$0xf]
        %v278 = vld [vmem:[%s252 + $0x20] sm:$0xf]
        %v279 = vld [vmem:[%s252 + $0x24] sm:$0xf]
        %v280 = vld [vmem:[%s252 + $0x28] sm:$0xf]
        %v281 = vld [vmem:[%s252 + $0x2c] sm:$0xf]
        %v282 = vld [vmem:[%s252 + $0x30] sm:$0xf]
        %v283 = vld [vmem:[%s252 + $0x34] sm:$0xf]
        %v284 = vld [vmem:[%s252 + $0x38] sm:$0xf]
        %v285 = vld [vmem:[%s252 + $0x3c] sm:$0xf]
        %v286 = vld [vmem:[%s252 + $0x40] sm:$0xf]
        %v287 = vld [vmem:[%s252 + $0x44] sm:$0xf]
        %v288 = vld [vmem:[%s252 + $0x48] sm:$0xf]
        %v289 = vld [vmem:[%s252 + $0x4c] sm:$0xf]
        %v290 = vld [vmem:[%s252 + $0x50] sm:$0xf]
        %v291 = vld [vmem:[%s252 + $0x54] sm:$0xf]
        %v292 = vld [vmem:[%s252 + $0x58] sm:$0xf]
        %v293 = vld [vmem:[%s252 + $0x5c] sm:$0xf]
        %v294 = vld [vmem:[%s252 + $0x60] sm:$0xf]
        %v295 = vld [vmem:[%s252 + $0x64] sm:$0xf]
        %v296 = vld [vmem:[%s252 + $0x68] sm:$0xf]
        %v297 = vld [vmem:[%s252 + $0x6c] sm:$0xf]
        %v298 = vld [vmem:[%s252 + $0x70] sm:$0xf]
        %v299 = vld [vmem:[%s252 + $0x74] sm:$0xf]
        %v300 = vld [vmem:[%s252 + $0x78] sm:$0xf]
        %v301 = vld [vmem:[%s252 + $0x7c] sm:$0xf]
        %v302 = vld [vmem:[%s252 + $0x80] sm:$0xf]
        %v303 = vld [vmem:[%s252 + $0x84] sm:$0xf]
        %v304 = vld [vmem:[%s252 + $0x88] sm:$0xf]
        %v305 = vld [vmem:[%s252 + $0x8c] sm:$0xf]
        %v306 = vld [vmem:[%s252 + $0x90] sm:$0xf]
        %v307 = vld [vmem:[%s252 + $0x94] sm:$0xf]
        %v308 = vld [vmem:[%s252 + $0x98] sm:$0xf]
        %v309 = vld [vmem:[%s252 + $0x9c] sm:$0xf]
        %v310 = vld [vmem:[%s252 + $0xa0] sm:$0xf]
        %v311 = vld [vmem:[%s252 + $0xa4] sm:$0xf]
        %v312 = vld [vmem:[%s252 + $0xa8] sm:$0xf]
        %v313 = vld [vmem:[%s252 + $0xac] sm:$0xf]
        %v314 = vld [vmem:[%s252 + $0xb0] sm:$0xf]
        %v315 = vld [vmem:[%s252 + $0xb4] sm:$0xf]
        %v316 = vld [vmem:[%s252 + $0xb8] sm:$0xf]
        %v317 = vld [vmem:[%s252 + $0xbc] sm:$0xf]
        %v318 = vld [vmem:[%s252 + $0xc0] sm:$0xf]
        %v319 = vld [vmem:[%s252 + $0xc4] sm:$0xf]
        %v320 = vld [vmem:[%s252 + $0xc8] sm:$0xf]
        %v321 = vld [vmem:[%s252 + $0xcc] sm:$0xf]
        %v322 = vld [vmem:[%s252 + $0xd0] sm:$0xf]
        %v323 = vld [vmem:[%s252 + $0xd4] sm:$0xf]
        %v324 = vld [vmem:[%s252 + $0xd8] sm:$0xf]
        %v325 = vld [vmem:[%s252 + $0xdc] sm:$0xf]
        %v326 = vld [vmem:[%s252 + $0xe0] sm:$0xf]
        %v327 = vld [vmem:[%s252 + $0xe4] sm:$0xf]
        %v328 = vld [vmem:[%s252 + $0xe8] sm:$0xf]
        %v329 = vld [vmem:[%s252 + $0xec] sm:$0xf]
        %v330 = vld [vmem:[%s252 + $0xf0] sm:$0xf]
        %v331 = vld [vmem:[%s252 + $0xf4] sm:$0xf]
        %v332 = vld [vmem:[%s252 + $0xf8] sm:$0xf]
        %v333 = vld [vmem:[%s252 + $0xfc] sm:$0xf]
        %v334 = vld [vmem:[%s252 + $0x100] sm:$0xf]
        %v335 = vld [vmem:[%s252 + $0x104] sm:$0xf]
        %v336 = vld [vmem:[%s252 + $0x108] sm:$0xf]
        %v337 = vld [vmem:[%s252 + $0x10c] sm:$0xf]
        %v338 = vld [vmem:[%s252 + $0x110] sm:$0xf]
        %v339 = vld [vmem:[%s252 + $0x114] sm:$0xf]
        %v340 = vld [vmem:[%s252 + $0x118] sm:$0xf]
        %v341 = vld [vmem:[%s252 + $0x11c] sm:$0xf]
        %v342 = vld [vmem:[%s252 + $0x120] sm:$0xf]
        %v343 = vld [vmem:[%s252 + $0x124] sm:$0xf]
        %v344 = vld [vmem:[%s252 + $0x128] sm:$0xf]
        %v345 = vld [vmem:[%s252 + $0x12c] sm:$0xf]
        %v346 = vld [vmem:[%s252 + $0x130] sm:$0xf]
        %v347 = vld [vmem:[%s252 + $0x134] sm:$0xf]
        %v348 = vld [vmem:[%s252 + $0x138] sm:$0xf]
        %v349 = vld [vmem:[%s252 + $0x13c] sm:$0xf]
        %v350 = vld [vmem:[%s252 + $0x140] sm:$0xf]
        %v351 = vld [vmem:[%s252 + $0x144] sm:$0xf]
        %v352 = vld [vmem:[%s252 + $0x148] sm:$0xf]
        %v353 = vld [vmem:[%s252 + $0x14c] sm:$0xf]
        %v354 = vld [vmem:[%s252 + $0x150] sm:$0xf]
        %v355 = vld [vmem:[%s252 + $0x154] sm:$0xf]
        %v356 = vld [vmem:[%s252 + $0x158] sm:$0xf]
        %v357 = vld [vmem:[%s252 + $0x15c] sm:$0xf]
        %v358 = vld [vmem:[%s252 + $0x160] sm:$0xf]
        %v359 = vld [vmem:[%s252 + $0x164] sm:$0xf]
        %v360 = vld [vmem:[%s252 + $0x168] sm:$0xf]
        %v361 = vld [vmem:[%s252 + $0x16c] sm:$0xf]
        %v362 = vld [vmem:[%s252 + $0x170] sm:$0xf]
        %v363 = vld [vmem:[%s252 + $0x174] sm:$0xf]
        %v364 = vld [vmem:[%s252 + $0x178] sm:$0xf]
        %v365 = vld [vmem:[%s252 + $0x17c] sm:$0xf]
        %v366 = vld [vmem:[%s252 + $0x180] sm:$0xf]
        %v367 = vld [vmem:[%s252 + $0x184] sm:$0xf]
        %v368 = vld [vmem:[%s252 + $0x188] sm:$0xf]
        %v369 = vld [vmem:[%s252 + $0x18c] sm:$0xf]
        %v370 = vld [vmem:[%s252 + $0x190] sm:$0xf]
        %v371 = vld [vmem:[%s252 + $0x194] sm:$0xf]
        %v372 = vld [vmem:[%s252 + $0x198] sm:$0xf]
        %v373 = vld [vmem:[%s252 + $0x19c] sm:$0xf]
        %v374 = vld [vmem:[%s252 + $0x1a0] sm:$0xf]
        %v375 = vld [vmem:[%s252 + $0x1a4] sm:$0xf]
        %v376 = vld [vmem:[%s252 + $0x1a8] sm:$0xf]
        %v377 = vld [vmem:[%s252 + $0x1ac] sm:$0xf]
        %v378 = vld [vmem:[%s252 + $0x1b0] sm:$0xf]
        %v379 = vld [vmem:[%s252 + $0x1b4] sm:$0xf]
        %v380 = vld [vmem:[%s252 + $0x1b8] sm:$0xf]
        %v381 = vld [vmem:[%s252 + $0x1bc] sm:$0xf]
        %v382 = vld [vmem:[%s252 + $0x1c0] sm:$0xf]
        %v383 = vld [vmem:[%s252 + $0x1c4] sm:$0xf]
        %v384 = vld [vmem:[%s252 + $0x1c8] sm:$0xf]
        %v385 = vld [vmem:[%s252 + $0x1cc] sm:$0xf]
        %v386 = vld [vmem:[%s252 + $0x1d0] sm:$0xf]
        %v387 = vld [vmem:[%s252 + $0x1d4] sm:$0xf]
        %v388 = vld [vmem:[%s252 + $0x1d8] sm:$0xf]
        %v389 = vld [vmem:[%s252 + $0x1dc] sm:$0xf]
        %v390 = vld [vmem:[%s252 + $0x1e0] sm:$0xf]
        %v391 = vld [vmem:[%s252 + $0x1e4] sm:$0xf]
        %v392 = vld [vmem:[%s252 + $0x1e8] sm:$0xf]
        %v393 = vld [vmem:[%s252 + $0x1ec] sm:$0xf]
        %v394 = vld [vmem:[%s252 + $0x1f0] sm:$0xf]
        %v395 = vld [vmem:[%s252 + $0x1f4] sm:$0xf]
        %v396 = vld [vmem:[%s252 + $0x1f8] sm:$0xf]
        %v397 = vld [vmem:[%s252 + $0x1fc] sm:$0xf]
        %v398 = vld [vmem:[%s263] sm:$0xf]
        %v399 = vld [vmem:[%s263 + $0x4] sm:$0xf]
        %v400 = vld [vmem:[%s263 + $0x8] sm:$0xf]
        %v401 = vld [vmem:[%s263 + $0xc] sm:$0xf]
        %v402 = vld [vmem:[%s263 + $0x10] sm:$0xf]
        %v403 = vld [vmem:[%s263 + $0x14] sm:$0xf]
        %v404 = vld [vmem:[%s263 + $0x18] sm:$0xf]
        %v405 = vld [vmem:[%s263 + $0x1c] sm:$0xf]
        %v406 = vld [vmem:[%s258] sm:$0xf]
        %v407 = vld [vmem:[%s258 + $0x4] sm:$0xf]
        %v408 = vld [vmem:[%s258 + $0x8] sm:$0xf]
        %v409 = vld [vmem:[%s258 + $0xc] sm:$0xf]
        %v410 = vld [vmem:[%s258 + $0x10] sm:$0xf]
        %v411 = vld [vmem:[%s258 + $0x14] sm:$0xf]
        %v412 = vld [vmem:[%s258 + $0x18] sm:$0xf]
        %v413 = vld [vmem:[%s258 + $0x1c] sm:$0xf]
        %v414 = vld [vmem:[%s258 + $0x20] sm:$0xf]
        %v415 = vld [vmem:[%s258 + $0x24] sm:$0xf]
        %v416 = vld [vmem:[%s258 + $0x28] sm:$0xf]
        %v417 = vld [vmem:[%s258 + $0x2c] sm:$0xf]
        %v418 = vld [vmem:[%s258 + $0x30] sm:$0xf]
        %v419 = vld [vmem:[%s258 + $0x34] sm:$0xf]
        %v420 = vld [vmem:[%s258 + $0x38] sm:$0xf]
        %v421 = vld [vmem:[%s258 + $0x3c] sm:$0xf]
        %v422 = vld [vmem:[%s258 + $0x40] sm:$0xf]
        %v423 = vld [vmem:[%s258 + $0x44] sm:$0xf]
        %v424 = vld [vmem:[%s258 + $0x48] sm:$0xf]
        %v425 = vld [vmem:[%s258 + $0x4c] sm:$0xf]
        %v426 = vld [vmem:[%s258 + $0x50] sm:$0xf]
        %v427 = vld [vmem:[%s258 + $0x54] sm:$0xf]
        %v428 = vld [vmem:[%s258 + $0x58] sm:$0xf]
        %v429 = vld [vmem:[%s258 + $0x5c] sm:$0xf]
        %v430 = vld [vmem:[%s258 + $0x60] sm:$0xf]
        %v431 = vld [vmem:[%s258 + $0x64] sm:$0xf]
        %v432 = vld [vmem:[%s258 + $0x68] sm:$0xf]
        %v433 = vld [vmem:[%s258 + $0x6c] sm:$0xf]
        %v434 = vld [vmem:[%s258 + $0x70] sm:$0xf]
        %v435 = vld [vmem:[%s258 + $0x74] sm:$0xf]
        %v436 = vld [vmem:[%s258 + $0x78] sm:$0xf]
        %v437 = vld [vmem:[%s258 + $0x7c] sm:$0xf]
        %v438 = vld [vmem:[%s258 + $0x80] sm:$0xf]
        %v439 = vld [vmem:[%s258 + $0x84] sm:$0xf]
        %v440 = vld [vmem:[%s258 + $0x88] sm:$0xf]
        %v441 = vld [vmem:[%s258 + $0x8c] sm:$0xf]
        %v442 = vld [vmem:[%s258 + $0x90] sm:$0xf]
        %v443 = vld [vmem:[%s258 + $0x94] sm:$0xf]
        %v444 = vld [vmem:[%s258 + $0x98] sm:$0xf]
        %v445 = vld [vmem:[%s258 + $0x9c] sm:$0xf]
        %v446 = vld [vmem:[%s258 + $0xa0] sm:$0xf]
        %v447 = vld [vmem:[%s258 + $0xa4] sm:$0xf]
        %v448 = vld [vmem:[%s258 + $0xa8] sm:$0xf]
        %v449 = vld [vmem:[%s258 + $0xac] sm:$0xf]
        %v450 = vld [vmem:[%s258 + $0xb0] sm:$0xf]
        %v451 = vld [vmem:[%s258 + $0xb4] sm:$0xf]
        %v452 = vld [vmem:[%s258 + $0xb8] sm:$0xf]
        %v453 = vld [vmem:[%s258 + $0xbc] sm:$0xf]
        %v454 = vld [vmem:[%s258 + $0xc0] sm:$0xf]
        %v455 = vld [vmem:[%s258 + $0xc4] sm:$0xf]
        %v456 = vld [vmem:[%s258 + $0xc8] sm:$0xf]
        %v457 = vld [vmem:[%s258 + $0xcc] sm:$0xf]
        %v458 = vld [vmem:[%s258 + $0xd0] sm:$0xf]
        %v459 = vld [vmem:[%s258 + $0xd4] sm:$0xf]
        %v460 = vld [vmem:[%s258 + $0xd8] sm:$0xf]
        %v461 = vld [vmem:[%s258 + $0xdc] sm:$0xf]
        %v462 = vld [vmem:[%s258 + $0xe0] sm:$0xf]
        %v463 = vld [vmem:[%s258 + $0xe4] sm:$0xf]
        %v464 = vld [vmem:[%s258 + $0xe8] sm:$0xf]
        %v465 = vld [vmem:[%s258 + $0xec] sm:$0xf]
        %v466 = vld [vmem:[%s258 + $0xf0] sm:$0xf]
        %v467 = vld [vmem:[%s258 + $0xf4] sm:$0xf]
        %v468 = vld [vmem:[%s258 + $0xf8] sm:$0xf]
        %v469 = vld [vmem:[%s258 + $0xfc] sm:$0xf]
        %v470 = vld [vmem:[%s258 + $0x100] sm:$0xf]
        %v471 = vld [vmem:[%s258 + $0x104] sm:$0xf]
        %v472 = vld [vmem:[%s258 + $0x108] sm:$0xf]
        %v473 = vld [vmem:[%s258 + $0x10c] sm:$0xf]
        %v474 = vld [vmem:[%s258 + $0x110] sm:$0xf]
        %v475 = vld [vmem:[%s258 + $0x114] sm:$0xf]
        %v476 = vld [vmem:[%s258 + $0x118] sm:$0xf]
        %v477 = vld [vmem:[%s258 + $0x11c] sm:$0xf]
        %v478 = vld [vmem:[%s258 + $0x120] sm:$0xf]
        %v479 = vld [vmem:[%s258 + $0x124] sm:$0xf]
        %v480 = vld [vmem:[%s258 + $0x128] sm:$0xf]
        %v481 = vld [vmem:[%s258 + $0x12c] sm:$0xf]
        %v482 = vld [vmem:[%s258 + $0x130] sm:$0xf]
        %v483 = vld [vmem:[%s258 + $0x134] sm:$0xf]
        %v484 = vld [vmem:[%s258 + $0x138] sm:$0xf]
        %v485 = vld [vmem:[%s258 + $0x13c] sm:$0xf]
        %v486 = vld [vmem:[%s258 + $0x140] sm:$0xf]
        %v487 = vld [vmem:[%s258 + $0x144] sm:$0xf]
        %v488 = vld [vmem:[%s258 + $0x148] sm:$0xf]
        %v489 = vld [vmem:[%s258 + $0x14c] sm:$0xf]
        %v490 = vld [vmem:[%s258 + $0x150] sm:$0xf]
        %v491 = vld [vmem:[%s258 + $0x154] sm:$0xf]
        %v492 = vld [vmem:[%s258 + $0x158] sm:$0xf]
        %v493 = vld [vmem:[%s258 + $0x15c] sm:$0xf]
        %v494 = vld [vmem:[%s258 + $0x160] sm:$0xf]
        %v495 = vld [vmem:[%s258 + $0x164] sm:$0xf]
        %v496 = vld [vmem:[%s258 + $0x168] sm:$0xf]
        %v497 = vld [vmem:[%s258 + $0x16c] sm:$0xf]
        %v498 = vld [vmem:[%s258 + $0x170] sm:$0xf]
        %v499 = vld [vmem:[%s258 + $0x174] sm:$0xf]
        %v500 = vld [vmem:[%s258 + $0x178] sm:$0xf]
        %v501 = vld [vmem:[%s258 + $0x17c] sm:$0xf]
        %v502 = vld [vmem:[%s258 + $0x180] sm:$0xf]
        %v503 = vld [vmem:[%s258 + $0x184] sm:$0xf]
        %v504 = vld [vmem:[%s258 + $0x188] sm:$0xf]
        %v505 = vld [vmem:[%s258 + $0x18c] sm:$0xf]
        %v506 = vld [vmem:[%s258 + $0x190] sm:$0xf]
        %v507 = vld [vmem:[%s258 + $0x194] sm:$0xf]
        %v508 = vld [vmem:[%s258 + $0x198] sm:$0xf]
        %v509 = vld [vmem:[%s258 + $0x19c] sm:$0xf]
        %v510 = vld [vmem:[%s258 + $0x1a0] sm:$0xf]
        %v511 = vld [vmem:[%s258 + $0x1a4] sm:$0xf]
        %v512 = vld [vmem:[%s258 + $0x1a8] sm:$0xf]
        %v513 = vld [vmem:[%s258 + $0x1ac] sm:$0xf]
        %v514 = vld [vmem:[%s258 + $0x1b0] sm:$0xf]
        %v515 = vld [vmem:[%s258 + $0x1b4] sm:$0xf]
        %v516 = vld [vmem:[%s258 + $0x1b8] sm:$0xf]
        %v517 = vld [vmem:[%s258 + $0x1bc] sm:$0xf]
        %v518 = vld [vmem:[%s258 + $0x1c0] sm:$0xf]
        %v519 = vld [vmem:[%s258 + $0x1c4] sm:$0xf]
        %v520 = vld [vmem:[%s258 + $0x1c8] sm:$0xf]
        %v521 = vld [vmem:[%s258 + $0x1cc] sm:$0xf]
        %v522 = vld [vmem:[%s258 + $0x1d0] sm:$0xf]
        %v523 = vld [vmem:[%s258 + $0x1d4] sm:$0xf]
        %v524 = vld [vmem:[%s258 + $0x1d8] sm:$0xf]
        %v525 = vld [vmem:[%s258 + $0x1dc] sm:$0xf]
        %v526 = vld [vmem:[%s258 + $0x1e0] sm:$0xf]
        %v527 = vld [vmem:[%s258 + $0x1e4] sm:$0xf]
        %v528 = vld [vmem:[%s258 + $0x1e8] sm:$0xf]
        %v529 = vld [vmem:[%s258 + $0x1ec] sm:$0xf]
        %v530 = vld [vmem:[%s258 + $0x1f0] sm:$0xf]
        %v531 = vld [vmem:[%s258 + $0x1f4] sm:$0xf]
        %v532 = vld [vmem:[%s258 + $0x1f8] sm:$0xf]
        %v533 = vld [vmem:[%s258 + $0x1fc] sm:$0xf]
        %v534 = vld [vmem:[%s267] sm:$0xf]
        %v535 = vld [vmem:[%s267 + $0x4] sm:$0xf]
        %v664 = vunpack.c.l.b16 %v406
        %v665 = vunpack.c.l.b16 %v407
        %v666 = vunpack.c.l.b16 %v408
        %v667 = vunpack.c.l.b16 %v409
        %v668 = vunpack.c.l.b16 %v410
        %v669 = vunpack.c.l.b16 %v411
        %v670 = vunpack.c.l.b16 %v412
        %v671 = vunpack.c.l.b16 %v413
        %v672 = vunpack.c.l.b16 %v414
        %v673 = vunpack.c.l.b16 %v415
        %v674 = vunpack.c.l.b16 %v416
        %v675 = vunpack.c.l.b16 %v417
        %v676 = vunpack.c.l.b16 %v418
        %v677 = vunpack.c.l.b16 %v419
        %v678 = vunpack.c.l.b16 %v420
        %v679 = vunpack.c.l.b16 %v421
        %v680 = vunpack.c.l.b16 %v422
        %v681 = vunpack.c.l.b16 %v423
        %v682 = vunpack.c.l.b16 %v424
        %v683 = vunpack.c.l.b16 %v425
        %v684 = vunpack.c.l.b16 %v426
        %v685 = vunpack.c.l.b16 %v427
        %v686 = vunpack.c.l.b16 %v428
        %v687 = vunpack.c.l.b16 %v429
        %v688 = vunpack.c.l.b16 %v430
        %v689 = vunpack.c.l.b16 %v431
        %v690 = vunpack.c.l.b16 %v432
        %v691 = vunpack.c.l.b16 %v433
        %v692 = vunpack.c.l.b16 %v434
        %v693 = vunpack.c.l.b16 %v435
        %v694 = vunpack.c.l.b16 %v436
        %v695 = vunpack.c.l.b16 %v437
        %v696 = vunpack.c.l.b16 %v438
        %v697 = vunpack.c.l.b16 %v439
        %v698 = vunpack.c.l.b16 %v440
        %v699 = vunpack.c.l.b16 %v441
        %v700 = vunpack.c.l.b16 %v442
        %v701 = vunpack.c.l.b16 %v443
        %v702 = vunpack.c.l.b16 %v444
        %v703 = vunpack.c.l.b16 %v445
        %v704 = vunpack.c.l.b16 %v446
        %v705 = vunpack.c.l.b16 %v447
        %v706 = vunpack.c.l.b16 %v448
        %v707 = vunpack.c.l.b16 %v449
        %v708 = vunpack.c.l.b16 %v450
        %v709 = vunpack.c.l.b16 %v451
        %v710 = vunpack.c.l.b16 %v452
        %v711 = vunpack.c.l.b16 %v453
        %v712 = vunpack.c.l.b16 %v454
        %v713 = vunpack.c.l.b16 %v455
        %v714 = vunpack.c.l.b16 %v456
        %v715 = vunpack.c.l.b16 %v457
        %v716 = vunpack.c.l.b16 %v458
        %v717 = vunpack.c.l.b16 %v459
        %v718 = vunpack.c.l.b16 %v460
        %v719 = vunpack.c.l.b16 %v461
        %v720 = vunpack.c.l.b16 %v462
        %v721 = vunpack.c.l.b16 %v463
        %v722 = vunpack.c.l.b16 %v464
        %v723 = vunpack.c.l.b16 %v465
        %v724 = vunpack.c.l.b16 %v466
        %v725 = vunpack.c.l.b16 %v467
        %v726 = vunpack.c.l.b16 %v468
        %v727 = vunpack.c.l.b16 %v469
        %v728 = vunpack.c.l.b16 %v470
        %v729 = vunpack.c.l.b16 %v471
        %v730 = vunpack.c.l.b16 %v472
        %v731 = vunpack.c.l.b16 %v473
        %v732 = vunpack.c.l.b16 %v474
        %v733 = vunpack.c.l.b16 %v475
        %v734 = vunpack.c.l.b16 %v476
        %v735 = vunpack.c.l.b16 %v477
        %v736 = vunpack.c.l.b16 %v478
        %v737 = vunpack.c.l.b16 %v479
        %v738 = vunpack.c.l.b16 %v480
        %v739 = vunpack.c.l.b16 %v481
        %v740 = vunpack.c.l.b16 %v482
        %v741 = vunpack.c.l.b16 %v483
        %v742 = vunpack.c.l.b16 %v484
        %v743 = vunpack.c.l.b16 %v485
        %v744 = vunpack.c.l.b16 %v486
        %v745 = vunpack.c.l.b16 %v487
        %v746 = vunpack.c.l.b16 %v488
        %v747 = vunpack.c.l.b16 %v489
        %v748 = vunpack.c.l.b16 %v490
        %v749 = vunpack.c.l.b16 %v491
        %v750 = vunpack.c.l.b16 %v492
        %v751 = vunpack.c.l.b16 %v493
        %v752 = vunpack.c.l.b16 %v494
        %v753 = vunpack.c.l.b16 %v495
        %v754 = vunpack.c.l.b16 %v496
        %v755 = vunpack.c.l.b16 %v497
        %v756 = vunpack.c.l.b16 %v498
        %v757 = vunpack.c.l.b16 %v499
        %v758 = vunpack.c.l.b16 %v500
        %v759 = vunpack.c.l.b16 %v501
        %v760 = vunpack.c.l.b16 %v502
        %v761 = vunpack.c.l.b16 %v503
        %v762 = vunpack.c.l.b16 %v504
        %v763 = vunpack.c.l.b16 %v505
        %v764 = vunpack.c.l.b16 %v506
        %v765 = vunpack.c.l.b16 %v507
        %v766 = vunpack.c.l.b16 %v508
        %v767 = vunpack.c.l.b16 %v509
        %v768 = vunpack.c.l.b16 %v510
        %v769 = vunpack.c.l.b16 %v511
        %v770 = vunpack.c.l.b16 %v512
        %v771 = vunpack.c.l.b16 %v513
        %v772 = vunpack.c.l.b16 %v514
        %v773 = vunpack.c.l.b16 %v515
        %v774 = vunpack.c.l.b16 %v516
        %v775 = vunpack.c.l.b16 %v517
        %v776 = vunpack.c.l.b16 %v518
        %v777 = vunpack.c.l.b16 %v519
        %v778 = vunpack.c.l.b16 %v520
        %v779 = vunpack.c.l.b16 %v521
        %v780 = vunpack.c.l.b16 %v522
        %v781 = vunpack.c.l.b16 %v523
        %v782 = vunpack.c.l.b16 %v524
        %v783 = vunpack.c.l.b16 %v525
        %v784 = vunpack.c.l.b16 %v526
        %v785 = vunpack.c.l.b16 %v527
        %v786 = vunpack.c.l.b16 %v528
        %v787 = vunpack.c.l.b16 %v529
        %v788 = vunpack.c.l.b16 %v530
        %v789 = vunpack.c.l.b16 %v531
        %v790 = vunpack.c.l.b16 %v532
        %v791 = vunpack.c.l.b16 %v533
        %v792 = vpack.c.b16 %v665, %v664
        %v793 = vpack.c.b16 %v667, %v666
        %v794 = vpack.c.b16 %v669, %v668
        %v795 = vpack.c.b16 %v671, %v670
        %v796 = vpack.c.b16 %v673, %v672
        %v797 = vpack.c.b16 %v675, %v674
        %v798 = vpack.c.b16 %v677, %v676
        %v799 = vpack.c.b16 %v679, %v678
        %v800 = vpack.c.b16 %v681, %v680
        %v801 = vpack.c.b16 %v683, %v682
        %v802 = vpack.c.b16 %v685, %v684
        %v803 = vpack.c.b16 %v687, %v686
        %v804 = vpack.c.b16 %v689, %v688
        %v805 = vpack.c.b16 %v691, %v690
        %v806 = vpack.c.b16 %v693, %v692
        %v807 = vpack.c.b16 %v695, %v694
        %v808 = vpack.c.b16 %v697, %v696
        %v809 = vpack.c.b16 %v699, %v698
        %v810 = vpack.c.b16 %v701, %v700
        %v811 = vpack.c.b16 %v703, %v702
        %v812 = vpack.c.b16 %v705, %v704
        %v813 = vpack.c.b16 %v707, %v706
        %v814 = vpack.c.b16 %v709, %v708
        %v815 = vpack.c.b16 %v711, %v710
        %v816 = vpack.c.b16 %v713, %v712
        %v817 = vpack.c.b16 %v715, %v714
        %v818 = vpack.c.b16 %v717, %v716
        %v819 = vpack.c.b16 %v719, %v718
        %v820 = vpack.c.b16 %v721, %v720
        %v821 = vpack.c.b16 %v723, %v722
        %v822 = vpack.c.b16 %v725, %v724
        %v823 = vpack.c.b16 %v727, %v726
        %v824 = vpack.c.b16 %v729, %v728
        %v825 = vpack.c.b16 %v731, %v730
        %v826 = vpack.c.b16 %v733, %v732
        %v827 = vpack.c.b16 %v735, %v734
        %v828 = vpack.c.b16 %v737, %v736
        %v829 = vpack.c.b16 %v739, %v738
        %v830 = vpack.c.b16 %v741, %v740
        %v831 = vpack.c.b16 %v743, %v742
        %v832 = vpack.c.b16 %v745, %v744
        %v833 = vpack.c.b16 %v747, %v746
        %v834 = vpack.c.b16 %v749, %v748
        %v835 = vpack.c.b16 %v751, %v750
        %v836 = vpack.c.b16 %v753, %v752
        %v837 = vpack.c.b16 %v755, %v754
        %v838 = vpack.c.b16 %v757, %v756
        %v839 = vpack.c.b16 %v759, %v758
        %v840 = vpack.c.b16 %v761, %v760
        %v841 = vpack.c.b16 %v763, %v762
        %v842 = vpack.c.b16 %v765, %v764
        %v843 = vpack.c.b16 %v767, %v766
        %v844 = vpack.c.b16 %v769, %v768
        %v845 = vpack.c.b16 %v771, %v770
        %v846 = vpack.c.b16 %v773, %v772
        %v847 = vpack.c.b16 %v775, %v774
        %v848 = vpack.c.b16 %v777, %v776
        %v849 = vpack.c.b16 %v779, %v778
        %v850 = vpack.c.b16 %v781, %v780
        %v851 = vpack.c.b16 %v783, %v782
        %v852 = vpack.c.b16 %v785, %v784
        %v853 = vpack.c.b16 %v787, %v786
        %v854 = vpack.c.b16 %v789, %v788
        %v855 = vpack.c.b16 %v791, %v790
        %v858 = vunpack.c.l.b16 %v534
        %v859 = vunpack.c.l.b16 %v535
        %v860 = vpack.c.b16 %v859, %v858
        %vm862 = vcmask 130048
        %v864 = vsel %vm862, %v792, 0
        %v867 = vsel %vm862, %v793, 0
        %v870 = vsel %vm862, %v794, 0
        %v873 = vsel %vm862, %v795, 0
        %v876 = vsel %vm862, %v796, 0
        %v879 = vsel %vm862, %v797, 0
        %v882 = vsel %vm862, %v798, 0
        %v885 = vsel %vm862, %v799, 0
        %v888 = vsel %vm862, %v800, 0
        %v891 = vsel %vm862, %v801, 0
        %v894 = vsel %vm862, %v802, 0
        %v897 = vsel %vm862, %v803, 0
        %v900 = vsel %vm862, %v804, 0
        %v903 = vsel %vm862, %v805, 0
        %v906 = vsel %vm862, %v806, 0
        %v909 = vsel %vm862, %v807, 0
        %v912 = vsel %vm862, %v808, 0
        %v915 = vsel %vm862, %v809, 0
        %v918 = vsel %vm862, %v810, 0
        %v921 = vsel %vm862, %v811, 0
        %v924 = vsel %vm862, %v812, 0
        %v927 = vsel %vm862, %v813, 0
        %v930 = vsel %vm862, %v814, 0
        %v933 = vsel %vm862, %v815, 0
        %v936 = vsel %vm862, %v816, 0
        %v939 = vsel %vm862, %v817, 0
        %v942 = vsel %vm862, %v818, 0
        %v945 = vsel %vm862, %v819, 0
        %v948 = vsel %vm862, %v820, 0
        %v951 = vsel %vm862, %v821, 0
        %v954 = vsel %vm862, %v822, 0
        %v957 = vsel %vm862, %v823, 0
        %v960 = vsel %vm862, %v824, 0
        %v963 = vsel %vm862, %v825, 0
        %v966 = vsel %vm862, %v826, 0
        %v969 = vsel %vm862, %v827, 0
        %v972 = vsel %vm862, %v828, 0
        %v975 = vsel %vm862, %v829, 0
        %v978 = vsel %vm862, %v830, 0
        %v981 = vsel %vm862, %v831, 0
        %v984 = vsel %vm862, %v832, 0
        %v987 = vsel %vm862, %v833, 0
        %v990 = vsel %vm862, %v834, 0
        %v993 = vsel %vm862, %v835, 0
        %v996 = vsel %vm862, %v836, 0
        %v999 = vsel %vm862, %v837, 0
        %v1002 = vsel %vm862, %v838, 0
        %v1005 = vsel %vm862, %v839, 0
        %v1008 = vsel %vm862, %v840, 0
        %v1011 = vsel %vm862, %v841, 0
        %v1014 = vsel %vm862, %v842, 0
        %v1017 = vsel %vm862, %v843, 0
        %v1020 = vsel %vm862, %v844, 0
        %v1023 = vsel %vm862, %v845, 0
        %v1026 = vsel %vm862, %v846, 0
        %v1029 = vsel %vm862, %v847, 0
        %v1032 = vsel %vm862, %v848, 0
        %v1035 = vsel %vm862, %v849, 0
        %v1038 = vsel %vm862, %v850, 0
        %v1041 = vsel %vm862, %v851, 0
        %v1044 = vsel %vm862, %v852, 0
        %v1047 = vsel %vm862, %v853, 0
        %v1050 = vsel %vm862, %v854, 0
        %v1053 = vsel %vm862, %v855, 0
        %1055 = vmatprep.subr.bf16.mxu0 0
        %1056 = vmatpush1.bf16.msra.mxu0 %v860
        %1057 = vmatprep.subr.bf16.mxu0 0
        %1058 = vmatpush1.bf16.msra.mxu0 0
        %1059 = vmatprep.subr.bf16.mxu0 0
        %1060 = vmatpush1.bf16.msra.mxu0 0
        %1061 = vmatprep.subr.bf16.mxu0 0
        %1062 = vmatpush1.bf16.msra.mxu0 0
        %1063 = vmatprep.subr.bf16.mxu0 0
        %1064 = vmatpush1.bf16.msra.mxu0 0
        %1065 = vmatprep.subr.bf16.mxu0 0
        %1066 = vmatpush1.bf16.msra.mxu0 0
        %1067 = vmatprep.subr.bf16.mxu0 0
        %1068 = vmatpush1.bf16.msra.mxu0 0
        %1069 = vmatprep.subr.bf16.mxu0 0
        %1070 = vmatpush1.bf16.msra.mxu0 0
        %1071 = vmatprep.subr.bf16.mxu0 0
        %1072 = vmatpush1.bf16.msra.mxu0 0
        %1073 = vmatprep.subr.bf16.mxu0 0
        %1074 = vmatpush1.bf16.msra.mxu0 0
        %1075 = vmatprep.subr.bf16.mxu0 0
        %1076 = vmatpush1.bf16.msra.mxu0 0
        %1077 = vmatprep.subr.bf16.mxu0 0
        %1078 = vmatpush1.bf16.msra.mxu0 0
        %1079 = vmatprep.subr.bf16.mxu0 0
        %1080 = vmatpush1.bf16.msra.mxu0 0
        %1081 = vmatprep.subr.bf16.mxu0 0
        %1082 = vmatpush1.bf16.msra.mxu0 0
        %1083 = vmatprep.subr.bf16.mxu0 0
        %1084 = vmatpush1.bf16.msra.mxu0 0
        %1085 = vmatprep.subr.bf16.mxu0 0
        %1086 = vmatpush1.bf16.msra.mxu0 0
        %1087 = vmatprep.mubr.bf16.mxu0 0
        %1088 = vmatmul.mubr.bf16.gmra.mrb[0].mxu0 %v864
        %v1089 = vpop.f32.mrb[0].mxu0
        %v1090 = vadd.f32 0.0, %v1089
        %v1091 = vpop.f32.mrb[0].mxu0
        %v1092 = vpop.f32.mrb[0].mxu0
        %v1093 = vadd.f32 0.0, %v1092
        %v1094 = vpop.f32.mrb[0].mxu0
        %1095 = vmatprep.mubr.bf16.mxu0 0
        %1096 = vmatmul.mubr.bf16.gmra.mrb[0].mxu0 %v867
        %v1097 = vpop.f32.mrb[0].mxu0
        %v1098 = vadd.f32 0.0, %v1097
        %v1099 = vpop.f32.mrb[0].mxu0
        %v1100 = vpop.f32.mrb[0].mxu0
        %v1101 = vadd.f32 0.0, %v1100
        %v1102 = vpop.f32.mrb[0].mxu0
        %1103 = vmatprep.mubr.bf16.mxu0 0
        %1104 = vmatmul.mubr.bf16.gmra.mrb[0].mxu0 %v870
        %v1105 = vpop.f32.mrb[0].mxu0
        %v1106 = vadd.f32 0.0, %v1105
        %v1107 = vpop.f32.mrb[0].mxu0
        %v1108 = vpop.f32.mrb[0].mxu0
        %v1109 = vadd.f32 0.0, %v1108
        %v1110 = vpop.f32.mrb[0].mxu0
        %1111 = vmatprep.mubr.bf16.mxu0 0
        %1112 = vmatmul.mubr.bf16.gmra.mrb[0].mxu0 %v873
        %v1113 = vpop.f32.mrb[0].mxu0
        %v1114 = vadd.f32 0.0, %v1113
        %v1115 = vpop.f32.mrb[0].mxu0
        %v1116 = vpop.f32.mrb[0].mxu0
        %v1117 = vadd.f32 0.0, %v1116
        %v1118 = vpop.f32.mrb[0].mxu0
        %1119 = vmatprep.mubr.bf16.mxu0 0
        %1120 = vmatmul.mubr.bf16.gmra.mrb[0].mxu0 %v876
        %v1121 = vpop.f32.mrb[0].mxu0
        %v1122 = vadd.f32 0.0, %v1121
        %v1123 = vpop.f32.mrb[0].mxu0
        %v1124 = vpop.f32.mrb[0].mxu0
        %v1125 = vadd.f32 0.0, %v1124
        %v1126 = vpop.f32.mrb[0].mxu0
        %1127 = vmatprep.mubr.bf16.mxu0 0
        %1128 = vmatmul.mubr.bf16.gmra.mrb[0].mxu0 %v879
        %v1129 = vpop.f32.mrb[0].mxu0
        %v1130 = vadd.f32 0.0, %v1129
        %v1131 = vpop.f32.mrb[0].mxu0
        %v1132 = vpop.f32.mrb[0].mxu0
        %v1133 = vadd.f32 0.0, %v1132
        %v1134 = vpop.f32.mrb[0].mxu0
        %1135 = vmatprep.mubr.bf16.mxu0 0
        %1136 = vmatmul.mubr.bf16.gmra.mrb[0].mxu0 %v882
        %v1137 = vpop.f32.mrb[0].mxu0
        %v1138 = vadd.f32 0.0, %v1137
        %v1139 = vpop.f32.mrb[0].mxu0
        %v1140 = vpop.f32.mrb[0].mxu0
        %v1141 = vadd.f32 0.0, %v1140
        %v1142 = vpop.f32.mrb[0].mxu0
        %1143 = vmatprep.mubr.bf16.mxu0 0
        %1144 = vmatmul.mubr.bf16.gmra.mrb[0].mxu0 %v885
        %v1145 = vpop.f32.mrb[0].mxu0
        %v1146 = vadd.f32 0.0, %v1145
        %v1147 = vpop.f32.mrb[0].mxu0
        %v1148 = vpop.f32.mrb[0].mxu0
        %v1149 = vadd.f32 0.0, %v1148
        %v1150 = vpop.f32.mrb[0].mxu0
        %1151 = vmatprep.mubr.bf16.mxu0 0
        %1152 = vmatmul.mubr.bf16.gmra.mrb[0].mxu0 %v888
        %v1153 = vpop.f32.mrb[0].mxu0
        %v1154 = vadd.f32 0.0, %v1153
        %v1155 = vpop.f32.mrb[0].mxu0
        %v1156 = vpop.f32.mrb[0].mxu0
        %v1157 = vadd.f32 0.0, %v1156
        %v1158 = vpop.f32.mrb[0].mxu0
        %1159 = vmatprep.mubr.bf16.mxu0 0
        %1160 = vmatmul.mubr.bf16.gmra.mrb[0].mxu0 %v891
        %v1161 = vpop.f32.mrb[0].mxu0
        %v1162 = vadd.f32 0.0, %v1161
        %v1163 = vpop.f32.mrb[0].mxu0
        %v1164 = vpop.f32.mrb[0].mxu0
        %v1165 = vadd.f32 0.0, %v1164
        %v1166 = vpop.f32.mrb[0].mxu0
        %1167 = vmatprep.mubr.bf16.mxu0 0
        %1168 = vmatmul.mubr.bf16.gmra.mrb[0].mxu0 %v894
        %v1169 = vpop.f32.mrb[0].mxu0
        %v1170 = vadd.f32 0.0, %v1169
        %v1171 = vpop.f32.mrb[0].mxu0
        %v1172 = vpop.f32.mrb[0].mxu0
        %v1173 = vadd.f32 0.0, %v1172
        %v1174 = vpop.f32.mrb[0].mxu0
        %1175 = vmatprep.mubr.bf16.mxu0 0
        %1176 = vmatmul.mubr.bf16.gmra.mrb[0].mxu0 %v897
        %v1177 = vpop.f32.mrb[0].mxu0
        %v1178 = vadd.f32 0.0, %v1177
        %v1179 = vpop.f32.mrb[0].mxu0
        %v1180 = vpop.f32.mrb[0].mxu0
        %v1181 = vadd.f32 0.0, %v1180
        %v1182 = vpop.f32.mrb[0].mxu0
        %1183 = vmatprep.mubr.bf16.mxu0 0
        %1184 = vmatmul.mubr.bf16.gmra.mrb[0].mxu0 %v900
        %v1185 = vpop.f32.mrb[0].mxu0
        %v1186 = vadd.f32 0.0, %v1185
        %v1187 = vpop.f32.mrb[0].mxu0
        %v1188 = vpop.f32.mrb[0].mxu0
        %v1189 = vadd.f32 0.0, %v1188
        %v1190 = vpop.f32.mrb[0].mxu0
        %1191 = vmatprep.mubr.bf16.mxu0 0
        %1192 = vmatmul.mubr.bf16.gmra.mrb[0].mxu0 %v903
        %v1193 = vpop.f32.mrb[0].mxu0
        %v1194 = vadd.f32 0.0, %v1193
        %v1195 = vpop.f32.mrb[0].mxu0
        %v1196 = vpop.f32.mrb[0].mxu0
        %v1197 = vadd.f32 0.0, %v1196
        %v1198 = vpop.f32.mrb[0].mxu0
        %1199 = vmatprep.mubr.bf16.mxu0 0
        %1200 = vmatmul.mubr.bf16.gmra.mrb[0].mxu0 %v906
        %v1201 = vpop.f32.mrb[0].mxu0
        %v1202 = vadd.f32 0.0, %v1201
        %v1203 = vpop.f32.mrb[0].mxu0
        %v1204 = vpop.f32.mrb[0].mxu0
        %v1205 = vadd.f32 0.0, %v1204
        %v1206 = vpop.f32.mrb[0].mxu0
        %1207 = vmatprep.mubr.bf16.mxu0 0
        %1208 = vmatmul.mubr.bf16.gmra.mrb[0].mxu0 %v909
        %v1209 = vpop.f32.mrb[0].mxu0
        %v1210 = vadd.f32 0.0, %v1209
        %v1211 = vpop.f32.mrb[0].mxu0
        %v1212 = vpop.f32.mrb[0].mxu0
        %v1213 = vadd.f32 0.0, %v1212
        %v1214 = vpop.f32.mrb[0].mxu0
        %1215 = vmatprep.mubr.bf16.mxu0 0
        %1216 = vmatmul.mubr.bf16.gmra.mrb[0].mxu0 %v912
        %v1217 = vpop.f32.mrb[0].mxu0
        %v1218 = vadd.f32 0.0, %v1217
        %v1219 = vpop.f32.mrb[0].mxu0
        %v1220 = vpop.f32.mrb[0].mxu0
        %v1221 = vadd.f32 0.0, %v1220
        %v1222 = vpop.f32.mrb[0].mxu0
        %1223 = vmatprep.mubr.bf16.mxu0 0
        %1224 = vmatmul.mubr.bf16.gmra.mrb[0].mxu0 %v915
        %v1225 = vpop.f32.mrb[0].mxu0
        %v1226 = vadd.f32 0.0, %v1225
        %v1227 = vpop.f32.mrb[0].mxu0
        %v1228 = vpop.f32.mrb[0].mxu0
        %v1229 = vadd.f32 0.0, %v1228
        %v1230 = vpop.f32.mrb[0].mxu0
        %1231 = vmatprep.mubr.bf16.mxu0 0
        %1232 = vmatmul.mubr.bf16.gmra.mrb[0].mxu0 %v918
        %v1233 = vpop.f32.mrb[0].mxu0
        %v1234 = vadd.f32 0.0, %v1233
        %v1235 = vpop.f32.mrb[0].mxu0
        %v1236 = vpop.f32.mrb[0].mxu0
        %v1237 = vadd.f32 0.0, %v1236
        %v1238 = vpop.f32.mrb[0].mxu0
        %1239 = vmatprep.mubr.bf16.mxu0 0
        %1240 = vmatmul.mubr.bf16.gmra.mrb[0].mxu0 %v921
        %v1241 = vpop.f32.mrb[0].mxu0
        %v1242 = vadd.f32 0.0, %v1241
        %v1243 = vpop.f32.mrb[0].mxu0
        %v1244 = vpop.f32.mrb[0].mxu0
        %v1245 = vadd.f32 0.0, %v1244
        %v1246 = vpop.f32.mrb[0].mxu0
        %1247 = vmatprep.mubr.bf16.mxu0 0
        %1248 = vmatmul.mubr.bf16.gmra.mrb[0].mxu0 %v924
        %v1249 = vpop.f32.mrb[0].mxu0
        %v1250 = vadd.f32 0.0, %v1249
        %v1251 = vpop.f32.mrb[0].mxu0
        %v1252 = vpop.f32.mrb[0].mxu0
        %v1253 = vadd.f32 0.0, %v1252
        %v1254 = vpop.f32.mrb[0].mxu0
        %1255 = vmatprep.mubr.bf16.mxu0 0
        %1256 = vmatmul.mubr.bf16.gmra.mrb[0].mxu0 %v927
        %v1257 = vpop.f32.mrb[0].mxu0
        %v1258 = vadd.f32 0.0, %v1257
        %v1259 = vpop.f32.mrb[0].mxu0
        %v1260 = vpop.f32.mrb[0].mxu0
        %v1261 = vadd.f32 0.0, %v1260
        %v1262 = vpop.f32.mrb[0].mxu0
        %1263 = vmatprep.mubr.bf16.mxu0 0
        %1264 = vmatmul.mubr.bf16.gmra.mrb[0].mxu0 %v930
        %v1265 = vpop.f32.mrb[0].mxu0
        %v1266 = vadd.f32 0.0, %v1265
        %v1267 = vpop.f32.mrb[0].mxu0
        %v1268 = vpop.f32.mrb[0].mxu0
        %v1269 = vadd.f32 0.0, %v1268
        %v1270 = vpop.f32.mrb[0].mxu0
        %1271 = vmatprep.mubr.bf16.mxu0 0
        %1272 = vmatmul.mubr.bf16.gmra.mrb[0].mxu0 %v933
        %v1273 = vpop.f32.mrb[0].mxu0
        %v1274 = vadd.f32 0.0, %v1273
        %v1275 = vpop.f32.mrb[0].mxu0
        %v1276 = vpop.f32.mrb[0].mxu0
        %v1277 = vadd.f32 0.0, %v1276
        %v1278 = vpop.f32.mrb[0].mxu0
        %1279 = vmatprep.mubr.bf16.mxu0 0
        %1280 = vmatmul.mubr.bf16.gmra.mrb[0].mxu0 %v936
        %v1281 = vpop.f32.mrb[0].mxu0
        %v1282 = vadd.f32 0.0, %v1281
        %v1283 = vpop.f32.mrb[0].mxu0
        %v1284 = vpop.f32.mrb[0].mxu0
        %v1285 = vadd.f32 0.0, %v1284
        %v1286 = vpop.f32.mrb[0].mxu0
        %1287 = vmatprep.mubr.bf16.mxu0 0
        %1288 = vmatmul.mubr.bf16.gmra.mrb[0].mxu0 %v939
        %v1289 = vpop.f32.mrb[0].mxu0
        %v1290 = vadd.f32 0.0, %v1289
        %v1291 = vpop.f32.mrb[0].mxu0
        %v1292 = vpop.f32.mrb[0].mxu0
        %v1293 = vadd.f32 0.0, %v1292
        %v1294 = vpop.f32.mrb[0].mxu0
        %1295 = vmatprep.mubr.bf16.mxu0 0
        %1296 = vmatmul.mubr.bf16.gmra.mrb[0].mxu0 %v942
        %v1297 = vpop.f32.mrb[0].mxu0
        %v1298 = vadd.f32 0.0, %v1297
        %v1299 = vpop.f32.mrb[0].mxu0
        %v1300 = vpop.f32.mrb[0].mxu0
        %v1301 = vadd.f32 0.0, %v1300
        %v1302 = vpop.f32.mrb[0].mxu0
        %1303 = vmatprep.mubr.bf16.mxu0 0
        %1304 = vmatmul.mubr.bf16.gmra.mrb[0].mxu0 %v945
        %v1305 = vpop.f32.mrb[0].mxu0
        %v1306 = vadd.f32 0.0, %v1305
        %v1307 = vpop.f32.mrb[0].mxu0
        %v1308 = vpop.f32.mrb[0].mxu0
        %v1309 = vadd.f32 0.0, %v1308
        %v1310 = vpop.f32.mrb[0].mxu0
        %1311 = vmatprep.mubr.bf16.mxu0 0
        %1312 = vmatmul.mubr.bf16.gmra.mrb[0].mxu0 %v948
        %v1313 = vpop.f32.mrb[0].mxu0
        %v1314 = vadd.f32 0.0, %v1313
        %v1315 = vpop.f32.mrb[0].mxu0
        %v1316 = vpop.f32.mrb[0].mxu0
        %v1317 = vadd.f32 0.0, %v1316
        %v1318 = vpop.f32.mrb[0].mxu0
        %1319 = vmatprep.mubr.bf16.mxu0 0
        %1320 = vmatmul.mubr.bf16.gmra.mrb[0].mxu0 %v951
        %v1321 = vpop.f32.mrb[0].mxu0
        %v1322 = vadd.f32 0.0, %v1321
        %v1323 = vpop.f32.mrb[0].mxu0
        %v1324 = vpop.f32.mrb[0].mxu0
        %v1325 = vadd.f32 0.0, %v1324
        %v1326 = vpop.f32.mrb[0].mxu0
        %1327 = vmatprep.mubr.bf16.mxu0 0
        %1328 = vmatmul.mubr.bf16.gmra.mrb[0].mxu0 %v954
        %v1329 = vpop.f32.mrb[0].mxu0
        %v1330 = vadd.f32 0.0, %v1329
        %v1331 = vpop.f32.mrb[0].mxu0
        %v1332 = vpop.f32.mrb[0].mxu0
        %v1333 = vadd.f32 0.0, %v1332
        %v1334 = vpop.f32.mrb[0].mxu0
        %1335 = vmatprep.mubr.bf16.mxu0 0
        %1336 = vmatmul.mubr.bf16.gmra.mrb[0].mxu0 %v957
        %v1337 = vpop.f32.mrb[0].mxu0
        %v1338 = vadd.f32 0.0, %v1337
        %v1339 = vpop.f32.mrb[0].mxu0
        %v1340 = vpop.f32.mrb[0].mxu0
        %v1341 = vadd.f32 0.0, %v1340
        %v1342 = vpop.f32.mrb[0].mxu0
        %1343 = vmatprep.mubr.bf16.mxu0 0
        %1344 = vmatmul.mubr.bf16.gmra.mrb[0].mxu0 %v960
        %v1345 = vpop.f32.mrb[0].mxu0
        %v1346 = vadd.f32 0.0, %v1345
        %v1347 = vpop.f32.mrb[0].mxu0
        %v1348 = vpop.f32.mrb[0].mxu0
        %v1349 = vadd.f32 0.0, %v1348
        %v1350 = vpop.f32.mrb[0].mxu0
        %1351 = vmatprep.mubr.bf16.mxu0 0
        %1352 = vmatmul.mubr.bf16.gmra.mrb[0].mxu0 %v963
        %v1353 = vpop.f32.mrb[0].mxu0
        %v1354 = vadd.f32 0.0, %v1353
        %v1355 = vpop.f32.mrb[0].mxu0
        %v1356 = vpop.f32.mrb[0].mxu0
        %v1357 = vadd.f32 0.0, %v1356
        %v1358 = vpop.f32.mrb[0].mxu0
        %1359 = vmatprep.mubr.bf16.mxu0 0
        %1360 = vmatmul.mubr.bf16.gmra.mrb[0].mxu0 %v966
        %v1361 = vpop.f32.mrb[0].mxu0
        %v1362 = vadd.f32 0.0, %v1361
        %v1363 = vpop.f32.mrb[0].mxu0
        %v1364 = vpop.f32.mrb[0].mxu0
        %v1365 = vadd.f32 0.0, %v1364
        %v1366 = vpop.f32.mrb[0].mxu0
        %1367 = vmatprep.mubr.bf16.mxu0 0
        %1368 = vmatmul.mubr.bf16.gmra.mrb[0].mxu0 %v969
        %v1369 = vpop.f32.mrb[0].mxu0
        %v1370 = vadd.f32 0.0, %v1369
        %v1371 = vpop.f32.mrb[0].mxu0
        %v1372 = vpop.f32.mrb[0].mxu0
        %v1373 = vadd.f32 0.0, %v1372
        %v1374 = vpop.f32.mrb[0].mxu0
        %1375 = vmatprep.mubr.bf16.mxu0 0
        %1376 = vmatmul.mubr.bf16.gmra.mrb[0].mxu0 %v972
        %v1377 = vpop.f32.mrb[0].mxu0
        %v1378 = vadd.f32 0.0, %v1377
        %v1379 = vpop.f32.mrb[0].mxu0
        %v1380 = vpop.f32.mrb[0].mxu0
        %v1381 = vadd.f32 0.0, %v1380
        %v1382 = vpop.f32.mrb[0].mxu0
        %1383 = vmatprep.mubr.bf16.mxu0 0
        %1384 = vmatmul.mubr.bf16.gmra.mrb[0].mxu0 %v975
        %v1385 = vpop.f32.mrb[0].mxu0
        %v1386 = vadd.f32 0.0, %v1385
        %v1387 = vpop.f32.mrb[0].mxu0
        %v1388 = vpop.f32.mrb[0].mxu0
        %v1389 = vadd.f32 0.0, %v1388
        %v1390 = vpop.f32.mrb[0].mxu0
        %1391 = vmatprep.mubr.bf16.mxu0 0
        %1392 = vmatmul.mubr.bf16.gmra.mrb[0].mxu0 %v978
        %v1393 = vpop.f32.mrb[0].mxu0
        %v1394 = vadd.f32 0.0, %v1393
        %v1395 = vpop.f32.mrb[0].mxu0
        %v1396 = vpop.f32.mrb[0].mxu0
        %v1397 = vadd.f32 0.0, %v1396
        %v1398 = vpop.f32.mrb[0].mxu0
        %1399 = vmatprep.mubr.bf16.mxu0 0
        %1400 = vmatmul.mubr.bf16.gmra.mrb[0].mxu0 %v981
        %v1401 = vpop.f32.mrb[0].mxu0
        %v1402 = vadd.f32 0.0, %v1401
        %v1403 = vpop.f32.mrb[0].mxu0
        %v1404 = vpop.f32.mrb[0].mxu0
        %v1405 = vadd.f32 0.0, %v1404
        %v1406 = vpop.f32.mrb[0].mxu0
        %1407 = vmatprep.mubr.bf16.mxu0 0
        %1408 = vmatmul.mubr.bf16.gmra.mrb[0].mxu0 %v984
        %v1409 = vpop.f32.mrb[0].mxu0
        %v1410 = vadd.f32 0.0, %v1409
        %v1411 = vpop.f32.mrb[0].mxu0
        %v1412 = vpop.f32.mrb[0].mxu0
        %v1413 = vadd.f32 0.0, %v1412
        %v1414 = vpop.f32.mrb[0].mxu0
        %1415 = vmatprep.mubr.bf16.mxu0 0
        %1416 = vmatmul.mubr.bf16.gmra.mrb[0].mxu0 %v987
        %v1417 = vpop.f32.mrb[0].mxu0
        %v1418 = vadd.f32 0.0, %v1417
        %v1419 = vpop.f32.mrb[0].mxu0
        %v1420 = vpop.f32.mrb[0].mxu0
        %v1421 = vadd.f32 0.0, %v1420
        %v1422 = vpop.f32.mrb[0].mxu0
        %1423 = vmatprep.mubr.bf16.mxu0 0
        %1424 = vmatmul.mubr.bf16.gmra.mrb[0].mxu0 %v990
        %v1425 = vpop.f32.mrb[0].mxu0
        %v1426 = vadd.f32 0.0, %v1425
        %v1427 = vpop.f32.mrb[0].mxu0
        %v1428 = vpop.f32.mrb[0].mxu0
        %v1429 = vadd.f32 0.0, %v1428
        %v1430 = vpop.f32.mrb[0].mxu0
        %1431 = vmatprep.mubr.bf16.mxu0 0
        %1432 = vmatmul.mubr.bf16.gmra.mrb[0].mxu0 %v993
        %v1433 = vpop.f32.mrb[0].mxu0
        %v1434 = vadd.f32 0.0, %v1433
        %v1435 = vpop.f32.mrb[0].mxu0
        %v1436 = vpop.f32.mrb[0].mxu0
        %v1437 = vadd.f32 0.0, %v1436
        %v1438 = vpop.f32.mrb[0].mxu0
        %1439 = vmatprep.mubr.bf16.mxu0 0
        %1440 = vmatmul.mubr.bf16.gmra.mrb[0].mxu0 %v996
        %v1441 = vpop.f32.mrb[0].mxu0
        %v1442 = vadd.f32 0.0, %v1441
        %v1443 = vpop.f32.mrb[0].mxu0
        %v1444 = vpop.f32.mrb[0].mxu0
        %v1445 = vadd.f32 0.0, %v1444
        %v1446 = vpop.f32.mrb[0].mxu0
        %1447 = vmatprep.mubr.bf16.mxu0 0
        %1448 = vmatmul.mubr.bf16.gmra.mrb[0].mxu0 %v999
        %v1449 = vpop.f32.mrb[0].mxu0
        %v1450 = vadd.f32 0.0, %v1449
        %v1451 = vpop.f32.mrb[0].mxu0
        %v1452 = vpop.f32.mrb[0].mxu0
        %v1453 = vadd.f32 0.0, %v1452
        %v1454 = vpop.f32.mrb[0].mxu0
        %1455 = vmatprep.mubr.bf16.mxu0 0
        %1456 = vmatmul.mubr.bf16.gmra.mrb[0].mxu0 %v1002
        %v1457 = vpop.f32.mrb[0].mxu0
        %v1458 = vadd.f32 0.0, %v1457
        %v1459 = vpop.f32.mrb[0].mxu0
        %v1460 = vpop.f32.mrb[0].mxu0
        %v1461 = vadd.f32 0.0, %v1460
        %v1462 = vpop.f32.mrb[0].mxu0
        %1463 = vmatprep.mubr.bf16.mxu0 0
        %1464 = vmatmul.mubr.bf16.gmra.mrb[0].mxu0 %v1005
        %v1465 = vpop.f32.mrb[0].mxu0
        %v1466 = vadd.f32 0.0, %v1465
        %v1467 = vpop.f32.mrb[0].mxu0
        %v1468 = vpop.f32.mrb[0].mxu0
        %v1469 = vadd.f32 0.0, %v1468
        %v1470 = vpop.f32.mrb[0].mxu0
        %1471 = vmatprep.mubr.bf16.mxu0 0
        %1472 = vmatmul.mubr.bf16.gmra.mrb[0].mxu0 %v1008
        %v1473 = vpop.f32.mrb[0].mxu0
        %v1474 = vadd.f32 0.0, %v1473
        %v1475 = vpop.f32.mrb[0].mxu0
        %v1476 = vpop.f32.mrb[0].mxu0
        %v1477 = vadd.f32 0.0, %v1476
        %v1478 = vpop.f32.mrb[0].mxu0
        %1479 = vmatprep.mubr.bf16.mxu0 0
        %1480 = vmatmul.mubr.bf16.gmra.mrb[0].mxu0 %v1011
        %v1481 = vpop.f32.mrb[0].mxu0
        %v1482 = vadd.f32 0.0, %v1481
        %v1483 = vpop.f32.mrb[0].mxu0
        %v1484 = vpop.f32.mrb[0].mxu0
        %v1485 = vadd.f32 0.0, %v1484
        %v1486 = vpop.f32.mrb[0].mxu0
        %1487 = vmatprep.mubr.bf16.mxu0 0
        %1488 = vmatmul.mubr.bf16.gmra.mrb[0].mxu0 %v1014
        %v1489 = vpop.f32.mrb[0].mxu0
        %v1490 = vadd.f32 0.0, %v1489
        %v1491 = vpop.f32.mrb[0].mxu0
        %v1492 = vpop.f32.mrb[0].mxu0
        %v1493 = vadd.f32 0.0, %v1492
        %v1494 = vpop.f32.mrb[0].mxu0
        %1495 = vmatprep.mubr.bf16.mxu0 0
        %1496 = vmatmul.mubr.bf16.gmra.mrb[0].mxu0 %v1017
        %v1497 = vpop.f32.mrb[0].mxu0
        %v1498 = vadd.f32 0.0, %v1497
        %v1499 = vpop.f32.mrb[0].mxu0
        %v1500 = vpop.f32.mrb[0].mxu0
        %v1501 = vadd.f32 0.0, %v1500
        %v1502 = vpop.f32.mrb[0].mxu0
        %1503 = vmatprep.mubr.bf16.mxu0 0
        %1504 = vmatmul.mubr.bf16.gmra.mrb[0].mxu0 %v1020
        %v1505 = vpop.f32.mrb[0].mxu0
        %v1506 = vadd.f32 0.0, %v1505
        %v1507 = vpop.f32.mrb[0].mxu0
        %v1508 = vpop.f32.mrb[0].mxu0
        %v1509 = vadd.f32 0.0, %v1508
        %v1510 = vpop.f32.mrb[0].mxu0
        %1511 = vmatprep.mubr.bf16.mxu0 0
        %1512 = vmatmul.mubr.bf16.gmra.mrb[0].mxu0 %v1023
        %v1513 = vpop.f32.mrb[0].mxu0
        %v1514 = vadd.f32 0.0, %v1513
        %v1515 = vpop.f32.mrb[0].mxu0
        %v1516 = vpop.f32.mrb[0].mxu0
        %v1517 = vadd.f32 0.0, %v1516
        %v1518 = vpop.f32.mrb[0].mxu0
        %1519 = vmatprep.mubr.bf16.mxu0 0
        %1520 = vmatmul.mubr.bf16.gmra.mrb[0].mxu0 %v1026
        %v1521 = vpop.f32.mrb[0].mxu0
        %v1522 = vadd.f32 0.0, %v1521
        %v1523 = vpop.f32.mrb[0].mxu0
        %v1524 = vpop.f32.mrb[0].mxu0
        %v1525 = vadd.f32 0.0, %v1524
        %v1526 = vpop.f32.mrb[0].mxu0
        %1527 = vmatprep.mubr.bf16.mxu0 0
        %1528 = vmatmul.mubr.bf16.gmra.mrb[0].mxu0 %v1029
        %v1529 = vpop.f32.mrb[0].mxu0
        %v1530 = vadd.f32 0.0, %v1529
        %v1531 = vpop.f32.mrb[0].mxu0
        %v1532 = vpop.f32.mrb[0].mxu0
        %v1533 = vadd.f32 0.0, %v1532
        %v1534 = vpop.f32.mrb[0].mxu0
        %1535 = vmatprep.mubr.bf16.mxu0 0
        %1536 = vmatmul.mubr.bf16.gmra.mrb[0].mxu0 %v1032
        %v1537 = vpop.f32.mrb[0].mxu0
        %v1538 = vadd.f32 0.0, %v1537
        %v1539 = vpop.f32.mrb[0].mxu0
        %v1540 = vpop.f32.mrb[0].mxu0
        %v1541 = vadd.f32 0.0, %v1540
        %v1542 = vpop.f32.mrb[0].mxu0
        %1543 = vmatprep.mubr.bf16.mxu0 0
        %1544 = vmatmul.mubr.bf16.gmra.mrb[0].mxu0 %v1035
        %v1545 = vpop.f32.mrb[0].mxu0
        %v1546 = vadd.f32 0.0, %v1545
        %v1547 = vpop.f32.mrb[0].mxu0
        %v1548 = vpop.f32.mrb[0].mxu0
        %v1549 = vadd.f32 0.0, %v1548
        %v1550 = vpop.f32.mrb[0].mxu0
        %1551 = vmatprep.mubr.bf16.mxu0 0
        %1552 = vmatmul.mubr.bf16.gmra.mrb[0].mxu0 %v1038
        %v1553 = vpop.f32.mrb[0].mxu0
        %v1554 = vadd.f32 0.0, %v1553
        %v1555 = vpop.f32.mrb[0].mxu0
        %v1556 = vpop.f32.mrb[0].mxu0
        %v1557 = vadd.f32 0.0, %v1556
        %v1558 = vpop.f32.mrb[0].mxu0
        %1559 = vmatprep.mubr.bf16.mxu0 0
        %1560 = vmatmul.mubr.bf16.gmra.mrb[0].mxu0 %v1041
        %v1561 = vpop.f32.mrb[0].mxu0
        %v1562 = vadd.f32 0.0, %v1561
        %v1563 = vpop.f32.mrb[0].mxu0
        %v1564 = vpop.f32.mrb[0].mxu0
        %v1565 = vadd.f32 0.0, %v1564
        %v1566 = vpop.f32.mrb[0].mxu0
        %1567 = vmatprep.mubr.bf16.mxu0 0
        %1568 = vmatmul.mubr.bf16.gmra.mrb[0].mxu0 %v1044
        %v1569 = vpop.f32.mrb[0].mxu0
        %v1570 = vadd.f32 0.0, %v1569
        %v1571 = vpop.f32.mrb[0].mxu0
        %v1572 = vpop.f32.mrb[0].mxu0
        %v1573 = vadd.f32 0.0, %v1572
        %v1574 = vpop.f32.mrb[0].mxu0
        %1575 = vmatprep.mubr.bf16.mxu0 0
        %1576 = vmatmul.mubr.bf16.gmra.mrb[0].mxu0 %v1047
        %v1577 = vpop.f32.mrb[0].mxu0
        %v1578 = vadd.f32 0.0, %v1577
        %v1579 = vpop.f32.mrb[0].mxu0
        %v1580 = vpop.f32.mrb[0].mxu0
        %v1581 = vadd.f32 0.0, %v1580
        %v1582 = vpop.f32.mrb[0].mxu0
        %1583 = vmatprep.mubr.bf16.mxu0 0
        %1584 = vmatmul.mubr.bf16.gmra.mrb[0].mxu0 %v1050
        %v1585 = vpop.f32.mrb[0].mxu0
        %v1586 = vadd.f32 0.0, %v1585
        %v1587 = vpop.f32.mrb[0].mxu0
        %v1588 = vpop.f32.mrb[0].mxu0
        %v1589 = vadd.f32 0.0, %v1588
        %v1590 = vpop.f32.mrb[0].mxu0
        %1591 = vmatprep.mubr.bf16.mxu0 0
        %1592 = vmatmul.mubr.bf16.gmra.mrb[0].mxu0 %v1053
        %v1593 = vpop.f32.mrb[0].mxu0
        %v1594 = vadd.f32 0.0, %v1593
        %v1595 = vpop.f32.mrb[0].mxu0
        %v1596 = vpop.f32.mrb[0].mxu0
        %v1597 = vadd.f32 0.0, %v1596
        %v1598 = vpop.f32.mrb[0].mxu0
        %1599 = vdwg.mxu0
        %v1728 = vunpack.c.l.b16 %v270
        %v1729 = vunpack.c.l.b16 %v271
        %v1730 = vunpack.c.l.b16 %v272
        %v1731 = vunpack.c.l.b16 %v273
        %v1732 = vunpack.c.l.b16 %v274
        %v1733 = vunpack.c.l.b16 %v275
        %v1734 = vunpack.c.l.b16 %v276
        %v1735 = vunpack.c.l.b16 %v277
        %v1736 = vunpack.c.l.b16 %v278
        %v1737 = vunpack.c.l.b16 %v279
        %v1738 = vunpack.c.l.b16 %v280
        %v1739 = vunpack.c.l.b16 %v281
        %v1740 = vunpack.c.l.b16 %v282
        %v1741 = vunpack.c.l.b16 %v283
        %v1742 = vunpack.c.l.b16 %v284
        %v1743 = vunpack.c.l.b16 %v285
        %v1744 = vunpack.c.l.b16 %v286
        %v1745 = vunpack.c.l.b16 %v287
        %v1746 = vunpack.c.l.b16 %v288
        %v1747 = vunpack.c.l.b16 %v289
        %v1748 = vunpack.c.l.b16 %v290
        %v1749 = vunpack.c.l.b16 %v291
        %v1750 = vunpack.c.l.b16 %v292
        %v1751 = vunpack.c.l.b16 %v293
        %v1752 = vunpack.c.l.b16 %v294
        %v1753 = vunpack.c.l.b16 %v295
        %v1754 = vunpack.c.l.b16 %v296
        %v1755 = vunpack.c.l.b16 %v297
        %v1756 = vunpack.c.l.b16 %v298
        %v1757 = vunpack.c.l.b16 %v299
        %v1758 = vunpack.c.l.b16 %v300
        %v1759 = vunpack.c.l.b16 %v301
        %v1760 = vunpack.c.l.b16 %v302
        %v1761 = vunpack.c.l.b16 %v303
        %v1762 = vunpack.c.l.b16 %v304
        %v1763 = vunpack.c.l.b16 %v305
        %v1764 = vunpack.c.l.b16 %v306
        %v1765 = vunpack.c.l.b16 %v307
        %v1766 = vunpack.c.l.b16 %v308
        %v1767 = vunpack.c.l.b16 %v309
        %v1768 = vunpack.c.l.b16 %v310
        %v1769 = vunpack.c.l.b16 %v311
        %v1770 = vunpack.c.l.b16 %v312
        %v1771 = vunpack.c.l.b16 %v313
        %v1772 = vunpack.c.l.b16 %v314
        %v1773 = vunpack.c.l.b16 %v315
        %v1774 = vunpack.c.l.b16 %v316
        %v1775 = vunpack.c.l.b16 %v317
        %v1776 = vunpack.c.l.b16 %v318
        %v1777 = vunpack.c.l.b16 %v319
        %v1778 = vunpack.c.l.b16 %v320
        %v1779 = vunpack.c.l.b16 %v321
        %v1780 = vunpack.c.l.b16 %v322
        %v1781 = vunpack.c.l.b16 %v323
        %v1782 = vunpack.c.l.b16 %v324
        %v1783 = vunpack.c.l.b16 %v325
        %v1784 = vunpack.c.l.b16 %v326
        %v1785 = vunpack.c.l.b16 %v327
        %v1786 = vunpack.c.l.b16 %v328
        %v1787 = vunpack.c.l.b16 %v329
        %v1788 = vunpack.c.l.b16 %v330
        %v1789 = vunpack.c.l.b16 %v331
        %v1790 = vunpack.c.l.b16 %v332
        %v1791 = vunpack.c.l.b16 %v333
        %v1792 = vunpack.c.l.b16 %v334
        %v1793 = vunpack.c.l.b16 %v335
        %v1794 = vunpack.c.l.b16 %v336
        %v1795 = vunpack.c.l.b16 %v337
        %v1796 = vunpack.c.l.b16 %v338
        %v1797 = vunpack.c.l.b16 %v339
        %v1798 = vunpack.c.l.b16 %v340
        %v1799 = vunpack.c.l.b16 %v341
        %v1800 = vunpack.c.l.b16 %v342
        %v1801 = vunpack.c.l.b16 %v343
        %v1802 = vunpack.c.l.b16 %v344
        %v1803 = vunpack.c.l.b16 %v345
        %v1804 = vunpack.c.l.b16 %v346
        %v1805 = vunpack.c.l.b16 %v347
        %v1806 = vunpack.c.l.b16 %v348
        %v1807 = vunpack.c.l.b16 %v349
        %v1808 = vunpack.c.l.b16 %v350
        %v1809 = vunpack.c.l.b16 %v351
        %v1810 = vunpack.c.l.b16 %v352
        %v1811 = vunpack.c.l.b16 %v353
        %v1812 = vunpack.c.l.b16 %v354
        %v1813 = vunpack.c.l.b16 %v355
        %v1814 = vunpack.c.l.b16 %v356
        %v1815 = vunpack.c.l.b16 %v357
        %v1816 = vunpack.c.l.b16 %v358
        %v1817 = vunpack.c.l.b16 %v359
        %v1818 = vunpack.c.l.b16 %v360
        %v1819 = vunpack.c.l.b16 %v361
        %v1820 = vunpack.c.l.b16 %v362
        %v1821 = vunpack.c.l.b16 %v363
        %v1822 = vunpack.c.l.b16 %v364
        %v1823 = vunpack.c.l.b16 %v365
        %v1824 = vunpack.c.l.b16 %v366
        %v1825 = vunpack.c.l.b16 %v367
        %v1826 = vunpack.c.l.b16 %v368
        %v1827 = vunpack.c.l.b16 %v369
        %v1828 = vunpack.c.l.b16 %v370
        %v1829 = vunpack.c.l.b16 %v371
        %v1830 = vunpack.c.l.b16 %v372
        %v1831 = vunpack.c.l.b16 %v373
        %v1832 = vunpack.c.l.b16 %v374
        %v1833 = vunpack.c.l.b16 %v375
        %v1834 = vunpack.c.l.b16 %v376
        %v1835 = vunpack.c.l.b16 %v377
        %v1836 = vunpack.c.l.b16 %v378
        %v1837 = vunpack.c.l.b16 %v379
        %v1838 = vunpack.c.l.b16 %v380
        %v1839 = vunpack.c.l.b16 %v381
        %v1840 = vunpack.c.l.b16 %v382
        %v1841 = vunpack.c.l.b16 %v383
        %v1842 = vunpack.c.l.b16 %v384
        %v1843 = vunpack.c.l.b16 %v385
        %v1844 = vunpack.c.l.b16 %v386
        %v1845 = vunpack.c.l.b16 %v387
        %v1846 = vunpack.c.l.b16 %v388
        %v1847 = vunpack.c.l.b16 %v389
        %v1848 = vunpack.c.l.b16 %v390
        %v1849 = vunpack.c.l.b16 %v391
        %v1850 = vunpack.c.l.b16 %v392
        %v1851 = vunpack.c.l.b16 %v393
        %v1852 = vunpack.c.l.b16 %v394
        %v1853 = vunpack.c.l.b16 %v395
        %v1854 = vunpack.c.l.b16 %v396
        %v1855 = vunpack.c.l.b16 %v397
        %v1856 = vpack.c.b16 %v1729, %v1728
        %v1857 = vpack.c.b16 %v1731, %v1730
        %v1858 = vpack.c.b16 %v1733, %v1732
        %v1859 = vpack.c.b16 %v1735, %v1734
        %v1860 = vpack.c.b16 %v1737, %v1736
        %v1861 = vpack.c.b16 %v1739, %v1738
        %v1862 = vpack.c.b16 %v1741, %v1740
        %v1863 = vpack.c.b16 %v1743, %v1742
        %v1864 = vpack.c.b16 %v1745, %v1744
        %v1865 = vpack.c.b16 %v1747, %v1746
        %v1866 = vpack.c.b16 %v1749, %v1748
        %v1867 = vpack.c.b16 %v1751, %v1750
        %v1868 = vpack.c.b16 %v1753, %v1752
        %v1869 = vpack.c.b16 %v1755, %v1754
        %v1870 = vpack.c.b16 %v1757, %v1756
        %v1871 = vpack.c.b16 %v1759, %v1758
        %v1872 = vpack.c.b16 %v1761, %v1760
        %v1873 = vpack.c.b16 %v1763, %v1762
        %v1874 = vpack.c.b16 %v1765, %v1764
        %v1875 = vpack.c.b16 %v1767, %v1766
        %v1876 = vpack.c.b16 %v1769, %v1768
        %v1877 = vpack.c.b16 %v1771, %v1770
        %v1878 = vpack.c.b16 %v1773, %v1772
        %v1879 = vpack.c.b16 %v1775, %v1774
        %v1880 = vpack.c.b16 %v1777, %v1776
        %v1881 = vpack.c.b16 %v1779, %v1778
        %v1882 = vpack.c.b16 %v1781, %v1780
        %v1883 = vpack.c.b16 %v1783, %v1782
        %v1884 = vpack.c.b16 %v1785, %v1784
        %v1885 = vpack.c.b16 %v1787, %v1786
        %v1886 = vpack.c.b16 %v1789, %v1788
        %v1887 = vpack.c.b16 %v1791, %v1790
        %v1888 = vpack.c.b16 %v1793, %v1792
        %v1889 = vpack.c.b16 %v1795, %v1794
        %v1890 = vpack.c.b16 %v1797, %v1796
        %v1891 = vpack.c.b16 %v1799, %v1798
        %v1892 = vpack.c.b16 %v1801, %v1800
        %v1893 = vpack.c.b16 %v1803, %v1802
        %v1894 = vpack.c.b16 %v1805, %v1804
        %v1895 = vpack.c.b16 %v1807, %v1806
        %v1896 = vpack.c.b16 %v1809, %v1808
        %v1897 = vpack.c.b16 %v1811, %v1810
        %v1898 = vpack.c.b16 %v1813, %v1812
        %v1899 = vpack.c.b16 %v1815, %v1814
        %v1900 = vpack.c.b16 %v1817, %v1816
        %v1901 = vpack.c.b16 %v1819, %v1818
        %v1902 = vpack.c.b16 %v1821, %v1820
        %v1903 = vpack.c.b16 %v1823, %v1822
        %v1904 = vpack.c.b16 %v1825, %v1824
        %v1905 = vpack.c.b16 %v1827, %v1826
        %v1906 = vpack.c.b16 %v1829, %v1828
        %v1907 = vpack.c.b16 %v1831, %v1830
        %v1908 = vpack.c.b16 %v1833, %v1832
        %v1909 = vpack.c.b16 %v1835, %v1834
        %v1910 = vpack.c.b16 %v1837, %v1836
        %v1911 = vpack.c.b16 %v1839, %v1838
        %v1912 = vpack.c.b16 %v1841, %v1840
        %v1913 = vpack.c.b16 %v1843, %v1842
        %v1914 = vpack.c.b16 %v1845, %v1844
        %v1915 = vpack.c.b16 %v1847, %v1846
        %v1916 = vpack.c.b16 %v1849, %v1848
        %v1917 = vpack.c.b16 %v1851, %v1850
        %v1918 = vpack.c.b16 %v1853, %v1852
        %v1919 = vpack.c.b16 %v1855, %v1854
        %v1928 = vunpack.c.l.b16 %v398
        %v1929 = vunpack.c.l.b16 %v399
        %v1930 = vunpack.c.l.b16 %v400
        %v1931 = vunpack.c.l.b16 %v401
        %v1932 = vunpack.c.l.b16 %v402
        %v1933 = vunpack.c.l.b16 %v403
        %v1934 = vunpack.c.l.b16 %v404
        %v1935 = vunpack.c.l.b16 %v405
        %v1936 = vpack.c.b16 %v1929, %v1928
        %v1937 = vpack.c.b16 %v1931, %v1930
        %v1938 = vpack.c.b16 %v1933, %v1932
        %v1939 = vpack.c.b16 %v1935, %v1934
        %vm1944 = vcmask 523264
        %v1946 = vsel %vm1944, %v1856, 0
        %v1949 = vsel %vm1944, %v1857, 0
        %v1952 = vsel %vm1944, %v1858, 0
        %v1955 = vsel %vm1944, %v1859, 0
        %v1958 = vsel %vm1944, %v1860, 0
        %v1961 = vsel %vm1944, %v1861, 0
        %v1964 = vsel %vm1944, %v1862, 0
        %v1967 = vsel %vm1944, %v1863, 0
        %v1970 = vsel %vm1944, %v1864, 0
        %v1973 = vsel %vm1944, %v1865, 0
        %v1976 = vsel %vm1944, %v1866, 0
        %v1979 = vsel %vm1944, %v1867, 0
        %v1982 = vsel %vm1944, %v1868, 0
        %v1985 = vsel %vm1944, %v1869, 0
        %v1988 = vsel %vm1944, %v1870, 0
        %v1991 = vsel %vm1944, %v1871, 0
        %v1994 = vsel %vm1944, %v1872, 0
        %v1997 = vsel %vm1944, %v1873, 0
        %v2000 = vsel %vm1944, %v1874, 0
        %v2003 = vsel %vm1944, %v1875, 0
        %v2006 = vsel %vm1944, %v1876, 0
        %v2009 = vsel %vm1944, %v1877, 0
        %v2012 = vsel %vm1944, %v1878, 0
        %v2015 = vsel %vm1944, %v1879, 0
        %v2018 = vsel %vm1944, %v1880, 0
        %v2021 = vsel %vm1944, %v1881, 0
        %v2024 = vsel %vm1944, %v1882, 0
        %v2027 = vsel %vm1944, %v1883, 0
        %v2030 = vsel %vm1944, %v1884, 0
        %v2033 = vsel %vm1944, %v1885, 0
        %v2036 = vsel %vm1944, %v1886, 0
        %v2039 = vsel %vm1944, %v1887, 0
        %v2042 = vsel %vm1944, %v1888, 0
        %v2045 = vsel %vm1944, %v1889, 0
        %v2048 = vsel %vm1944, %v1890, 0
        %v2051 = vsel %vm1944, %v1891, 0
        %v2054 = vsel %vm1944, %v1892, 0
        %v2057 = vsel %vm1944, %v1893, 0
        %v2060 = vsel %vm1944, %v1894, 0
        %v2063 = vsel %vm1944, %v1895, 0
        %v2066 = vsel %vm1944, %v1896, 0
        %v2069 = vsel %vm1944, %v1897, 0
        %v2072 = vsel %vm1944, %v1898, 0
        %v2075 = vsel %vm1944, %v1899, 0
        %v2078 = vsel %vm1944, %v1900, 0
        %v2081 = vsel %vm1944, %v1901, 0
        %v2084 = vsel %vm1944, %v1902, 0
        %v2087 = vsel %vm1944, %v1903, 0
        %v2090 = vsel %vm1944, %v1904, 0
        %v2093 = vsel %vm1944, %v1905, 0
        %v2096 = vsel %vm1944, %v1906, 0
        %v2099 = vsel %vm1944, %v1907, 0
        %v2102 = vsel %vm1944, %v1908, 0
        %v2105 = vsel %vm1944, %v1909, 0
        %v2108 = vsel %vm1944, %v1910, 0
        %v2111 = vsel %vm1944, %v1911, 0
        %v2114 = vsel %vm1944, %v1912, 0
        %v2117 = vsel %vm1944, %v1913, 0
        %v2120 = vsel %vm1944, %v1914, 0
        %v2123 = vsel %vm1944, %v1915, 0
        %v2126 = vsel %vm1944, %v1916, 0
        %v2129 = vsel %vm1944, %v1917, 0
        %v2132 = vsel %vm1944, %v1918, 0
        %v2135 = vsel %vm1944, %v1919, 0
        %2137 = vmatprep.subr.bf16.mxu0 0
        %2138 = vmatpush1.bf16.msra.mxu0 %v1936
        %2139 = vmatprep.subr.bf16.mxu0 0
        %2140 = vmatpush1.bf16.msra.mxu0 %v1937
        %2141 = vmatprep.subr.bf16.mxu0 0
        %2142 = vmatpush1.bf16.msra.mxu0 %v1938
        %2143 = vmatprep.subr.bf16.mxu0 0
        %2144 = vmatpush1.bf16.msra.mxu0 %v1939
        %2145 = vmatprep.subr.bf16.mxu0 0
        %2146 = vmatpush1.bf16.msra.mxu0 0
        %2147 = vmatprep.subr.bf16.mxu0 0
        %2148 = vmatpush1.bf16.msra.mxu0 0
        %2149 = vmatprep.subr.bf16.mxu0 0
        %2150 = vmatpush1.bf16.msra.mxu0 0
        %2151 = vmatprep.subr.bf16.mxu0 0
        %2152 = vmatpush1.bf16.msra.mxu0 0
        %2153 = vmatprep.subr.bf16.mxu0 0
        %2154 = vmatpush1.bf16.msra.mxu0 0
        %2155 = vmatprep.subr.bf16.mxu0 0
        %2156 = vmatpush1.bf16.msra.mxu0 0
        %2157 = vmatprep.subr.bf16.mxu0 0
        %2158 = vmatpush1.bf16.msra.mxu0 0
        %2159 = vmatprep.subr.bf16.mxu0 0
        %2160 = vmatpush1.bf16.msra.mxu0 0
        %2161 = vmatprep.subr.bf16.mxu0 0
        %2162 = vmatpush1.bf16.msra.mxu0 0
        %2163 = vmatprep.subr.bf16.mxu0 0
        %2164 = vmatpush1.bf16.msra.mxu0 0
        %2165 = vmatprep.subr.bf16.mxu0 0
        %2166 = vmatpush1.bf16.msra.mxu0 0
        %2167 = vmatprep.subr.bf16.mxu0 0
        %2168 = vmatpush1.bf16.msra.mxu0 0
        %2169 = vmatprep.mubr.bf16.mxu0 0
        %2170 = vmatmul.mubr.bf16.gmra.mrb[0].mxu0 %v1946
        %v2171 = vpop.f32.mrb[0].mxu0
        %v2172 = vadd.f32 %v1090, %v2171
        %v2173 = vpop.f32.mrb[0].mxu0
        %v2174 = vpop.f32.mrb[0].mxu0
        %v2175 = vadd.f32 %v1093, %v2174
        %v2176 = vpop.f32.mrb[0].mxu0
        %2177 = vmatprep.mubr.bf16.mxu0 0
        %2178 = vmatmul.mubr.bf16.gmra.mrb[0].mxu0 %v1949
        %v2179 = vpop.f32.mrb[0].mxu0
        %v2180 = vadd.f32 %v1098, %v2179
        %v2181 = vpop.f32.mrb[0].mxu0
        %v2182 = vpop.f32.mrb[0].mxu0
        %v2183 = vadd.f32 %v1101, %v2182
        %v2184 = vpop.f32.mrb[0].mxu0
        %2185 = vmatprep.mubr.bf16.mxu0 0
        %2186 = vmatmul.mubr.bf16.gmra.mrb[0].mxu0 %v1952
        %v2187 = vpop.f32.mrb[0].mxu0
        %v2188 = vadd.f32 %v1106, %v2187
        %v2189 = vpop.f32.mrb[0].mxu0
        %v2190 = vpop.f32.mrb[0].mxu0
        %v2191 = vadd.f32 %v1109, %v2190
        %v2192 = vpop.f32.mrb[0].mxu0
        %2193 = vmatprep.mubr.bf16.mxu0 0
        %2194 = vmatmul.mubr.bf16.gmra.mrb[0].mxu0 %v1955
        %v2195 = vpop.f32.mrb[0].mxu0
        %v2196 = vadd.f32 %v1114, %v2195
        %v2197 = vpop.f32.mrb[0].mxu0
        %v2198 = vpop.f32.mrb[0].mxu0
        %v2199 = vadd.f32 %v1117, %v2198
        %v2200 = vpop.f32.mrb[0].mxu0
        %2201 = vmatprep.mubr.bf16.mxu0 0
        %2202 = vmatmul.mubr.bf16.gmra.mrb[0].mxu0 %v1958
        %v2203 = vpop.f32.mrb[0].mxu0
        %v2204 = vadd.f32 %v1122, %v2203
        %v2205 = vpop.f32.mrb[0].mxu0
        %v2206 = vpop.f32.mrb[0].mxu0
        %v2207 = vadd.f32 %v1125, %v2206
        %v2208 = vpop.f32.mrb[0].mxu0
        %2209 = vmatprep.mubr.bf16.mxu0 0
        %2210 = vmatmul.mubr.bf16.gmra.mrb[0].mxu0 %v1961
        %v2211 = vpop.f32.mrb[0].mxu0
        %v2212 = vadd.f32 %v1130, %v2211
        %v2213 = vpop.f32.mrb[0].mxu0
        %v2214 = vpop.f32.mrb[0].mxu0
        %v2215 = vadd.f32 %v1133, %v2214
        %v2216 = vpop.f32.mrb[0].mxu0
        %2217 = vmatprep.mubr.bf16.mxu0 0
        %2218 = vmatmul.mubr.bf16.gmra.mrb[0].mxu0 %v1964
        %v2219 = vpop.f32.mrb[0].mxu0
        %v2220 = vadd.f32 %v1138, %v2219
        %v2221 = vpop.f32.mrb[0].mxu0
        %v2222 = vpop.f32.mrb[0].mxu0
        %v2223 = vadd.f32 %v1141, %v2222
        %v2224 = vpop.f32.mrb[0].mxu0
        %2225 = vmatprep.mubr.bf16.mxu0 0
        %2226 = vmatmul.mubr.bf16.gmra.mrb[0].mxu0 %v1967
        %v2227 = vpop.f32.mrb[0].mxu0
        %v2228 = vadd.f32 %v1146, %v2227
        %v2229 = vpop.f32.mrb[0].mxu0
        %v2230 = vpop.f32.mrb[0].mxu0
        %v2231 = vadd.f32 %v1149, %v2230
        %v2232 = vpop.f32.mrb[0].mxu0
        %2233 = vmatprep.mubr.bf16.mxu0 0
        %2234 = vmatmul.mubr.bf16.gmra.mrb[0].mxu0 %v1970
        %v2235 = vpop.f32.mrb[0].mxu0
        %v2236 = vadd.f32 %v1154, %v2235
        %v2237 = vpop.f32.mrb[0].mxu0
        %v2238 = vpop.f32.mrb[0].mxu0
        %v2239 = vadd.f32 %v1157, %v2238
        %v2240 = vpop.f32.mrb[0].mxu0
        %2241 = vmatprep.mubr.bf16.mxu0 0
        %2242 = vmatmul.mubr.bf16.gmra.mrb[0].mxu0 %v1973
        %v2243 = vpop.f32.mrb[0].mxu0
        %v2244 = vadd.f32 %v1162, %v2243
        %v2245 = vpop.f32.mrb[0].mxu0
        %v2246 = vpop.f32.mrb[0].mxu0
        %v2247 = vadd.f32 %v1165, %v2246
        %v2248 = vpop.f32.mrb[0].mxu0
        %2249 = vmatprep.mubr.bf16.mxu0 0
        %2250 = vmatmul.mubr.bf16.gmra.mrb[0].mxu0 %v1976
        %v2251 = vpop.f32.mrb[0].mxu0
        %v2252 = vadd.f32 %v1170, %v2251
        %v2253 = vpop.f32.mrb[0].mxu0
        %v2254 = vpop.f32.mrb[0].mxu0
        %v2255 = vadd.f32 %v1173, %v2254
        %v2256 = vpop.f32.mrb[0].mxu0
        %2257 = vmatprep.mubr.bf16.mxu0 0
        %2258 = vmatmul.mubr.bf16.gmra.mrb[0].mxu0 %v1979
        %v2259 = vpop.f32.mrb[0].mxu0
        %v2260 = vadd.f32 %v1178, %v2259
        %v2261 = vpop.f32.mrb[0].mxu0
        %v2262 = vpop.f32.mrb[0].mxu0
        %v2263 = vadd.f32 %v1181, %v2262
        %v2264 = vpop.f32.mrb[0].mxu0
        %2265 = vmatprep.mubr.bf16.mxu0 0
        %2266 = vmatmul.mubr.bf16.gmra.mrb[0].mxu0 %v1982
        %v2267 = vpop.f32.mrb[0].mxu0
        %v2268 = vadd.f32 %v1186, %v2267
        %v2269 = vpop.f32.mrb[0].mxu0
        %v2270 = vpop.f32.mrb[0].mxu0
        %v2271 = vadd.f32 %v1189, %v2270
        %v2272 = vpop.f32.mrb[0].mxu0
        %2273 = vmatprep.mubr.bf16.mxu0 0
        %2274 = vmatmul.mubr.bf16.gmra.mrb[0].mxu0 %v1985
        %v2275 = vpop.f32.mrb[0].mxu0
        %v2276 = vadd.f32 %v1194, %v2275
        %v2277 = vpop.f32.mrb[0].mxu0
        %v2278 = vpop.f32.mrb[0].mxu0
        %v2279 = vadd.f32 %v1197, %v2278
        %v2280 = vpop.f32.mrb[0].mxu0
        %2281 = vmatprep.mubr.bf16.mxu0 0
        %2282 = vmatmul.mubr.bf16.gmra.mrb[0].mxu0 %v1988
        %v2283 = vpop.f32.mrb[0].mxu0
        %v2284 = vadd.f32 %v1202, %v2283
        %v2285 = vpop.f32.mrb[0].mxu0
        %v2286 = vpop.f32.mrb[0].mxu0
        %v2287 = vadd.f32 %v1205, %v2286
        %v2288 = vpop.f32.mrb[0].mxu0
        %2289 = vmatprep.mubr.bf16.mxu0 0
        %2290 = vmatmul.mubr.bf16.gmra.mrb[0].mxu0 %v1991
        %v2291 = vpop.f32.mrb[0].mxu0
        %v2292 = vadd.f32 %v1210, %v2291
        %v2293 = vpop.f32.mrb[0].mxu0
        %v2294 = vpop.f32.mrb[0].mxu0
        %v2295 = vadd.f32 %v1213, %v2294
        %v2296 = vpop.f32.mrb[0].mxu0
        %2297 = vmatprep.mubr.bf16.mxu0 0
        %2298 = vmatmul.mubr.bf16.gmra.mrb[0].mxu0 %v1994
        %v2299 = vpop.f32.mrb[0].mxu0
        %v2300 = vadd.f32 %v1218, %v2299
        %v2301 = vpop.f32.mrb[0].mxu0
        %v2302 = vpop.f32.mrb[0].mxu0
        %v2303 = vadd.f32 %v1221, %v2302
        %v2304 = vpop.f32.mrb[0].mxu0
        %2305 = vmatprep.mubr.bf16.mxu0 0
        %2306 = vmatmul.mubr.bf16.gmra.mrb[0].mxu0 %v1997
        %v2307 = vpop.f32.mrb[0].mxu0
        %v2308 = vadd.f32 %v1226, %v2307
        %v2309 = vpop.f32.mrb[0].mxu0
        %v2310 = vpop.f32.mrb[0].mxu0
        %v2311 = vadd.f32 %v1229, %v2310
        %v2312 = vpop.f32.mrb[0].mxu0
        %2313 = vmatprep.mubr.bf16.mxu0 0
        %2314 = vmatmul.mubr.bf16.gmra.mrb[0].mxu0 %v2000
        %v2315 = vpop.f32.mrb[0].mxu0
        %v2316 = vadd.f32 %v1234, %v2315
        %v2317 = vpop.f32.mrb[0].mxu0
        %v2318 = vpop.f32.mrb[0].mxu0
        %v2319 = vadd.f32 %v1237, %v2318
        %v2320 = vpop.f32.mrb[0].mxu0
        %2321 = vmatprep.mubr.bf16.mxu0 0
        %2322 = vmatmul.mubr.bf16.gmra.mrb[0].mxu0 %v2003
        %v2323 = vpop.f32.mrb[0].mxu0
        %v2324 = vadd.f32 %v1242, %v2323
        %v2325 = vpop.f32.mrb[0].mxu0
        %v2326 = vpop.f32.mrb[0].mxu0
        %v2327 = vadd.f32 %v1245, %v2326
        %v2328 = vpop.f32.mrb[0].mxu0
        %2329 = vmatprep.mubr.bf16.mxu0 0
        %2330 = vmatmul.mubr.bf16.gmra.mrb[0].mxu0 %v2006
        %v2331 = vpop.f32.mrb[0].mxu0
        %v2332 = vadd.f32 %v1250, %v2331
        %v2333 = vpop.f32.mrb[0].mxu0
        %v2334 = vpop.f32.mrb[0].mxu0
        %v2335 = vadd.f32 %v1253, %v2334
        %v2336 = vpop.f32.mrb[0].mxu0
        %2337 = vmatprep.mubr.bf16.mxu0 0
        %2338 = vmatmul.mubr.bf16.gmra.mrb[0].mxu0 %v2009
        %v2339 = vpop.f32.mrb[0].mxu0
        %v2340 = vadd.f32 %v1258, %v2339
        %v2341 = vpop.f32.mrb[0].mxu0
        %v2342 = vpop.f32.mrb[0].mxu0
        %v2343 = vadd.f32 %v1261, %v2342
        %v2344 = vpop.f32.mrb[0].mxu0
        %2345 = vmatprep.mubr.bf16.mxu0 0
        %2346 = vmatmul.mubr.bf16.gmra.mrb[0].mxu0 %v2012
        %v2347 = vpop.f32.mrb[0].mxu0
        %v2348 = vadd.f32 %v1266, %v2347
        %v2349 = vpop.f32.mrb[0].mxu0
        %v2350 = vpop.f32.mrb[0].mxu0
        %v2351 = vadd.f32 %v1269, %v2350
        %v2352 = vpop.f32.mrb[0].mxu0
        %2353 = vmatprep.mubr.bf16.mxu0 0
        %2354 = vmatmul.mubr.bf16.gmra.mrb[0].mxu0 %v2015
        %v2355 = vpop.f32.mrb[0].mxu0
        %v2356 = vadd.f32 %v1274, %v2355
        %v2357 = vpop.f32.mrb[0].mxu0
        %v2358 = vpop.f32.mrb[0].mxu0
        %v2359 = vadd.f32 %v1277, %v2358
        %v2360 = vpop.f32.mrb[0].mxu0
        %2361 = vmatprep.mubr.bf16.mxu0 0
        %2362 = vmatmul.mubr.bf16.gmra.mrb[0].mxu0 %v2018
        %v2363 = vpop.f32.mrb[0].mxu0
        %v2364 = vadd.f32 %v1282, %v2363
        %v2365 = vpop.f32.mrb[0].mxu0
        %v2366 = vpop.f32.mrb[0].mxu0
        %v2367 = vadd.f32 %v1285, %v2366
        %v2368 = vpop.f32.mrb[0].mxu0
        %2369 = vmatprep.mubr.bf16.mxu0 0
        %2370 = vmatmul.mubr.bf16.gmra.mrb[0].mxu0 %v2021
        %v2371 = vpop.f32.mrb[0].mxu0
        %v2372 = vadd.f32 %v1290, %v2371
        %v2373 = vpop.f32.mrb[0].mxu0
        %v2374 = vpop.f32.mrb[0].mxu0
        %v2375 = vadd.f32 %v1293, %v2374
        %v2376 = vpop.f32.mrb[0].mxu0
        %2377 = vmatprep.mubr.bf16.mxu0 0
        %2378 = vmatmul.mubr.bf16.gmra.mrb[0].mxu0 %v2024
        %v2379 = vpop.f32.mrb[0].mxu0
        %v2380 = vadd.f32 %v1298, %v2379
        %v2381 = vpop.f32.mrb[0].mxu0
        %v2382 = vpop.f32.mrb[0].mxu0
        %v2383 = vadd.f32 %v1301, %v2382
        %v2384 = vpop.f32.mrb[0].mxu0
        %2385 = vmatprep.mubr.bf16.mxu0 0
        %2386 = vmatmul.mubr.bf16.gmra.mrb[0].mxu0 %v2027
        %v2387 = vpop.f32.mrb[0].mxu0
        %v2388 = vadd.f32 %v1306, %v2387
        %v2389 = vpop.f32.mrb[0].mxu0
        %v2390 = vpop.f32.mrb[0].mxu0
        %v2391 = vadd.f32 %v1309, %v2390
        %v2392 = vpop.f32.mrb[0].mxu0
        %2393 = vmatprep.mubr.bf16.mxu0 0
        %2394 = vmatmul.mubr.bf16.gmra.mrb[0].mxu0 %v2030
        %v2395 = vpop.f32.mrb[0].mxu0
        %v2396 = vadd.f32 %v1314, %v2395
        %v2397 = vpop.f32.mrb[0].mxu0
        %v2398 = vpop.f32.mrb[0].mxu0
        %v2399 = vadd.f32 %v1317, %v2398
        %v2400 = vpop.f32.mrb[0].mxu0
        %2401 = vmatprep.mubr.bf16.mxu0 0
        %2402 = vmatmul.mubr.bf16.gmra.mrb[0].mxu0 %v2033
        %v2403 = vpop.f32.mrb[0].mxu0
        %v2404 = vadd.f32 %v1322, %v2403
        %v2405 = vpop.f32.mrb[0].mxu0
        %v2406 = vpop.f32.mrb[0].mxu0
        %v2407 = vadd.f32 %v1325, %v2406
        %v2408 = vpop.f32.mrb[0].mxu0
        %2409 = vmatprep.mubr.bf16.mxu0 0
        %2410 = vmatmul.mubr.bf16.gmra.mrb[0].mxu0 %v2036
        %v2411 = vpop.f32.mrb[0].mxu0
        %v2412 = vadd.f32 %v1330, %v2411
        %v2413 = vpop.f32.mrb[0].mxu0
        %v2414 = vpop.f32.mrb[0].mxu0
        %v2415 = vadd.f32 %v1333, %v2414
        %v2416 = vpop.f32.mrb[0].mxu0
        %2417 = vmatprep.mubr.bf16.mxu0 0
        %2418 = vmatmul.mubr.bf16.gmra.mrb[0].mxu0 %v2039
        %v2419 = vpop.f32.mrb[0].mxu0
        %v2420 = vadd.f32 %v1338, %v2419
        %v2421 = vpop.f32.mrb[0].mxu0
        %v2422 = vpop.f32.mrb[0].mxu0
        %v2423 = vadd.f32 %v1341, %v2422
        %v2424 = vpop.f32.mrb[0].mxu0
        %2425 = vmatprep.mubr.bf16.mxu0 0
        %2426 = vmatmul.mubr.bf16.gmra.mrb[0].mxu0 %v2042
        %v2427 = vpop.f32.mrb[0].mxu0
        %v2428 = vadd.f32 %v1346, %v2427
        %v2429 = vpop.f32.mrb[0].mxu0
        %v2430 = vpop.f32.mrb[0].mxu0
        %v2431 = vadd.f32 %v1349, %v2430
        %v2432 = vpop.f32.mrb[0].mxu0
        %2433 = vmatprep.mubr.bf16.mxu0 0
        %2434 = vmatmul.mubr.bf16.gmra.mrb[0].mxu0 %v2045
        %v2435 = vpop.f32.mrb[0].mxu0
        %v2436 = vadd.f32 %v1354, %v2435
        %v2437 = vpop.f32.mrb[0].mxu0
        %v2438 = vpop.f32.mrb[0].mxu0
        %v2439 = vadd.f32 %v1357, %v2438
        %v2440 = vpop.f32.mrb[0].mxu0
        %2441 = vmatprep.mubr.bf16.mxu0 0
        %2442 = vmatmul.mubr.bf16.gmra.mrb[0].mxu0 %v2048
        %v2443 = vpop.f32.mrb[0].mxu0
        %v2444 = vadd.f32 %v1362, %v2443
        %v2445 = vpop.f32.mrb[0].mxu0
        %v2446 = vpop.f32.mrb[0].mxu0
        %v2447 = vadd.f32 %v1365, %v2446
        %v2448 = vpop.f32.mrb[0].mxu0
        %2449 = vmatprep.mubr.bf16.mxu0 0
        %2450 = vmatmul.mubr.bf16.gmra.mrb[0].mxu0 %v2051
        %v2451 = vpop.f32.mrb[0].mxu0
        %v2452 = vadd.f32 %v1370, %v2451
        %v2453 = vpop.f32.mrb[0].mxu0
        %v2454 = vpop.f32.mrb[0].mxu0
        %v2455 = vadd.f32 %v1373, %v2454
        %v2456 = vpop.f32.mrb[0].mxu0
        %2457 = vmatprep.mubr.bf16.mxu0 0
        %2458 = vmatmul.mubr.bf16.gmra.mrb[0].mxu0 %v2054
        %v2459 = vpop.f32.mrb[0].mxu0
        %v2460 = vadd.f32 %v1378, %v2459
        %v2461 = vpop.f32.mrb[0].mxu0
        %v2462 = vpop.f32.mrb[0].mxu0
        %v2463 = vadd.f32 %v1381, %v2462
        %v2464 = vpop.f32.mrb[0].mxu0
        %2465 = vmatprep.mubr.bf16.mxu0 0
        %2466 = vmatmul.mubr.bf16.gmra.mrb[0].mxu0 %v2057
        %v2467 = vpop.f32.mrb[0].mxu0
        %v2468 = vadd.f32 %v1386, %v2467
        %v2469 = vpop.f32.mrb[0].mxu0
        %v2470 = vpop.f32.mrb[0].mxu0
        %v2471 = vadd.f32 %v1389, %v2470
        %v2472 = vpop.f32.mrb[0].mxu0
        %2473 = vmatprep.mubr.bf16.mxu0 0
        %2474 = vmatmul.mubr.bf16.gmra.mrb[0].mxu0 %v2060
        %v2475 = vpop.f32.mrb[0].mxu0
        %v2476 = vadd.f32 %v1394, %v2475
        %v2477 = vpop.f32.mrb[0].mxu0
        %v2478 = vpop.f32.mrb[0].mxu0
        %v2479 = vadd.f32 %v1397, %v2478
        %v2480 = vpop.f32.mrb[0].mxu0
        %2481 = vmatprep.mubr.bf16.mxu0 0
        %2482 = vmatmul.mubr.bf16.gmra.mrb[0].mxu0 %v2063
        %v2483 = vpop.f32.mrb[0].mxu0
        %v2484 = vadd.f32 %v1402, %v2483
        %v2485 = vpop.f32.mrb[0].mxu0
        %v2486 = vpop.f32.mrb[0].mxu0
        %v2487 = vadd.f32 %v1405, %v2486
        %v2488 = vpop.f32.mrb[0].mxu0
        %2489 = vmatprep.mubr.bf16.mxu0 0
        %2490 = vmatmul.mubr.bf16.gmra.mrb[0].mxu0 %v2066
        %v2491 = vpop.f32.mrb[0].mxu0
        %v2492 = vadd.f32 %v1410, %v2491
        %v2493 = vpop.f32.mrb[0].mxu0
        %v2494 = vpop.f32.mrb[0].mxu0
        %v2495 = vadd.f32 %v1413, %v2494
        %v2496 = vpop.f32.mrb[0].mxu0
        %2497 = vmatprep.mubr.bf16.mxu0 0
        %2498 = vmatmul.mubr.bf16.gmra.mrb[0].mxu0 %v2069
        %v2499 = vpop.f32.mrb[0].mxu0
        %v2500 = vadd.f32 %v1418, %v2499
        %v2501 = vpop.f32.mrb[0].mxu0
        %v2502 = vpop.f32.mrb[0].mxu0
        %v2503 = vadd.f32 %v1421, %v2502
        %v2504 = vpop.f32.mrb[0].mxu0
        %2505 = vmatprep.mubr.bf16.mxu0 0
        %2506 = vmatmul.mubr.bf16.gmra.mrb[0].mxu0 %v2072
        %v2507 = vpop.f32.mrb[0].mxu0
        %v2508 = vadd.f32 %v1426, %v2507
        %v2509 = vpop.f32.mrb[0].mxu0
        %v2510 = vpop.f32.mrb[0].mxu0
        %v2511 = vadd.f32 %v1429, %v2510
        %v2512 = vpop.f32.mrb[0].mxu0
        %2513 = vmatprep.mubr.bf16.mxu0 0
        %2514 = vmatmul.mubr.bf16.gmra.mrb[0].mxu0 %v2075
        %v2515 = vpop.f32.mrb[0].mxu0
        %v2516 = vadd.f32 %v1434, %v2515
        %v2517 = vpop.f32.mrb[0].mxu0
        %v2518 = vpop.f32.mrb[0].mxu0
        %v2519 = vadd.f32 %v1437, %v2518
        %v2520 = vpop.f32.mrb[0].mxu0
        %2521 = vmatprep.mubr.bf16.mxu0 0
        %2522 = vmatmul.mubr.bf16.gmra.mrb[0].mxu0 %v2078
        %v2523 = vpop.f32.mrb[0].mxu0
        %v2524 = vadd.f32 %v1442, %v2523
        %v2525 = vpop.f32.mrb[0].mxu0
        %v2526 = vpop.f32.mrb[0].mxu0
        %v2527 = vadd.f32 %v1445, %v2526
        %v2528 = vpop.f32.mrb[0].mxu0
        %2529 = vmatprep.mubr.bf16.mxu0 0
        %2530 = vmatmul.mubr.bf16.gmra.mrb[0].mxu0 %v2081
        %v2531 = vpop.f32.mrb[0].mxu0
        %v2532 = vadd.f32 %v1450, %v2531
        %v2533 = vpop.f32.mrb[0].mxu0
        %v2534 = vpop.f32.mrb[0].mxu0
        %v2535 = vadd.f32 %v1453, %v2534
        %v2536 = vpop.f32.mrb[0].mxu0
        %2537 = vmatprep.mubr.bf16.mxu0 0
        %2538 = vmatmul.mubr.bf16.gmra.mrb[0].mxu0 %v2084
        %v2539 = vpop.f32.mrb[0].mxu0
        %v2540 = vadd.f32 %v1458, %v2539
        %v2541 = vpop.f32.mrb[0].mxu0
        %v2542 = vpop.f32.mrb[0].mxu0
        %v2543 = vadd.f32 %v1461, %v2542
        %v2544 = vpop.f32.mrb[0].mxu0
        %2545 = vmatprep.mubr.bf16.mxu0 0
        %2546 = vmatmul.mubr.bf16.gmra.mrb[0].mxu0 %v2087
        %v2547 = vpop.f32.mrb[0].mxu0
        %v2548 = vadd.f32 %v1466, %v2547
        %v2549 = vpop.f32.mrb[0].mxu0
        %v2550 = vpop.f32.mrb[0].mxu0
        %v2551 = vadd.f32 %v1469, %v2550
        %v2552 = vpop.f32.mrb[0].mxu0
        %2553 = vmatprep.mubr.bf16.mxu0 0
        %2554 = vmatmul.mubr.bf16.gmra.mrb[0].mxu0 %v2090
        %v2555 = vpop.f32.mrb[0].mxu0
        %v2556 = vadd.f32 %v1474, %v2555
        %v2557 = vpop.f32.mrb[0].mxu0
        %v2558 = vpop.f32.mrb[0].mxu0
        %v2559 = vadd.f32 %v1477, %v2558
        %v2560 = vpop.f32.mrb[0].mxu0
        %2561 = vmatprep.mubr.bf16.mxu0 0
        %2562 = vmatmul.mubr.bf16.gmra.mrb[0].mxu0 %v2093
        %v2563 = vpop.f32.mrb[0].mxu0
        %v2564 = vadd.f32 %v1482, %v2563
        %v2565 = vpop.f32.mrb[0].mxu0
        %v2566 = vpop.f32.mrb[0].mxu0
        %v2567 = vadd.f32 %v1485, %v2566
        %v2568 = vpop.f32.mrb[0].mxu0
        %2569 = vmatprep.mubr.bf16.mxu0 0
        %2570 = vmatmul.mubr.bf16.gmra.mrb[0].mxu0 %v2096
        %v2571 = vpop.f32.mrb[0].mxu0
        %v2572 = vadd.f32 %v1490, %v2571
        %v2573 = vpop.f32.mrb[0].mxu0
        %v2574 = vpop.f32.mrb[0].mxu0
        %v2575 = vadd.f32 %v1493, %v2574
        %v2576 = vpop.f32.mrb[0].mxu0
        %2577 = vmatprep.mubr.bf16.mxu0 0
        %2578 = vmatmul.mubr.bf16.gmra.mrb[0].mxu0 %v2099
        %v2579 = vpop.f32.mrb[0].mxu0
        %v2580 = vadd.f32 %v1498, %v2579
        %v2581 = vpop.f32.mrb[0].mxu0
        %v2582 = vpop.f32.mrb[0].mxu0
        %v2583 = vadd.f32 %v1501, %v2582
        %v2584 = vpop.f32.mrb[0].mxu0
        %2585 = vmatprep.mubr.bf16.mxu0 0
        %2586 = vmatmul.mubr.bf16.gmra.mrb[0].mxu0 %v2102
        %v2587 = vpop.f32.mrb[0].mxu0
        %v2588 = vadd.f32 %v1506, %v2587
        %v2589 = vpop.f32.mrb[0].mxu0
        %v2590 = vpop.f32.mrb[0].mxu0
        %v2591 = vadd.f32 %v1509, %v2590
        %v2592 = vpop.f32.mrb[0].mxu0
        %2593 = vmatprep.mubr.bf16.mxu0 0
        %2594 = vmatmul.mubr.bf16.gmra.mrb[0].mxu0 %v2105
        %v2595 = vpop.f32.mrb[0].mxu0
        %v2596 = vadd.f32 %v1514, %v2595
        %v2597 = vpop.f32.mrb[0].mxu0
        %v2598 = vpop.f32.mrb[0].mxu0
        %v2599 = vadd.f32 %v1517, %v2598
        %v2600 = vpop.f32.mrb[0].mxu0
        %2601 = vmatprep.mubr.bf16.mxu0 0
        %2602 = vmatmul.mubr.bf16.gmra.mrb[0].mxu0 %v2108
        %v2603 = vpop.f32.mrb[0].mxu0
        %v2604 = vadd.f32 %v1522, %v2603
        %v2605 = vpop.f32.mrb[0].mxu0
        %v2606 = vpop.f32.mrb[0].mxu0
        %v2607 = vadd.f32 %v1525, %v2606
        %v2608 = vpop.f32.mrb[0].mxu0
        %2609 = vmatprep.mubr.bf16.mxu0 0
        %2610 = vmatmul.mubr.bf16.gmra.mrb[0].mxu0 %v2111
        %v2611 = vpop.f32.mrb[0].mxu0
        %v2612 = vadd.f32 %v1530, %v2611
        %v2613 = vpop.f32.mrb[0].mxu0
        %v2614 = vpop.f32.mrb[0].mxu0
        %v2615 = vadd.f32 %v1533, %v2614
        %v2616 = vpop.f32.mrb[0].mxu0
        %2617 = vmatprep.mubr.bf16.mxu0 0
        %2618 = vmatmul.mubr.bf16.gmra.mrb[0].mxu0 %v2114
        %v2619 = vpop.f32.mrb[0].mxu0
        %v2620 = vadd.f32 %v1538, %v2619
        %v2621 = vpop.f32.mrb[0].mxu0
        %v2622 = vpop.f32.mrb[0].mxu0
        %v2623 = vadd.f32 %v1541, %v2622
        %v2624 = vpop.f32.mrb[0].mxu0
        %2625 = vmatprep.mubr.bf16.mxu0 0
        %2626 = vmatmul.mubr.bf16.gmra.mrb[0].mxu0 %v2117
        %v2627 = vpop.f32.mrb[0].mxu0
        %v2628 = vadd.f32 %v1546, %v2627
        %v2629 = vpop.f32.mrb[0].mxu0
        %v2630 = vpop.f32.mrb[0].mxu0
        %v2631 = vadd.f32 %v1549, %v2630
        %v2632 = vpop.f32.mrb[0].mxu0
        %2633 = vmatprep.mubr.bf16.mxu0 0
        %2634 = vmatmul.mubr.bf16.gmra.mrb[0].mxu0 %v2120
        %v2635 = vpop.f32.mrb[0].mxu0
        %v2636 = vadd.f32 %v1554, %v2635
        %v2637 = vpop.f32.mrb[0].mxu0
        %v2638 = vpop.f32.mrb[0].mxu0
        %v2639 = vadd.f32 %v1557, %v2638
        %v2640 = vpop.f32.mrb[0].mxu0
        %2641 = vmatprep.mubr.bf16.mxu0 0
        %2642 = vmatmul.mubr.bf16.gmra.mrb[0].mxu0 %v2123
        %v2643 = vpop.f32.mrb[0].mxu0
        %v2644 = vadd.f32 %v1562, %v2643
        %v2645 = vpop.f32.mrb[0].mxu0
        %v2646 = vpop.f32.mrb[0].mxu0
        %v2647 = vadd.f32 %v1565, %v2646
        %v2648 = vpop.f32.mrb[0].mxu0
        %2649 = vmatprep.mubr.bf16.mxu0 0
        %2650 = vmatmul.mubr.bf16.gmra.mrb[0].mxu0 %v2126
        %v2651 = vpop.f32.mrb[0].mxu0
        %v2652 = vadd.f32 %v1570, %v2651
        %v2653 = vpop.f32.mrb[0].mxu0
        %v2654 = vpop.f32.mrb[0].mxu0
        %v2655 = vadd.f32 %v1573, %v2654
        %v2656 = vpop.f32.mrb[0].mxu0
        %2657 = vmatprep.mubr.bf16.mxu0 0
        %2658 = vmatmul.mubr.bf16.gmra.mrb[0].mxu0 %v2129
        %v2659 = vpop.f32.mrb[0].mxu0
        %v2660 = vadd.f32 %v1578, %v2659
        %v2661 = vpop.f32.mrb[0].mxu0
        %v2662 = vpop.f32.mrb[0].mxu0
        %v2663 = vadd.f32 %v1581, %v2662
        %v2664 = vpop.f32.mrb[0].mxu0
        %2665 = vmatprep.mubr.bf16.mxu0 0
        %2666 = vmatmul.mubr.bf16.gmra.mrb[0].mxu0 %v2132
        %v2667 = vpop.f32.mrb[0].mxu0
        %v2668 = vadd.f32 %v1586, %v2667
        %v2669 = vpop.f32.mrb[0].mxu0
        %v2670 = vpop.f32.mrb[0].mxu0
        %v2671 = vadd.f32 %v1589, %v2670
        %v2672 = vpop.f32.mrb[0].mxu0
        %2673 = vmatprep.mubr.bf16.mxu0 0
        %2674 = vmatmul.mubr.bf16.gmra.mrb[0].mxu0 %v2135
        %v2675 = vpop.f32.mrb[0].mxu0
        %v2676 = vadd.f32 %v1594, %v2675
        %v2677 = vpop.f32.mrb[0].mxu0
        %v2678 = vpop.f32.mrb[0].mxu0
        %v2679 = vadd.f32 %v1597, %v2678
        %v2680 = vpop.f32.mrb[0].mxu0
        %2681 = vdwg.mxu0
        %v2682 = vmax.f32 %v2172, 0.0
        %v2683 = vmax.f32 %v2175, 0.0
        %v2684 = vmax.f32 %v2180, 0.0
        %v2685 = vmax.f32 %v2183, 0.0
        %v2686 = vmax.f32 %v2188, 0.0
        %v2687 = vmax.f32 %v2191, 0.0
        %v2688 = vmax.f32 %v2196, 0.0
        %v2689 = vmax.f32 %v2199, 0.0
        %v2690 = vmax.f32 %v2204, 0.0
        %v2691 = vmax.f32 %v2207, 0.0
        %v2692 = vmax.f32 %v2212, 0.0
        %v2693 = vmax.f32 %v2215, 0.0
        %v2694 = vmax.f32 %v2220, 0.0
        %v2695 = vmax.f32 %v2223, 0.0
        %v2696 = vmax.f32 %v2228, 0.0
        %v2697 = vmax.f32 %v2231, 0.0
        %v2698 = vmax.f32 %v2236, 0.0
        %v2699 = vmax.f32 %v2239, 0.0
        %v2700 = vmax.f32 %v2244, 0.0
        %v2701 = vmax.f32 %v2247, 0.0
        %v2702 = vmax.f32 %v2252, 0.0
        %v2703 = vmax.f32 %v2255, 0.0
        %v2704 = vmax.f32 %v2260, 0.0
        %v2705 = vmax.f32 %v2263, 0.0
        %v2706 = vmax.f32 %v2268, 0.0
        %v2707 = vmax.f32 %v2271, 0.0
        %v2708 = vmax.f32 %v2276, 0.0
        %v2709 = vmax.f32 %v2279, 0.0
        %v2710 = vmax.f32 %v2284, 0.0
        %v2711 = vmax.f32 %v2287, 0.0
        %v2712 = vmax.f32 %v2292, 0.0
        %v2713 = vmax.f32 %v2295, 0.0
        %v2714 = vmax.f32 %v2300, 0.0
        %v2715 = vmax.f32 %v2303, 0.0
        %v2716 = vmax.f32 %v2308, 0.0
        %v2717 = vmax.f32 %v2311, 0.0
        %v2718 = vmax.f32 %v2316, 0.0
        %v2719 = vmax.f32 %v2319, 0.0
        %v2720 = vmax.f32 %v2324, 0.0
        %v2721 = vmax.f32 %v2327, 0.0
        %v2722 = vmax.f32 %v2332, 0.0
        %v2723 = vmax.f32 %v2335, 0.0
        %v2724 = vmax.f32 %v2340, 0.0
        %v2725 = vmax.f32 %v2343, 0.0
        %v2726 = vmax.f32 %v2348, 0.0
        %v2727 = vmax.f32 %v2351, 0.0
        %v2728 = vmax.f32 %v2356, 0.0
        %v2729 = vmax.f32 %v2359, 0.0
        %v2730 = vmax.f32 %v2364, 0.0
        %v2731 = vmax.f32 %v2367, 0.0
        %v2732 = vmax.f32 %v2372, 0.0
        %v2733 = vmax.f32 %v2375, 0.0
        %v2734 = vmax.f32 %v2380, 0.0
        %v2735 = vmax.f32 %v2383, 0.0
        %v2736 = vmax.f32 %v2388, 0.0
        %v2737 = vmax.f32 %v2391, 0.0
        %v2738 = vmax.f32 %v2396, 0.0
        %v2739 = vmax.f32 %v2399, 0.0
        %v2740 = vmax.f32 %v2404, 0.0
        %v2741 = vmax.f32 %v2407, 0.0
        %v2742 = vmax.f32 %v2412, 0.0
        %v2743 = vmax.f32 %v2415, 0.0
        %v2744 = vmax.f32 %v2420, 0.0
        %v2745 = vmax.f32 %v2423, 0.0
        %v2746 = vmax.f32 %v2428, 0.0
        %v2747 = vmax.f32 %v2431, 0.0
        %v2748 = vmax.f32 %v2436, 0.0
        %v2749 = vmax.f32 %v2439, 0.0
        %v2750 = vmax.f32 %v2444, 0.0
        %v2751 = vmax.f32 %v2447, 0.0
        %v2752 = vmax.f32 %v2452, 0.0
        %v2753 = vmax.f32 %v2455, 0.0
        %v2754 = vmax.f32 %v2460, 0.0
        %v2755 = vmax.f32 %v2463, 0.0
        %v2756 = vmax.f32 %v2468, 0.0
        %v2757 = vmax.f32 %v2471, 0.0
        %v2758 = vmax.f32 %v2476, 0.0
        %v2759 = vmax.f32 %v2479, 0.0
        %v2760 = vmax.f32 %v2484, 0.0
        %v2761 = vmax.f32 %v2487, 0.0
        %v2762 = vmax.f32 %v2492, 0.0
        %v2763 = vmax.f32 %v2495, 0.0
        %v2764 = vmax.f32 %v2500, 0.0
        %v2765 = vmax.f32 %v2503, 0.0
        %v2766 = vmax.f32 %v2508, 0.0
        %v2767 = vmax.f32 %v2511, 0.0
        %v2768 = vmax.f32 %v2516, 0.0
        %v2769 = vmax.f32 %v2519, 0.0
        %v2770 = vmax.f32 %v2524, 0.0
        %v2771 = vmax.f32 %v2527, 0.0
        %v2772 = vmax.f32 %v2532, 0.0
        %v2773 = vmax.f32 %v2535, 0.0
        %v2774 = vmax.f32 %v2540, 0.0
        %v2775 = vmax.f32 %v2543, 0.0
        %v2776 = vmax.f32 %v2548, 0.0
        %v2777 = vmax.f32 %v2551, 0.0
        %v2778 = vmax.f32 %v2556, 0.0
        %v2779 = vmax.f32 %v2559, 0.0
        %v2780 = vmax.f32 %v2564, 0.0
        %v2781 = vmax.f32 %v2567, 0.0
        %v2782 = vmax.f32 %v2572, 0.0
        %v2783 = vmax.f32 %v2575, 0.0
        %v2784 = vmax.f32 %v2580, 0.0
        %v2785 = vmax.f32 %v2583, 0.0
        %v2786 = vmax.f32 %v2588, 0.0
        %v2787 = vmax.f32 %v2591, 0.0
        %v2788 = vmax.f32 %v2596, 0.0
        %v2789 = vmax.f32 %v2599, 0.0
        %v2790 = vmax.f32 %v2604, 0.0
        %v2791 = vmax.f32 %v2607, 0.0
        %v2792 = vmax.f32 %v2612, 0.0
        %v2793 = vmax.f32 %v2615, 0.0
        %v2794 = vmax.f32 %v2620, 0.0
        %v2795 = vmax.f32 %v2623, 0.0
        %v2796 = vmax.f32 %v2628, 0.0
        %v2797 = vmax.f32 %v2631, 0.0
        %v2798 = vmax.f32 %v2636, 0.0
        %v2799 = vmax.f32 %v2639, 0.0
        %v2800 = vmax.f32 %v2644, 0.0
        %v2801 = vmax.f32 %v2647, 0.0
        %v2802 = vmax.f32 %v2652, 0.0
        %v2803 = vmax.f32 %v2655, 0.0
        %v2804 = vmax.f32 %v2660, 0.0
        %v2805 = vmax.f32 %v2663, 0.0
        %v2806 = vmax.f32 %v2668, 0.0
        %v2807 = vmax.f32 %v2671, 0.0
        %v2808 = vmax.f32 %v2676, 0.0
        %v2809 = vmax.f32 %v2679, 0.0
        %2810 = vst.msk [vmem:[%s247] sm:$0xff] %vm1944, %v2682
        %2811 = vst.msk [vmem:[%s247 + $0x8] sm:$0xff] %vm1944, %v2683
        %2812 = vst.msk [vmem:[%s247 + $0x10] sm:$0xff] %vm1944, %v2684
        %2813 = vst.msk [vmem:[%s247 + $0x18] sm:$0xff] %vm1944, %v2685
        %2814 = vst.msk [vmem:[%s247 + $0x20] sm:$0xff] %vm1944, %v2686
        %2815 = vst.msk [vmem:[%s247 + $0x28] sm:$0xff] %vm1944, %v2687
        %2816 = vst.msk [vmem:[%s247 + $0x30] sm:$0xff] %vm1944, %v2688
        %2817 = vst.msk [vmem:[%s247 + $0x38] sm:$0xff] %vm1944, %v2689
        %2818 = vst.msk [vmem:[%s247 + $0x40] sm:$0xff] %vm1944, %v2690
        %2819 = vst.msk [vmem:[%s247 + $0x48] sm:$0xff] %vm1944, %v2691
        %2820 = vst.msk [vmem:[%s247 + $0x50] sm:$0xff] %vm1944, %v2692
        %2821 = vst.msk [vmem:[%s247 + $0x58] sm:$0xff] %vm1944, %v2693
        %2822 = vst.msk [vmem:[%s247 + $0x60] sm:$0xff] %vm1944, %v2694
        %2823 = vst.msk [vmem:[%s247 + $0x68] sm:$0xff] %vm1944, %v2695
        %2824 = vst.msk [vmem:[%s247 + $0x70] sm:$0xff] %vm1944, %v2696
        %2825 = vst.msk [vmem:[%s247 + $0x78] sm:$0xff] %vm1944, %v2697
        %2826 = vst.msk [vmem:[%s247 + $0x80] sm:$0xff] %vm1944, %v2698
        %2827 = vst.msk [vmem:[%s247 + $0x88] sm:$0xff] %vm1944, %v2699
        %2828 = vst.msk [vmem:[%s247 + $0x90] sm:$0xff] %vm1944, %v2700
        %2829 = vst.msk [vmem:[%s247 + $0x98] sm:$0xff] %vm1944, %v2701
        %2830 = vst.msk [vmem:[%s247 + $0xa0] sm:$0xff] %vm1944, %v2702
        %2831 = vst.msk [vmem:[%s247 + $0xa8] sm:$0xff] %vm1944, %v2703
        %2832 = vst.msk [vmem:[%s247 + $0xb0] sm:$0xff] %vm1944, %v2704
        %2833 = vst.msk [vmem:[%s247 + $0xb8] sm:$0xff] %vm1944, %v2705
        %2834 = vst.msk [vmem:[%s247 + $0xc0] sm:$0xff] %vm1944, %v2706
        %2835 = vst.msk [vmem:[%s247 + $0xc8] sm:$0xff] %vm1944, %v2707
        %2836 = vst.msk [vmem:[%s247 + $0xd0] sm:$0xff] %vm1944, %v2708
        %2837 = vst.msk [vmem:[%s247 + $0xd8] sm:$0xff] %vm1944, %v2709
        %2838 = vst.msk [vmem:[%s247 + $0xe0] sm:$0xff] %vm1944, %v2710
        %2839 = vst.msk [vmem:[%s247 + $0xe8] sm:$0xff] %vm1944, %v2711
        %2840 = vst.msk [vmem:[%s247 + $0xf0] sm:$0xff] %vm1944, %v2712
        %2841 = vst.msk [vmem:[%s247 + $0xf8] sm:$0xff] %vm1944, %v2713
        %2842 = vst.msk [vmem:[%s247 + $0x100] sm:$0xff] %vm1944, %v2714
        %2843 = vst.msk [vmem:[%s247 + $0x108] sm:$0xff] %vm1944, %v2715
        %2844 = vst.msk [vmem:[%s247 + $0x110] sm:$0xff] %vm1944, %v2716
        %2845 = vst.msk [vmem:[%s247 + $0x118] sm:$0xff] %vm1944, %v2717
        %2846 = vst.msk [vmem:[%s247 + $0x120] sm:$0xff] %vm1944, %v2718
        %2847 = vst.msk [vmem:[%s247 + $0x128] sm:$0xff] %vm1944, %v2719
        %2848 = vst.msk [vmem:[%s247 + $0x130] sm:$0xff] %vm1944, %v2720
        %2849 = vst.msk [vmem:[%s247 + $0x138] sm:$0xff] %vm1944, %v2721
        %2850 = vst.msk [vmem:[%s247 + $0x140] sm:$0xff] %vm1944, %v2722
        %2851 = vst.msk [vmem:[%s247 + $0x148] sm:$0xff] %vm1944, %v2723
        %2852 = vst.msk [vmem:[%s247 + $0x150] sm:$0xff] %vm1944, %v2724
        %2853 = vst.msk [vmem:[%s247 + $0x158] sm:$0xff] %vm1944, %v2725
        %2854 = vst.msk [vmem:[%s247 + $0x160] sm:$0xff] %vm1944, %v2726
        %2855 = vst.msk [vmem:[%s247 + $0x168] sm:$0xff] %vm1944, %v2727
        %2856 = vst.msk [vmem:[%s247 + $0x170] sm:$0xff] %vm1944, %v2728
        %2857 = vst.msk [vmem:[%s247 + $0x178] sm:$0xff] %vm1944, %v2729
        %2858 = vst.msk [vmem:[%s247 + $0x180] sm:$0xff] %vm1944, %v2730
        %2859 = vst.msk [vmem:[%s247 + $0x188] sm:$0xff] %vm1944, %v2731
        %2860 = vst.msk [vmem:[%s247 + $0x190] sm:$0xff] %vm1944, %v2732
        %2861 = vst.msk [vmem:[%s247 + $0x198] sm:$0xff] %vm1944, %v2733
        %2862 = vst.msk [vmem:[%s247 + $0x1a0] sm:$0xff] %vm1944, %v2734
        %2863 = vst.msk [vmem:[%s247 + $0x1a8] sm:$0xff] %vm1944, %v2735
        %2864 = vst.msk [vmem:[%s247 + $0x1b0] sm:$0xff] %vm1944, %v2736
        %2865 = vst.msk [vmem:[%s247 + $0x1b8] sm:$0xff] %vm1944, %v2737
        %2866 = vst.msk [vmem:[%s247 + $0x1c0] sm:$0xff] %vm1944, %v2738
        %2867 = vst.msk [vmem:[%s247 + $0x1c8] sm:$0xff] %vm1944, %v2739
        %2868 = vst.msk [vmem:[%s247 + $0x1d0] sm:$0xff] %vm1944, %v2740
        %2869 = vst.msk [vmem:[%s247 + $0x1d8] sm:$0xff] %vm1944, %v2741
        %2870 = vst.msk [vmem:[%s247 + $0x1e0] sm:$0xff] %vm1944, %v2742
        %2871 = vst.msk [vmem:[%s247 + $0x1e8] sm:$0xff] %vm1944, %v2743
        %2872 = vst.msk [vmem:[%s247 + $0x1f0] sm:$0xff] %vm1944, %v2744
        %2873 = vst.msk [vmem:[%s247 + $0x1f8] sm:$0xff] %vm1944, %v2745
        %2874 = vst.msk [vmem:[%s247 + $0x200] sm:$0xff] %vm1944, %v2746
        %2875 = vst.msk [vmem:[%s247 + $0x208] sm:$0xff] %vm1944, %v2747
        %2876 = vst.msk [vmem:[%s247 + $0x210] sm:$0xff] %vm1944, %v2748
        %2877 = vst.msk [vmem:[%s247 + $0x218] sm:$0xff] %vm1944, %v2749
        %2878 = vst.msk [vmem:[%s247 + $0x220] sm:$0xff] %vm1944, %v2750
        %2879 = vst.msk [vmem:[%s247 + $0x228] sm:$0xff] %vm1944, %v2751
        %2880 = vst.msk [vmem:[%s247 + $0x230] sm:$0xff] %vm1944, %v2752
        %2881 = vst.msk [vmem:[%s247 + $0x238] sm:$0xff] %vm1944, %v2753
        %2882 = vst.msk [vmem:[%s247 + $0x240] sm:$0xff] %vm1944, %v2754
        %2883 = vst.msk [vmem:[%s247 + $0x248] sm:$0xff] %vm1944, %v2755
        %2884 = vst.msk [vmem:[%s247 + $0x250] sm:$0xff] %vm1944, %v2756
        %2885 = vst.msk [vmem:[%s247 + $0x258] sm:$0xff] %vm1944, %v2757
        %2886 = vst.msk [vmem:[%s247 + $0x260] sm:$0xff] %vm1944, %v2758
        %2887 = vst.msk [vmem:[%s247 + $0x268] sm:$0xff] %vm1944, %v2759
        %2888 = vst.msk [vmem:[%s247 + $0x270] sm:$0xff] %vm1944, %v2760
        %2889 = vst.msk [vmem:[%s247 + $0x278] sm:$0xff] %vm1944, %v2761
        %2890 = vst.msk [vmem:[%s247 + $0x280] sm:$0xff] %vm1944, %v2762
        %2891 = vst.msk [vmem:[%s247 + $0x288] sm:$0xff] %vm1944, %v2763
        %2892 = vst.msk [vmem:[%s247 + $0x290] sm:$0xff] %vm1944, %v2764
        %2893 = vst.msk [vmem:[%s247 + $0x298] sm:$0xff] %vm1944, %v2765
        %2894 = vst.msk [vmem:[%s247 + $0x2a0] sm:$0xff] %vm1944, %v2766
        %2895 = vst.msk [vmem:[%s247 + $0x2a8] sm:$0xff] %vm1944, %v2767
        %2896 = vst.msk [vmem:[%s247 + $0x2b0] sm:$0xff] %vm1944, %v2768
        %2897 = vst.msk [vmem:[%s247 + $0x2b8] sm:$0xff] %vm1944, %v2769
        %2898 = vst.msk [vmem:[%s247 + $0x2c0] sm:$0xff] %vm1944, %v2770
        %2899 = vst.msk [vmem:[%s247 + $0x2c8] sm:$0xff] %vm1944, %v2771
        %2900 = vst.msk [vmem:[%s247 + $0x2d0] sm:$0xff] %vm1944, %v2772
        %2901 = vst.msk [vmem:[%s247 + $0x2d8] sm:$0xff] %vm1944, %v2773
        %2902 = vst.msk [vmem:[%s247 + $0x2e0] sm:$0xff] %vm1944, %v2774
        %2903 = vst.msk [vmem:[%s247 + $0x2e8] sm:$0xff] %vm1944, %v2775
        %2904 = vst.msk [vmem:[%s247 + $0x2f0] sm:$0xff] %vm1944, %v2776
        %2905 = vst.msk [vmem:[%s247 + $0x2f8] sm:$0xff] %vm1944, %v2777
        %2906 = vst.msk [vmem:[%s247 + $0x300] sm:$0xff] %vm1944, %v2778
        %2907 = vst.msk [vmem:[%s247 + $0x308] sm:$0xff] %vm1944, %v2779
        %2908 = vst.msk [vmem:[%s247 + $0x310] sm:$0xff] %vm1944, %v2780
        %2909 = vst.msk [vmem:[%s247 + $0x318] sm:$0xff] %vm1944, %v2781
        %2910 = vst.msk [vmem:[%s247 + $0x320] sm:$0xff] %vm1944, %v2782
        %2911 = vst.msk [vmem:[%s247 + $0x328] sm:$0xff] %vm1944, %v2783
        %2912 = vst.msk [vmem:[%s247 + $0x330] sm:$0xff] %vm1944, %v2784
        %2913 = vst.msk [vmem:[%s247 + $0x338] sm:$0xff] %vm1944, %v2785
        %2914 = vst.msk [vmem:[%s247 + $0x340] sm:$0xff] %vm1944, %v2786
        %2915 = vst.msk [vmem:[%s247 + $0x348] sm:$0xff] %vm1944, %v2787
        %2916 = vst.msk [vmem:[%s247 + $0x350] sm:$0xff] %vm1944, %v2788
        %2917 = vst.msk [vmem:[%s247 + $0x358] sm:$0xff] %vm1944, %v2789
        %2918 = vst.msk [vmem:[%s247 + $0x360] sm:$0xff] %vm1944, %v2790
        %2919 = vst.msk [vmem:[%s247 + $0x368] sm:$0xff] %vm1944, %v2791
        %2920 = vst.msk [vmem:[%s247 + $0x370] sm:$0xff] %vm1944, %v2792
        %2921 = vst.msk [vmem:[%s247 + $0x378] sm:$0xff] %vm1944, %v2793
        %2922 = vst.msk [vmem:[%s247 + $0x380] sm:$0xff] %vm1944, %v2794
        %2923 = vst.msk [vmem:[%s247 + $0x388] sm:$0xff] %vm1944, %v2795
        %2924 = vst.msk [vmem:[%s247 + $0x390] sm:$0xff] %vm1944, %v2796
        %2925 = vst.msk [vmem:[%s247 + $0x398] sm:$0xff] %vm1944, %v2797
        %2926 = vst.msk [vmem:[%s247 + $0x3a0] sm:$0xff] %vm1944, %v2798
        %2927 = vst.msk [vmem:[%s247 + $0x3a8] sm:$0xff] %vm1944, %v2799
        %2928 = vst.msk [vmem:[%s247 + $0x3b0] sm:$0xff] %vm1944, %v2800
        %2929 = vst.msk [vmem:[%s247 + $0x3b8] sm:$0xff] %vm1944, %v2801
        %2930 = vst.msk [vmem:[%s247 + $0x3c0] sm:$0xff] %vm1944, %v2802
        %2931 = vst.msk [vmem:[%s247 + $0x3c8] sm:$0xff] %vm1944, %v2803
        %2932 = vst.msk [vmem:[%s247 + $0x3d0] sm:$0xff] %vm1944, %v2804
        %2933 = vst.msk [vmem:[%s247 + $0x3d8] sm:$0xff] %vm1944, %v2805
        %2934 = vst.msk [vmem:[%s247 + $0x3e0] sm:$0xff] %vm1944, %v2806
        %2935 = vst.msk [vmem:[%s247 + $0x3e8] sm:$0xff] %vm1944, %v2807
        %2936 = vst.msk [vmem:[%s247 + $0x3f0] sm:$0xff] %vm1944, %v2808
        %2937 = vst.msk [vmem:[%s247 + $0x3f8] sm:$0xff] %vm1944, %v2809
        %s2938 = sand.u32 %s144, 1
        %s2939 = scalar_lea.sflag [#allocation3], %s2938
        %s2940 = sand.u32 %s144, 1
        %s2941 = smul.addr %s2940, 1024
        %s2942 = scalar_lea.vmem [#allocation2], %s2941
        // Predicated region
        $region37: #{conv_merge_forward.5} parent=35 // pred_check
          %p2943 = pneg %p154
        $region38: #{conv_merge_forward.5} parent=35 // pred_check_branch
          %2945 = sbr.rel (%p2943) target = $region40
        $region39: #{conv_merge_forward.5} parent=35 // pred_region
          %s2946 = smul.u32 128, %s22
          %s2948 = ssub.s32 16384, 16384
          %2949 = vsyncadd %s2939, %s2948
          %s2950 = sadd.s32 %s23, %s2946
          %s2951 = smul.addr %s2950, 128
          %s2952 = scalar_lea.hbm %s4, %s2951
          %s2953 = sshll.u32 %s2942, 4
          %s2954 = int_to_ptr.vmem [resolvable:$true] %s2953
          %2959 = dma.vmem_to_hbm [thread:$0]  %s2954, 16384, %s2952, %s2939, 128, 128, 8
        $region40: #{conv_merge_forward.5} parent=35 // pred_fallthru
          _
      $region36: #{conv_merge_forward.5} parent=5 // pred_fallthru
        _
      %p2960 = scmp.le.s32.totalorder 2, %s13
      // Predicated region
      $region41: #{conv_merge_forward.5} parent=5 // pred_check
        %p2961 = pneg %p2960
      $region42: #{conv_merge_forward.5} parent=5 // pred_check_branch
        %2963 = sbr.rel (%p2961) target = $region44
      $region43: #{conv_merge_forward.5} parent=5 // pred_region
        %s2964 = ssub.s32 %s13, 2
        // Predicated region
        $region45: #{conv_merge_forward.5} parent=43 // pred_check
          %p2965 = pneg %p160
        $region46: #{conv_merge_forward.5} parent=43 // pred_check_branch
          %2967 = sbr.rel (%p2965) target = $region48
        $region47: #{conv_merge_forward.5} parent=43 // pred_region
          %s2968 = sand.u32 %s145, 1
          %s2969 = scalar_lea.sflag [#allocation3], %s2968
          %s2970 = sand.u32 %s145, 1
          %s2971 = smul.addr %s2970, 1024
          %s2972 = scalar_lea.vmem [#allocation2], %s2971
          %2973 = dma.done %s2969, 16384
        $region48: #{conv_merge_forward.5} parent=43 // pred_fallthru
          _
      $region44: #{conv_merge_forward.5} parent=5 // pred_fallthru
        _
    $region6: #{conv_merge_forward.5} parent=1 // loop_footer
      %s17 = sadd.s32 1, %s13
    $region7: #{conv_merge_forward.5} parent=1 // loop_footer_branch
      %12 = sbr.rel target = $region3
    $region8: #{conv_merge_forward.5} parent=1 // loop_exit
      _
    %2974 = vsyncpa [#allocation3], 1
    %s2975 = scalar_lea.sflag [#allocation3], 1
    %2976 = vsyncpa %s2975, 1

</llo_original>
